<compile_context>
chip_gen: v7x
topology: tpu7x:2x2x1
jax: 0.10.0
libtpu: 0.0.40
codegen_flags: <defaults>
</compile_context>

<pallas_src>
import jax
import jax.numpy as jnp
import numpy as np
from jax import lax
from jax.experimental import pallas as pl
from jax.experimental.pallas import tpu as pltpu

# ---- hyper-parameters (the module's _p dict) ----
INPUT_DIM = 8      # p['input.dim']
CONV_SIZE = 16     # p['conv.size']
CONV_WIDTH = 3     # p['conv.width']
SEM_SIZE = 32      # p['sem.layer.size']
# p['dropout.sibling'] = 0.0 -> identity at inference


def _encode(x_ref, xp_ref, t_ref, pool_ref, wcat_ref, semw_ref, semb_ref):
    """SentLabelEncoder: conv1d(no bias) -> max over length -> linear -> tanh.

    x_ref:    (N, L, D)          sentences, length-major, features on lanes
    xp_ref:   (N*(L+2p), D)      VMEM slab, zero-padded per sentence (in-kernel pad)
    t_ref:    (N*(L+2p), W*C)    conv taps, tap-major on the lane axis
    pool_ref: (N, C)             max-pooled conv features
    returns   (N, S) value       tanh(first_semlayer(pooled))
    """
    n, l, d = x_ref.shape
    c_out = semw_ref.shape[0]
    w_taps = wcat_ref.shape[1] // c_out
    pad = w_taps // 2
    lb = l + 2 * pad

    # ---- in-kernel zero padding: stage every sentence into the padded slab
    xp_ref[...] = jnp.zeros_like(xp_ref)
    for i in range(n):
        xp_ref[i * lb + pad:i * lb + pad + l, :] = x_ref[i]

    # ---- all conv taps in ONE (n*lb, D) @ (D, W*C_out) matmul (big M, MXU)
    t_ref[...] = jnp.dot(xp_ref[...], wcat_ref[...],
                         preferred_element_type=jnp.float32)

    # ---- per-sentence tap-shifted sum + max-pool over the length axis
    for i in range(n):
        base = i * lb
        conv_i = t_ref[base:base + l, 0:c_out]
        for w in range(1, w_taps):
            conv_i = conv_i + t_ref[base + w:base + w + l,
                                    w * c_out:(w + 1) * c_out]
        pool_ref[i:i + 1, :] = jnp.max(conv_i, axis=0, keepdims=True)

    # ---- first_semlayer + tanh (sibling.activation == 'tanh')
    sem = jnp.dot(pool_ref[...], semw_ref[...],
                  preferred_element_type=jnp.float32) + semb_ref[...]
    return jnp.tanh(sem)


def _brothers_kernel(s_ref, g_ref, wcat_ref, semw_ref, semb_ref, out_ref,
                     sp_ref, st_ref, spool_ref,
                     gp_ref, gt_ref, gpool_ref, gmax_ref):
    """Whole BrothersTorchNet forward, fused.  out_ref: (B*C, 1) log-probs."""
    b = s_ref.shape[0]
    bc = gmax_ref.shape[0]
    c = bc // b
    e = g_ref.shape[0] // bc

    # sentence embeddings (B, S) and edge embeddings (B*C*E, S) -- all in VMEM
    s_emb = _encode(s_ref, sp_ref, st_ref, spool_ref,
                    wcat_ref, semw_ref, semb_ref)
    e_emb = _encode(g_ref, gp_ref, gt_ref, gpool_ref,
                    wcat_ref, semw_ref, semb_ref)

    # graph.mode == 'max': max over edges per (batch, choice)
    for r in range(bc):
        gmax_ref[r:r + 1, :] = jnp.max(e_emb[r * e:(r + 1) * e, :],
                                       axis=0, keepdims=True)

    # dot similarity with the sentence embedding + log_softmax over choices
    for i in range(b):
        g_blk = gmax_ref[i * c:(i + 1) * c, :]                 # (C, S)
        s_row = s_emb[i:i + 1, :]                              # (1, S)
        sc = jnp.sum(g_blk * s_row, axis=1, keepdims=True)     # (C, 1)
        m = jnp.max(sc, axis=0, keepdims=True)
        z = sc - m
        lse = jnp.log(jnp.sum(jnp.exp(z), axis=0, keepdims=True))
        out_ref[i * c:(i + 1) * c, :] = z - lse


def brothers_forward(params, s_x, g_x):
    """BrothersTorchNet.forward (scores + log_softmax) for the default config."""
    conv_w = params['conv_w']                     # (C_out, D_in, W)  torch Conv1d layout
    sem_w = params['sem_w']                       # (S, C_out)        torch Linear layout
    sem_b = params['sem_b']                       # (S,)

    c_out, d_in, w_taps = conv_w.shape
    s_dim = sem_w.shape[0]
    pad = w_taps // 2

    s_x = s_x.astype(jnp.float32)
    g_x = g_x.astype(jnp.float32)
    bsz, d, ls = s_x.shape
    _, choices, edges, _, lg = g_x.shape
    ng = bsz * choices * edges

    # layout plumbing only: NCL -> (rows, L, D); pack conv taps side by side
    s_t = jnp.transpose(s_x, (0, 2, 1))                                  # (B, Ls, D)
    g_t = jnp.transpose(g_x, (0, 1, 2, 4, 3)).reshape(ng, lg, d)         # (B*C*E, Lg, D)
    wcat = jnp.concatenate([conv_w[:, :, w].T for w in range(w_taps)],
                           axis=1)                                       # (D, W*C_out)
    semw_t = sem_w.T                                                     # (C_out, S)
    semb = sem_b.reshape(1, s_dim)                                       # (1, S)

    lbs = ls + 2 * pad
    lbg = lg + 2 * pad

    out = pl.pallas_call(
        _brothers_kernel,
        out_shape=jax.ShapeDtypeStruct((bsz * choices, 1), jnp.float32),
        grid=(1,),
        in_specs=[
            pl.BlockSpec((bsz, ls, d), lambda i: (0, 0, 0)),
            pl.BlockSpec((ng, lg, d), lambda i: (0, 0, 0)),
            pl.BlockSpec((d, w_taps * c_out), lambda i: (0, 0)),
            pl.BlockSpec((c_out, s_dim), lambda i: (0, 0)),
            pl.BlockSpec((1, s_dim), lambda i: (0, 0)),
        ],
        out_specs=pl.BlockSpec((bsz * choices, 1), lambda i: (0, 0)),
        scratch_shapes=[
            pltpu.VMEM((bsz * lbs, d), jnp.float32),                # sp  : padded sentence slab
            pltpu.VMEM((bsz * lbs, w_taps * c_out), jnp.float32),   # st  : sentence conv taps
            pltpu.VMEM((bsz, c_out), jnp.float32),                  # spool
            pltpu.VMEM((ng * lbg, d), jnp.float32),                 # gp  : padded edge slab
            pltpu.VMEM((ng * lbg, w_taps * c_out), jnp.float32),    # gt  : edge conv taps
            pltpu.VMEM((ng, c_out), jnp.float32),                   # gpool
            pltpu.VMEM((bsz * choices, s_dim), jnp.float32),        # gmax: per-choice graph emb
        ],
        compiler_params=pltpu.CompilerParams(
            dimension_semantics=("arbitrary",)),
    )(s_t, g_t, wcat, semw_t, semb)

    # free layout reshape of the tiny HBM result: (B*C, 1) -> (B, C)
    return out.reshape(bsz, choices)


def reference_forward(params, s_x, g_x):
    """Pure-JAX reference of the same default-config forward."""
    conv_w, sem_w, sem_b = params['conv_w'], params['sem_w'], params['sem_b']
    pad = conv_w.shape[2] // 2

    def enc(x):
        y = lax.conv_general_dilated(x, conv_w, window_strides=(1,),
                                     padding=[(pad, pad)],
                                     dimension_numbers=('NCH', 'OIH', 'NCH'))
        y = jnp.max(y, axis=-1)
        return jnp.tanh(y @ sem_w.T + sem_b)

    B, C, E, D, Lg = g_x.shape
    s_emb = enc(s_x.astype(jnp.float32))
    e_emb = enc(g_x.astype(jnp.float32).reshape(B * C * E, D, Lg))
    e_emb = e_emb.reshape(B, C, E, -1)
    g_emb = jnp.max(e_emb, axis=2)
    scores = jnp.einsum('bcs,bs->bc', g_emb, s_emb)
    return jax.nn.log_softmax(scores, axis=1)


if __name__ == "__main__":
    key = jax.random.PRNGKey(0)
    k1, k2, k3, k4, k5 = jax.random.split(key, 5)

    B, C, E = 2, 4, 4          # batch, choices, num_edges
    L_s, L_g = 12, 10          # sentence / edge-label lengths

    # deterministic synthetic parameters (shapes from the module's __init__)
    params = dict(
        conv_w=0.2 * jax.random.normal(k1, (CONV_SIZE, INPUT_DIM, CONV_WIDTH), jnp.float32),
        sem_w=0.2 * jax.random.normal(k2, (SEM_SIZE, CONV_SIZE), jnp.float32),
        sem_b=0.1 * jax.random.normal(k3, (SEM_SIZE,), jnp.float32),
    )

    s_x = jax.random.normal(k4, (B, INPUT_DIM, L_s), jnp.float32)
    g_x = jax.random.normal(k5, (B, C, E, INPUT_DIM, L_g), jnp.float32)

    fwd = jax.jit(brothers_forward)
    out = fwd(params, s_x, g_x)
    out = jax.block_until_ready(out)

    ref = reference_forward(params, s_x, g_x)
    np.testing.assert_allclose(np.asarray(out), np.asarray(ref), rtol=1e-5, atol=1e-5)

    print("KERNEL_OK")
</pallas_src>

<mosaic_0001>
module attributes {stable_mosaic.version = 11 : i64} {
  func.func @_brothers_kernel(%arg0: i32, %arg1: memref<2x12x8xf32, #tpu.memory_space<vmem>>, %arg2: memref<32x10x8xf32, #tpu.memory_space<vmem>>, %arg3: memref<8x48xf32, #tpu.memory_space<vmem>>, %arg4: memref<16x32xf32, #tpu.memory_space<vmem>>, %arg5: memref<1x32xf32, #tpu.memory_space<vmem>>, %arg6: memref<8x1xf32, #tpu.memory_space<vmem>>, %arg7: memref<28x8xf32, #tpu.memory_space<vmem>>, %arg8: memref<28x48xf32, #tpu.memory_space<vmem>>, %arg9: memref<2x16xf32, #tpu.memory_space<vmem>>, %arg10: memref<384x8xf32, #tpu.memory_space<vmem>>, %arg11: memref<384x48xf32, #tpu.memory_space<vmem>>, %arg12: memref<32x16xf32, #tpu.memory_space<vmem>>, %arg13: memref<8x32xf32, #tpu.memory_space<vmem>>) attributes {dimension_semantics = [#tpu.dimension_semantics<arbitrary>], iteration_bounds = array<i64: 1>, scalar_prefetch = 0 : i64, scratch_operands = 7 : i64, tpu.core_type = #tpu.core_type<tc>, window_params = [{pipeline_mode = #tpu.pipeline_mode<synchronous>, transform_indices = @transform_0, window_bounds = array<i64: 2, 12, 8>}, {pipeline_mode = #tpu.pipeline_mode<synchronous>, transform_indices = @transform_1, window_bounds = array<i64: 32, 10, 8>}, {pipeline_mode = #tpu.pipeline_mode<synchronous>, transform_indices = @transform_2, window_bounds = array<i64: 8, 48>}, {pipeline_mode = #tpu.pipeline_mode<synchronous>, transform_indices = @transform_3, window_bounds = array<i64: 16, 32>}, {pipeline_mode = #tpu.pipeline_mode<synchronous>, transform_indices = @transform_4, window_bounds = array<i64: 1, 32>}, {pipeline_mode = #tpu.pipeline_mode<synchronous>, transform_indices = @transform_5, window_bounds = array<i64: 8, 1>}]} {
    %cst = arith.constant 0.000000e+00 : f32
    %0 = vector.broadcast %cst : f32 to vector<28x8xf32>
    %c0 = arith.constant 0 : index
    %c0_0 = arith.constant 0 : index
    %1 = vector.load %arg7[%c0, %c0_0] : memref<28x8xf32, #tpu.memory_space<vmem>>, vector<28x8xf32>
    tpu.vector_store %arg7[%c0, %c0_0], %0 {strides = array<i32>} : memref<28x8xf32, #tpu.memory_space<vmem>>, vector<28x8xf32>,
    %c0_1 = arith.constant 0 : index
    %c0_2 = arith.constant 0 : index
    %c0_3 = arith.constant 0 : index
    %2 = vector.load %arg1[%c0_1, %c0_2, %c0_3] : memref<2x12x8xf32, #tpu.memory_space<vmem>>, vector<1x12x8xf32>
    %3 = vector.shape_cast %2 : vector<1x12x8xf32> to vector<12x8xf32>
    %c1 = arith.constant 1 : index
    %c0_4 = arith.constant 0 : index
    %4 = vector.load %arg7[%c1, %c0_4] : memref<28x8xf32, #tpu.memory_space<vmem>>, vector<12x8xf32>
    tpu.vector_store %arg7[%c1, %c0_4], %3 {strides = array<i32>} : memref<28x8xf32, #tpu.memory_space<vmem>>, vector<12x8xf32>,
    %c1_5 = arith.constant 1 : index
    %c0_6 = arith.constant 0 : index
    %c0_7 = arith.constant 0 : index
    %5 = vector.load %arg1[%c1_5, %c0_6, %c0_7] : memref<2x12x8xf32, #tpu.memory_space<vmem>>, vector<1x12x8xf32>
    %6 = vector.shape_cast %5 : vector<1x12x8xf32> to vector<12x8xf32>
    %c15 = arith.constant 15 : index
    %c0_8 = arith.constant 0 : index
    %7 = vector.load %arg7[%c15, %c0_8] : memref<28x8xf32, #tpu.memory_space<vmem>>, vector<12x8xf32>
    tpu.vector_store %arg7[%c15, %c0_8], %6 {strides = array<i32>} : memref<28x8xf32, #tpu.memory_space<vmem>>, vector<12x8xf32>,
    %c0_9 = arith.constant 0 : index
    %c0_10 = arith.constant 0 : index
    %8 = vector.load %arg7[%c0_9, %c0_10] : memref<28x8xf32, #tpu.memory_space<vmem>>, vector<28x8xf32>
    %c0_11 = arith.constant 0 : index
    %c0_12 = arith.constant 0 : index
    %9 = vector.load %arg3[%c0_11, %c0_12] : memref<8x48xf32, #tpu.memory_space<vmem>>, vector<8x48xf32>
    %cst_13 = arith.constant dense<0.000000e+00> : vector<28x48xf32>
    %10 = tpu.matmul %8, %9, %cst_13 {dimension_numbers = #tpu.dot_dimension_numbers<[1], [0], [0], [1], [0, 0, 1, 1], [], []>} : vector<28x8xf32>, vector<8x48xf32>, vector<28x48xf32> -> vector<28x48xf32>
    %c0_14 = arith.constant 0 : index
    %c0_15 = arith.constant 0 : index
    %11 = vector.load %arg8[%c0_14, %c0_15] : memref<28x48xf32, #tpu.memory_space<vmem>>, vector<28x48xf32>
    tpu.vector_store %arg8[%c0_14, %c0_15], %10 {strides = array<i32>} : memref<28x48xf32, #tpu.memory_space<vmem>>, vector<28x48xf32>,
    %c0_16 = arith.constant 0 : index
    %c0_17 = arith.constant 0 : index
    %12 = vector.load %arg8[%c0_16, %c0_17] : memref<28x48xf32, #tpu.memory_space<vmem>>, vector<12x16xf32>
    %c1_18 = arith.constant 1 : index
    %c16 = arith.constant 16 : index
    %13 = vector.load %arg8[%c1_18, %c16] : memref<28x48xf32, #tpu.memory_space<vmem>>, vector<12x16xf32>
    %14 = arith.addf %12, %13 : vector<12x16xf32>
    %c2 = arith.constant 2 : index
    %c32 = arith.constant 32 : index
    %15 = vector.load %arg8[%c2, %c32] : memref<28x48xf32, #tpu.memory_space<vmem>>, vector<12x16xf32>
    %16 = arith.addf %14, %15 : vector<12x16xf32>
    %cst_19 = arith.constant dense<0xFF800000> : vector<16xf32>
    %17 = vector.multi_reduction <maximumf>, %16, %cst_19 [0] : vector<12x16xf32> to vector<16xf32>
    %18 = vector.shape_cast %17 : vector<16xf32> to vector<1x16xf32>
    %c0_20 = arith.constant 0 : index
    %c0_21 = arith.constant 0 : index
    %19 = vector.load %arg9[%c0_20, %c0_21] : memref<2x16xf32, #tpu.memory_space<vmem>>, vector<1x16xf32>
    tpu.vector_store %arg9[%c0_20, %c0_21], %18 {strides = array<i32>} : memref<2x16xf32, #tpu.memory_space<vmem>>, vector<1x16xf32>,
    %c14 = arith.constant 14 : index
    %c0_22 = arith.constant 0 : index
    %20 = vector.load %arg8[%c14, %c0_22] : memref<28x48xf32, #tpu.memory_space<vmem>>, vector<12x16xf32>
    %c15_23 = arith.constant 15 : index
    %c16_24 = arith.constant 16 : index
    %21 = vector.load %arg8[%c15_23, %c16_24] : memref<28x48xf32, #tpu.memory_space<vmem>>, vector<12x16xf32>
    %22 = arith.addf %20, %21 : vector<12x16xf32>
    %c16_25 = arith.constant 16 : index
    %c32_26 = arith.constant 32 : index
    %23 = vector.load %arg8[%c16_25, %c32_26] : memref<28x48xf32, #tpu.memory_space<vmem>>, vector<12x16xf32>
    %24 = arith.addf %22, %23 : vector<12x16xf32>
    %cst_27 = arith.constant dense<0xFF800000> : vector<16xf32>
    %25 = vector.multi_reduction <maximumf>, %24, %cst_27 [0] : vector<12x16xf32> to vector<16xf32>
    %26 = vector.shape_cast %25 : vector<16xf32> to vector<1x16xf32>
    %c1_28 = arith.constant 1 : index
    %c0_29 = arith.constant 0 : index
    %27 = vector.load %arg9[%c1_28, %c0_29] : memref<2x16xf32, #tpu.memory_space<vmem>>, vector<1x16xf32>
    tpu.vector_store %arg9[%c1_28, %c0_29], %26 {strides = array<i32>} : memref<2x16xf32, #tpu.memory_space<vmem>>, vector<1x16xf32>,
    %c0_30 = arith.constant 0 : index
    %c0_31 = arith.constant 0 : index
    %28 = vector.load %arg9[%c0_30, %c0_31] : memref<2x16xf32, #tpu.memory_space<vmem>>, vector<2x16xf32>
    %c0_32 = arith.constant 0 : index
    %c0_33 = arith.constant 0 : index
    %29 = vector.load %arg4[%c0_32, %c0_33] : memref<16x32xf32, #tpu.memory_space<vmem>>, vector<16x32xf32>
    %cst_34 = arith.constant dense<0.000000e+00> : vector<2x32xf32>
    %30 = tpu.matmul %28, %29, %cst_34 {dimension_numbers = #tpu.dot_dimension_numbers<[1], [0], [0], [1], [0, 0, 1, 1], [], []>} : vector<2x16xf32>, vector<16x32xf32>, vector<2x32xf32> -> vector<2x32xf32>
    %c0_35 = arith.constant 0 : index
    %c0_36 = arith.constant 0 : index
    %31 = vector.load %arg5[%c0_35, %c0_36] : memref<1x32xf32, #tpu.memory_space<vmem>>, vector<1x32xf32>
    %32 = vector.broadcast %31 : vector<1x32xf32> to vector<2x32xf32>
    %33 = arith.addf %30, %32 : vector<2x32xf32>
    %34 = math.tanh %33 : vector<2x32xf32>
    %cst_37 = arith.constant 0.000000e+00 : f32
    %35 = vector.broadcast %cst_37 : f32 to vector<384x8xf32>
    %c0_38 = arith.constant 0 : index
    %c0_39 = arith.constant 0 : index
    %36 = vector.load %arg10[%c0_38, %c0_39] : memref<384x8xf32, #tpu.memory_space<vmem>>, vector<384x8xf32>
    tpu.vector_store %arg10[%c0_38, %c0_39], %35 {strides = array<i32>} : memref<384x8xf32, #tpu.memory_space<vmem>>, vector<384x8xf32>,
    %c0_40 = arith.constant 0 : index
    %c0_41 = arith.constant 0 : index
    %c0_42 = arith.constant 0 : index
    %37 = vector.load %arg2[%c0_40, %c0_41, %c0_42] : memref<32x10x8xf32, #tpu.memory_space<vmem>>, vector<1x10x8xf32>
    %38 = vector.shape_cast %37 : vector<1x10x8xf32> to vector<10x8xf32>
    %c1_43 = arith.constant 1 : index
    %c0_44 = arith.constant 0 : index
    %39 = vector.load %arg10[%c1_43, %c0_44] : memref<384x8xf32, #tpu.memory_space<vmem>>, vector<10x8xf32>
    tpu.vector_store %arg10[%c1_43, %c0_44], %38 {strides = array<i32>} : memref<384x8xf32, #tpu.memory_space<vmem>>, vector<10x8xf32>,
    %c1_45 = arith.constant 1 : index
    %c0_46 = arith.constant 0 : index
    %c0_47 = arith.constant 0 : index
    %40 = vector.load %arg2[%c1_45, %c0_46, %c0_47] : memref<32x10x8xf32, #tpu.memory_space<vmem>>, vector<1x10x8xf32>
    %41 = vector.shape_cast %40 : vector<1x10x8xf32> to vector<10x8xf32>
    %c13 = arith.constant 13 : index
    %c0_48 = arith.constant 0 : index
    %42 = vector.load %arg10[%c13, %c0_48] : memref<384x8xf32, #tpu.memory_space<vmem>>, vector<10x8xf32>
    tpu.vector_store %arg10[%c13, %c0_48], %41 {strides = array<i32>} : memref<384x8xf32, #tpu.memory_space<vmem>>, vector<10x8xf32>,
    %c2_49 = arith.constant 2 : index
    %c0_50 = arith.constant 0 : index
    %c0_51 = arith.constant 0 : index
    %43 = vector.load %arg2[%c2_49, %c0_50, %c0_51] : memref<32x10x8xf32, #tpu.memory_space<vmem>>, vector<1x10x8xf32>
    %44 = vector.shape_cast %43 : vector<1x10x8xf32> to vector<10x8xf32>
    %c25 = arith.constant 25 : index
    %c0_52 = arith.constant 0 : index
    %45 = vector.load %arg10[%c25, %c0_52] : memref<384x8xf32, #tpu.memory_space<vmem>>, vector<10x8xf32>
    tpu.vector_store %arg10[%c25, %c0_52], %44 {strides = array<i32>} : memref<384x8xf32, #tpu.memory_space<vmem>>, vector<10x8xf32>,
    %c3 = arith.constant 3 : index
    %c0_53 = arith.constant 0 : index
    %c0_54 = arith.constant 0 : index
    %46 = vector.load %arg2[%c3, %c0_53, %c0_54] : memref<32x10x8xf32, #tpu.memory_space<vmem>>, vector<1x10x8xf32>
    %47 = vector.shape_cast %46 : vector<1x10x8xf32> to vector<10x8xf32>
    %c37 = arith.constant 37 : index
    %c0_55 = arith.constant 0 : index
    %48 = vector.load %arg10[%c37, %c0_55] : memref<384x8xf32, #tpu.memory_space<vmem>>, vector<10x8xf32>
    tpu.vector_store %arg10[%c37, %c0_55], %47 {strides = array<i32>} : memref<384x8xf32, #tpu.memory_space<vmem>>, vector<10x8xf32>,
    %c4 = arith.constant 4 : index
    %c0_56 = arith.constant 0 : index
    %c0_57 = arith.constant 0 : index
    %49 = vector.load %arg2[%c4, %c0_56, %c0_57] : memref<32x10x8xf32, #tpu.memory_space<vmem>>, vector<1x10x8xf32>
    %50 = vector.shape_cast %49 : vector<1x10x8xf32> to vector<10x8xf32>
    %c49 = arith.constant 49 : index
    %c0_58 = arith.constant 0 : index
    %51 = vector.load %arg10[%c49, %c0_58] : memref<384x8xf32, #tpu.memory_space<vmem>>, vector<10x8xf32>
    tpu.vector_store %arg10[%c49, %c0_58], %50 {strides = array<i32>} : memref<384x8xf32, #tpu.memory_space<vmem>>, vector<10x8xf32>,
    %c5 = arith.constant 5 : index
    %c0_59 = arith.constant 0 : index
    %c0_60 = arith.constant 0 : index
    %52 = vector.load %arg2[%c5, %c0_59, %c0_60] : memref<32x10x8xf32, #tpu.memory_space<vmem>>, vector<1x10x8xf32>
    %53 = vector.shape_cast %52 : vector<1x10x8xf32> to vector<10x8xf32>
    %c61 = arith.constant 61 : index
    %c0_61 = arith.constant 0 : index
    %54 = vector.load %arg10[%c61, %c0_61] : memref<384x8xf32, #tpu.memory_space<vmem>>, vector<10x8xf32>
    tpu.vector_store %arg10[%c61, %c0_61], %53 {strides = array<i32>} : memref<384x8xf32, #tpu.memory_space<vmem>>, vector<10x8xf32>,
    %c6 = arith.constant 6 : index
    %c0_62 = arith.constant 0 : index
    %c0_63 = arith.constant 0 : index
    %55 = vector.load %arg2[%c6, %c0_62, %c0_63] : memref<32x10x8xf32, #tpu.memory_space<vmem>>, vector<1x10x8xf32>
    %56 = vector.shape_cast %55 : vector<1x10x8xf32> to vector<10x8xf32>
    %c73 = arith.constant 73 : index
    %c0_64 = arith.constant 0 : index
    %57 = vector.load %arg10[%c73, %c0_64] : memref<384x8xf32, #tpu.memory_space<vmem>>, vector<10x8xf32>
    tpu.vector_store %arg10[%c73, %c0_64], %56 {strides = array<i32>} : memref<384x8xf32, #tpu.memory_space<vmem>>, vector<10x8xf32>,
    %c7 = arith.constant 7 : index
    %c0_65 = arith.constant 0 : index
    %c0_66 = arith.constant 0 : index
    %58 = vector.load %arg2[%c7, %c0_65, %c0_66] : memref<32x10x8xf32, #tpu.memory_space<vmem>>, vector<1x10x8xf32>
    %59 = vector.shape_cast %58 : vector<1x10x8xf32> to vector<10x8xf32>
    %c85 = arith.constant 85 : index
    %c0_67 = arith.constant 0 : index
    %60 = vector.load %arg10[%c85, %c0_67] : memref<384x8xf32, #tpu.memory_space<vmem>>, vector<10x8xf32>
    tpu.vector_store %arg10[%c85, %c0_67], %59 {strides = array<i32>} : memref<384x8xf32, #tpu.memory_space<vmem>>, vector<10x8xf32>,
    %c8 = arith.constant 8 : index
    %c0_68 = arith.constant 0 : index
    %c0_69 = arith.constant 0 : index
    %61 = vector.load %arg2[%c8, %c0_68, %c0_69] : memref<32x10x8xf32, #tpu.memory_space<vmem>>, vector<1x10x8xf32>
    %62 = vector.shape_cast %61 : vector<1x10x8xf32> to vector<10x8xf32>
    %c97 = arith.constant 97 : index
    %c0_70 = arith.constant 0 : index
    %63 = vector.load %arg10[%c97, %c0_70] : memref<384x8xf32, #tpu.memory_space<vmem>>, vector<10x8xf32>
    tpu.vector_store %arg10[%c97, %c0_70], %62 {strides = array<i32>} : memref<384x8xf32, #tpu.memory_space<vmem>>, vector<10x8xf32>,
    %c9 = arith.constant 9 : index
    %c0_71 = arith.constant 0 : index
    %c0_72 = arith.constant 0 : index
    %64 = vector.load %arg2[%c9, %c0_71, %c0_72] : memref<32x10x8xf32, #tpu.memory_space<vmem>>, vector<1x10x8xf32>
    %65 = vector.shape_cast %64 : vector<1x10x8xf32> to vector<10x8xf32>
    %c109 = arith.constant 109 : index
    %c0_73 = arith.constant 0 : index
    %66 = vector.load %arg10[%c109, %c0_73] : memref<384x8xf32, #tpu.memory_space<vmem>>, vector<10x8xf32>
    tpu.vector_store %arg10[%c109, %c0_73], %65 {strides = array<i32>} : memref<384x8xf32, #tpu.memory_space<vmem>>, vector<10x8xf32>,
    %c10 = arith.constant 10 : index
    %c0_74 = arith.constant 0 : index
    %c0_75 = arith.constant 0 : index
    %67 = vector.load %arg2[%c10, %c0_74, %c0_75] : memref<32x10x8xf32, #tpu.memory_space<vmem>>, vector<1x10x8xf32>
    %68 = vector.shape_cast %67 : vector<1x10x8xf32> to vector<10x8xf32>
    %c121 = arith.constant 121 : index
    %c0_76 = arith.constant 0 : index
    %69 = vector.load %arg10[%c121, %c0_76] : memref<384x8xf32, #tpu.memory_space<vmem>>, vector<10x8xf32>
    tpu.vector_store %arg10[%c121, %c0_76], %68 {strides = array<i32>} : memref<384x8xf32, #tpu.memory_space<vmem>>, vector<10x8xf32>,
    %c11 = arith.constant 11 : index
    %c0_77 = arith.constant 0 : index
    %c0_78 = arith.constant 0 : index
    %70 = vector.load %arg2[%c11, %c0_77, %c0_78] : memref<32x10x8xf32, #tpu.memory_space<vmem>>, vector<1x10x8xf32>
    %71 = vector.shape_cast %70 : vector<1x10x8xf32> to vector<10x8xf32>
    %c133 = arith.constant 133 : index
    %c0_79 = arith.constant 0 : index
    %72 = vector.load %arg10[%c133, %c0_79] : memref<384x8xf32, #tpu.memory_space<vmem>>, vector<10x8xf32>
    tpu.vector_store %arg10[%c133, %c0_79], %71 {strides = array<i32>} : memref<384x8xf32, #tpu.memory_space<vmem>>, vector<10x8xf32>,
    %c12 = arith.constant 12 : index
    %c0_80 = arith.constant 0 : index
    %c0_81 = arith.constant 0 : index
    %73 = vector.load %arg2[%c12, %c0_80, %c0_81] : memref<32x10x8xf32, #tpu.memory_space<vmem>>, vector<1x10x8xf32>
    %74 = vector.shape_cast %73 : vector<1x10x8xf32> to vector<10x8xf32>
    %c145 = arith.constant 145 : index
    %c0_82 = arith.constant 0 : index
    %75 = vector.load %arg10[%c145, %c0_82] : memref<384x8xf32, #tpu.memory_space<vmem>>, vector<10x8xf32>
    tpu.vector_store %arg10[%c145, %c0_82], %74 {strides = array<i32>} : memref<384x8xf32, #tpu.memory_space<vmem>>, vector<10x8xf32>,
    %c13_83 = arith.constant 13 : index
    %c0_84 = arith.constant 0 : index
    %c0_85 = arith.constant 0 : index
    %76 = vector.load %arg2[%c13_83, %c0_84, %c0_85] : memref<32x10x8xf32, #tpu.memory_space<vmem>>, vector<1x10x8xf32>
    %77 = vector.shape_cast %76 : vector<1x10x8xf32> to vector<10x8xf32>
    %c157 = arith.constant 157 : index
    %c0_86 = arith.constant 0 : index
    %78 = vector.load %arg10[%c157, %c0_86] : memref<384x8xf32, #tpu.memory_space<vmem>>, vector<10x8xf32>
    tpu.vector_store %arg10[%c157, %c0_86], %77 {strides = array<i32>} : memref<384x8xf32, #tpu.memory_space<vmem>>, vector<10x8xf32>,
    %c14_87 = arith.constant 14 : index
    %c0_88 = arith.constant 0 : index
    %c0_89 = arith.constant 0 : index
    %79 = vector.load %arg2[%c14_87, %c0_88, %c0_89] : memref<32x10x8xf32, #tpu.memory_space<vmem>>, vector<1x10x8xf32>
    %80 = vector.shape_cast %79 : vector<1x10x8xf32> to vector<10x8xf32>
    %c169 = arith.constant 169 : index
    %c0_90 = arith.constant 0 : index
    %81 = vector.load %arg10[%c169, %c0_90] : memref<384x8xf32, #tpu.memory_space<vmem>>, vector<10x8xf32>
    tpu.vector_store %arg10[%c169, %c0_90], %80 {strides = array<i32>} : memref<384x8xf32, #tpu.memory_space<vmem>>, vector<10x8xf32>,
    %c15_91 = arith.constant 15 : index
    %c0_92 = arith.constant 0 : index
    %c0_93 = arith.constant 0 : index
    %82 = vector.load %arg2[%c15_91, %c0_92, %c0_93] : memref<32x10x8xf32, #tpu.memory_space<vmem>>, vector<1x10x8xf32>
    %83 = vector.shape_cast %82 : vector<1x10x8xf32> to vector<10x8xf32>
    %c181 = arith.constant 181 : index
    %c0_94 = arith.constant 0 : index
    %84 = vector.load %arg10[%c181, %c0_94] : memref<384x8xf32, #tpu.memory_space<vmem>>, vector<10x8xf32>
    tpu.vector_store %arg10[%c181, %c0_94], %83 {strides = array<i32>} : memref<384x8xf32, #tpu.memory_space<vmem>>, vector<10x8xf32>,
    %c16_95 = arith.constant 16 : index
    %c0_96 = arith.constant 0 : index
    %c0_97 = arith.constant 0 : index
    %85 = vector.load %arg2[%c16_95, %c0_96, %c0_97] : memref<32x10x8xf32, #tpu.memory_space<vmem>>, vector<1x10x8xf32>
    %86 = vector.shape_cast %85 : vector<1x10x8xf32> to vector<10x8xf32>
    %c193 = arith.constant 193 : index
    %c0_98 = arith.constant 0 : index
    %87 = vector.load %arg10[%c193, %c0_98] : memref<384x8xf32, #tpu.memory_space<vmem>>, vector<10x8xf32>
    tpu.vector_store %arg10[%c193, %c0_98], %86 {strides = array<i32>} : memref<384x8xf32, #tpu.memory_space<vmem>>, vector<10x8xf32>,
    %c17 = arith.constant 17 : index
    %c0_99 = arith.constant 0 : index
    %c0_100 = arith.constant 0 : index
    %88 = vector.load %arg2[%c17, %c0_99, %c0_100] : memref<32x10x8xf32, #tpu.memory_space<vmem>>, vector<1x10x8xf32>
    %89 = vector.shape_cast %88 : vector<1x10x8xf32> to vector<10x8xf32>
    %c205 = arith.constant 205 : index
    %c0_101 = arith.constant 0 : index
    %90 = vector.load %arg10[%c205, %c0_101] : memref<384x8xf32, #tpu.memory_space<vmem>>, vector<10x8xf32>
    tpu.vector_store %arg10[%c205, %c0_101], %89 {strides = array<i32>} : memref<384x8xf32, #tpu.memory_space<vmem>>, vector<10x8xf32>,
    %c18 = arith.constant 18 : index
    %c0_102 = arith.constant 0 : index
    %c0_103 = arith.constant 0 : index
    %91 = vector.load %arg2[%c18, %c0_102, %c0_103] : memref<32x10x8xf32, #tpu.memory_space<vmem>>, vector<1x10x8xf32>
    %92 = vector.shape_cast %91 : vector<1x10x8xf32> to vector<10x8xf32>
    %c217 = arith.constant 217 : index
    %c0_104 = arith.constant 0 : index
    %93 = vector.load %arg10[%c217, %c0_104] : memref<384x8xf32, #tpu.memory_space<vmem>>, vector<10x8xf32>
    tpu.vector_store %arg10[%c217, %c0_104], %92 {strides = array<i32>} : memref<384x8xf32, #tpu.memory_space<vmem>>, vector<10x8xf32>,
    %c19 = arith.constant 19 : index
    %c0_105 = arith.constant 0 : index
    %c0_106 = arith.constant 0 : index
    %94 = vector.load %arg2[%c19, %c0_105, %c0_106] : memref<32x10x8xf32, #tpu.memory_space<vmem>>, vector<1x10x8xf32>
    %95 = vector.shape_cast %94 : vector<1x10x8xf32> to vector<10x8xf32>
    %c229 = arith.constant 229 : index
    %c0_107 = arith.constant 0 : index
    %96 = vector.load %arg10[%c229, %c0_107] : memref<384x8xf32, #tpu.memory_space<vmem>>, vector<10x8xf32>
    tpu.vector_store %arg10[%c229, %c0_107], %95 {strides = array<i32>} : memref<384x8xf32, #tpu.memory_space<vmem>>, vector<10x8xf32>,
    %c20 = arith.constant 20 : index
    %c0_108 = arith.constant 0 : index
    %c0_109 = arith.constant 0 : index
    %97 = vector.load %arg2[%c20, %c0_108, %c0_109] : memref<32x10x8xf32, #tpu.memory_space<vmem>>, vector<1x10x8xf32>
    %98 = vector.shape_cast %97 : vector<1x10x8xf32> to vector<10x8xf32>
    %c241 = arith.constant 241 : index
    %c0_110 = arith.constant 0 : index
    %99 = vector.load %arg10[%c241, %c0_110] : memref<384x8xf32, #tpu.memory_space<vmem>>, vector<10x8xf32>
    tpu.vector_store %arg10[%c241, %c0_110], %98 {strides = array<i32>} : memref<384x8xf32, #tpu.memory_space<vmem>>, vector<10x8xf32>,
    %c21 = arith.constant 21 : index
    %c0_111 = arith.constant 0 : index
    %c0_112 = arith.constant 0 : index
    %100 = vector.load %arg2[%c21, %c0_111, %c0_112] : memref<32x10x8xf32, #tpu.memory_space<vmem>>, vector<1x10x8xf32>
    %101 = vector.shape_cast %100 : vector<1x10x8xf32> to vector<10x8xf32>
    %c253 = arith.constant 253 : index
    %c0_113 = arith.constant 0 : index
    %102 = vector.load %arg10[%c253, %c0_113] : memref<384x8xf32, #tpu.memory_space<vmem>>, vector<10x8xf32>
    tpu.vector_store %arg10[%c253, %c0_113], %101 {strides = array<i32>} : memref<384x8xf32, #tpu.memory_space<vmem>>, vector<10x8xf32>,
    %c22 = arith.constant 22 : index
    %c0_114 = arith.constant 0 : index
    %c0_115 = arith.constant 0 : index
    %103 = vector.load %arg2[%c22, %c0_114, %c0_115] : memref<32x10x8xf32, #tpu.memory_space<vmem>>, vector<1x10x8xf32>
    %104 = vector.shape_cast %103 : vector<1x10x8xf32> to vector<10x8xf32>
    %c265 = arith.constant 265 : index
    %c0_116 = arith.constant 0 : index
    %105 = vector.load %arg10[%c265, %c0_116] : memref<384x8xf32, #tpu.memory_space<vmem>>, vector<10x8xf32>
    tpu.vector_store %arg10[%c265, %c0_116], %104 {strides = array<i32>} : memref<384x8xf32, #tpu.memory_space<vmem>>, vector<10x8xf32>,
    %c23 = arith.constant 23 : index
    %c0_117 = arith.constant 0 : index
    %c0_118 = arith.constant 0 : index
    %106 = vector.load %arg2[%c23, %c0_117, %c0_118] : memref<32x10x8xf32, #tpu.memory_space<vmem>>, vector<1x10x8xf32>
    %107 = vector.shape_cast %106 : vector<1x10x8xf32> to vector<10x8xf32>
    %c277 = arith.constant 277 : index
    %c0_119 = arith.constant 0 : index
    %108 = vector.load %arg10[%c277, %c0_119] : memref<384x8xf32, #tpu.memory_space<vmem>>, vector<10x8xf32>
    tpu.vector_store %arg10[%c277, %c0_119], %107 {strides = array<i32>} : memref<384x8xf32, #tpu.memory_space<vmem>>, vector<10x8xf32>,
    %c24 = arith.constant 24 : index
    %c0_120 = arith.constant 0 : index
    %c0_121 = arith.constant 0 : index
    %109 = vector.load %arg2[%c24, %c0_120, %c0_121] : memref<32x10x8xf32, #tpu.memory_space<vmem>>, vector<1x10x8xf32>
    %110 = vector.shape_cast %109 : vector<1x10x8xf32> to vector<10x8xf32>
    %c289 = arith.constant 289 : index
    %c0_122 = arith.constant 0 : index
    %111 = vector.load %arg10[%c289, %c0_122] : memref<384x8xf32, #tpu.memory_space<vmem>>, vector<10x8xf32>
    tpu.vector_store %arg10[%c289, %c0_122], %110 {strides = array<i32>} : memref<384x8xf32, #tpu.memory_space<vmem>>, vector<10x8xf32>,
    %c25_123 = arith.constant 25 : index
    %c0_124 = arith.constant 0 : index
    %c0_125 = arith.constant 0 : index
    %112 = vector.load %arg2[%c25_123, %c0_124, %c0_125] : memref<32x10x8xf32, #tpu.memory_space<vmem>>, vector<1x10x8xf32>
    %113 = vector.shape_cast %112 : vector<1x10x8xf32> to vector<10x8xf32>
    %c301 = arith.constant 301 : index
    %c0_126 = arith.constant 0 : index
    %114 = vector.load %arg10[%c301, %c0_126] : memref<384x8xf32, #tpu.memory_space<vmem>>, vector<10x8xf32>
    tpu.vector_store %arg10[%c301, %c0_126], %113 {strides = array<i32>} : memref<384x8xf32, #tpu.memory_space<vmem>>, vector<10x8xf32>,
    %c26 = arith.constant 26 : index
    %c0_127 = arith.constant 0 : index
    %c0_128 = arith.constant 0 : index
    %115 = vector.load %arg2[%c26, %c0_127, %c0_128] : memref<32x10x8xf32, #tpu.memory_space<vmem>>, vector<1x10x8xf32>
    %116 = vector.shape_cast %115 : vector<1x10x8xf32> to vector<10x8xf32>
    %c313 = arith.constant 313 : index
    %c0_129 = arith.constant 0 : index
    %117 = vector.load %arg10[%c313, %c0_129] : memref<384x8xf32, #tpu.memory_space<vmem>>, vector<10x8xf32>
    tpu.vector_store %arg10[%c313, %c0_129], %116 {strides = array<i32>} : memref<384x8xf32, #tpu.memory_space<vmem>>, vector<10x8xf32>,
    %c27 = arith.constant 27 : index
    %c0_130 = arith.constant 0 : index
    %c0_131 = arith.constant 0 : index
    %118 = vector.load %arg2[%c27, %c0_130, %c0_131] : memref<32x10x8xf32, #tpu.memory_space<vmem>>, vector<1x10x8xf32>
    %119 = vector.shape_cast %118 : vector<1x10x8xf32> to vector<10x8xf32>
    %c325 = arith.constant 325 : index
    %c0_132 = arith.constant 0 : index
    %120 = vector.load %arg10[%c325, %c0_132] : memref<384x8xf32, #tpu.memory_space<vmem>>, vector<10x8xf32>
    tpu.vector_store %arg10[%c325, %c0_132], %119 {strides = array<i32>} : memref<384x8xf32, #tpu.memory_space<vmem>>, vector<10x8xf32>,
    %c28 = arith.constant 28 : index
    %c0_133 = arith.constant 0 : index
    %c0_134 = arith.constant 0 : index
    %121 = vector.load %arg2[%c28, %c0_133, %c0_134] : memref<32x10x8xf32, #tpu.memory_space<vmem>>, vector<1x10x8xf32>
    %122 = vector.shape_cast %121 : vector<1x10x8xf32> to vector<10x8xf32>
    %c337 = arith.constant 337 : index
    %c0_135 = arith.constant 0 : index
    %123 = vector.load %arg10[%c337, %c0_135] : memref<384x8xf32, #tpu.memory_space<vmem>>, vector<10x8xf32>
    tpu.vector_store %arg10[%c337, %c0_135], %122 {strides = array<i32>} : memref<384x8xf32, #tpu.memory_space<vmem>>, vector<10x8xf32>,
    %c29 = arith.constant 29 : index
    %c0_136 = arith.constant 0 : index
    %c0_137 = arith.constant 0 : index
    %124 = vector.load %arg2[%c29, %c0_136, %c0_137] : memref<32x10x8xf32, #tpu.memory_space<vmem>>, vector<1x10x8xf32>
    %125 = vector.shape_cast %124 : vector<1x10x8xf32> to vector<10x8xf32>
    %c349 = arith.constant 349 : index
    %c0_138 = arith.constant 0 : index
    %126 = vector.load %arg10[%c349, %c0_138] : memref<384x8xf32, #tpu.memory_space<vmem>>, vector<10x8xf32>
    tpu.vector_store %arg10[%c349, %c0_138], %125 {strides = array<i32>} : memref<384x8xf32, #tpu.memory_space<vmem>>, vector<10x8xf32>,
    %c30 = arith.constant 30 : index
    %c0_139 = arith.constant 0 : index
    %c0_140 = arith.constant 0 : index
    %127 = vector.load %arg2[%c30, %c0_139, %c0_140] : memref<32x10x8xf32, #tpu.memory_space<vmem>>, vector<1x10x8xf32>
    %128 = vector.shape_cast %127 : vector<1x10x8xf32> to vector<10x8xf32>
    %c361 = arith.constant 361 : index
    %c0_141 = arith.constant 0 : index
    %129 = vector.load %arg10[%c361, %c0_141] : memref<384x8xf32, #tpu.memory_space<vmem>>, vector<10x8xf32>
    tpu.vector_store %arg10[%c361, %c0_141], %128 {strides = array<i32>} : memref<384x8xf32, #tpu.memory_space<vmem>>, vector<10x8xf32>,
    %c31 = arith.constant 31 : index
    %c0_142 = arith.constant 0 : index
    %c0_143 = arith.constant 0 : index
    %130 = vector.load %arg2[%c31, %c0_142, %c0_143] : memref<32x10x8xf32, #tpu.memory_space<vmem>>, vector<1x10x8xf32>
    %131 = vector.shape_cast %130 : vector<1x10x8xf32> to vector<10x8xf32>
    %c373 = arith.constant 373 : index
    %c0_144 = arith.constant 0 : index
    %132 = vector.load %arg10[%c373, %c0_144] : memref<384x8xf32, #tpu.memory_space<vmem>>, vector<10x8xf32>
    tpu.vector_store %arg10[%c373, %c0_144], %131 {strides = array<i32>} : memref<384x8xf32, #tpu.memory_space<vmem>>, vector<10x8xf32>,
    %c0_145 = arith.constant 0 : index
    %c0_146 = arith.constant 0 : index
    %133 = vector.load %arg10[%c0_145, %c0_146] : memref<384x8xf32, #tpu.memory_space<vmem>>, vector<384x8xf32>
    %c0_147 = arith.constant 0 : index
    %c0_148 = arith.constant 0 : index
    %134 = vector.load %arg3[%c0_147, %c0_148] : memref<8x48xf32, #tpu.memory_space<vmem>>, vector<8x48xf32>
    %cst_149 = arith.constant dense<0.000000e+00> : vector<384x48xf32>
    %135 = tpu.matmul %133, %134, %cst_149 {dimension_numbers = #tpu.dot_dimension_numbers<[1], [0], [0], [1], [0, 0, 1, 1], [], []>} : vector<384x8xf32>, vector<8x48xf32>, vector<384x48xf32> -> vector<384x48xf32>
    %c0_150 = arith.constant 0 : index
    %c0_151 = arith.constant 0 : index
    %136 = vector.load %arg11[%c0_150, %c0_151] : memref<384x48xf32, #tpu.memory_space<vmem>>, vector<384x48xf32>
    tpu.vector_store %arg11[%c0_150, %c0_151], %135 {strides = array<i32>} : memref<384x48xf32, #tpu.memory_space<vmem>>, vector<384x48xf32>,
    %c0_152 = arith.constant 0 : index
    %c0_153 = arith.constant 0 : index
    %137 = vector.load %arg11[%c0_152, %c0_153] : memref<384x48xf32, #tpu.memory_space<vmem>>, vector<10x16xf32>
    %c1_154 = arith.constant 1 : index
    %c16_155 = arith.constant 16 : index
    %138 = vector.load %arg11[%c1_154, %c16_155] : memref<384x48xf32, #tpu.memory_space<vmem>>, vector<10x16xf32>
    %139 = arith.addf %137, %138 : vector<10x16xf32>
    %c2_156 = arith.constant 2 : index
    %c32_157 = arith.constant 32 : index
    %140 = vector.load %arg11[%c2_156, %c32_157] : memref<384x48xf32, #tpu.memory_space<vmem>>, vector<10x16xf32>
    %141 = arith.addf %139, %140 : vector<10x16xf32>
    %cst_158 = arith.constant dense<0xFF800000> : vector<16xf32>
    %142 = vector.multi_reduction <maximumf>, %141, %cst_158 [0] : vector<10x16xf32> to vector<16xf32>
    %143 = vector.shape_cast %142 : vector<16xf32> to vector<1x16xf32>
    %c0_159 = arith.constant 0 : index
    %c0_160 = arith.constant 0 : index
    %144 = vector.load %arg12[%c0_159, %c0_160] : memref<32x16xf32, #tpu.memory_space<vmem>>, vector<1x16xf32>
    tpu.vector_store %arg12[%c0_159, %c0_160], %143 {strides = array<i32>} : memref<32x16xf32, #tpu.memory_space<vmem>>, vector<1x16xf32>,
    %c12_161 = arith.constant 12 : index
    %c0_162 = arith.constant 0 : index
    %145 = vector.load %arg11[%c12_161, %c0_162] : memref<384x48xf32, #tpu.memory_space<vmem>>, vector<10x16xf32>
    %c13_163 = arith.constant 13 : index
    %c16_164 = arith.constant 16 : index
    %146 = vector.load %arg11[%c13_163, %c16_164] : memref<384x48xf32, #tpu.memory_space<vmem>>, vector<10x16xf32>
    %147 = arith.addf %145, %146 : vector<10x16xf32>
    %c14_165 = arith.constant 14 : index
    %c32_166 = arith.constant 32 : index
    %148 = vector.load %arg11[%c14_165, %c32_166] : memref<384x48xf32, #tpu.memory_space<vmem>>, vector<10x16xf32>
    %149 = arith.addf %147, %148 : vector<10x16xf32>
    %cst_167 = arith.constant dense<0xFF800000> : vector<16xf32>
    %150 = vector.multi_reduction <maximumf>, %149, %cst_167 [0] : vector<10x16xf32> to vector<16xf32>
    %151 = vector.shape_cast %150 : vector<16xf32> to vector<1x16xf32>
    %c1_168 = arith.constant 1 : index
    %c0_169 = arith.constant 0 : index
    %152 = vector.load %arg12[%c1_168, %c0_169] : memref<32x16xf32, #tpu.memory_space<vmem>>, vector<1x16xf32>
    tpu.vector_store %arg12[%c1_168, %c0_169], %151 {strides = array<i32>} : memref<32x16xf32, #tpu.memory_space<vmem>>, vector<1x16xf32>,
    %c24_170 = arith.constant 24 : index
    %c0_171 = arith.constant 0 : index
    %153 = vector.load %arg11[%c24_170, %c0_171] : memref<384x48xf32, #tpu.memory_space<vmem>>, vector<10x16xf32>
    %c25_172 = arith.constant 25 : index
    %c16_173 = arith.constant 16 : index
    %154 = vector.load %arg11[%c25_172, %c16_173] : memref<384x48xf32, #tpu.memory_space<vmem>>, vector<10x16xf32>
    %155 = arith.addf %153, %154 : vector<10x16xf32>
    %c26_174 = arith.constant 26 : index
    %c32_175 = arith.constant 32 : index
    %156 = vector.load %arg11[%c26_174, %c32_175] : memref<384x48xf32, #tpu.memory_space<vmem>>, vector<10x16xf32>
    %157 = arith.addf %155, %156 : vector<10x16xf32>
    %cst_176 = arith.constant dense<0xFF800000> : vector<16xf32>
    %158 = vector.multi_reduction <maximumf>, %157, %cst_176 [0] : vector<10x16xf32> to vector<16xf32>
    %159 = vector.shape_cast %158 : vector<16xf32> to vector<1x16xf32>
    %c2_177 = arith.constant 2 : index
    %c0_178 = arith.constant 0 : index
    %160 = vector.load %arg12[%c2_177, %c0_178] : memref<32x16xf32, #tpu.memory_space<vmem>>, vector<1x16xf32>
    tpu.vector_store %arg12[%c2_177, %c0_178], %159 {strides = array<i32>} : memref<32x16xf32, #tpu.memory_space<vmem>>, vector<1x16xf32>,
    %c36 = arith.constant 36 : index
    %c0_179 = arith.constant 0 : index
    %161 = vector.load %arg11[%c36, %c0_179] : memref<384x48xf32, #tpu.memory_space<vmem>>, vector<10x16xf32>
    %c37_180 = arith.constant 37 : index
    %c16_181 = arith.constant 16 : index
    %162 = vector.load %arg11[%c37_180, %c16_181] : memref<384x48xf32, #tpu.memory_space<vmem>>, vector<10x16xf32>
    %163 = arith.addf %161, %162 : vector<10x16xf32>
    %c38 = arith.constant 38 : index
    %c32_182 = arith.constant 32 : index
    %164 = vector.load %arg11[%c38, %c32_182] : memref<384x48xf32, #tpu.memory_space<vmem>>, vector<10x16xf32>
    %165 = arith.addf %163, %164 : vector<10x16xf32>
    %cst_183 = arith.constant dense<0xFF800000> : vector<16xf32>
    %166 = vector.multi_reduction <maximumf>, %165, %cst_183 [0] : vector<10x16xf32> to vector<16xf32>
    %167 = vector.shape_cast %166 : vector<16xf32> to vector<1x16xf32>
    %c3_184 = arith.constant 3 : index
    %c0_185 = arith.constant 0 : index
    %168 = vector.load %arg12[%c3_184, %c0_185] : memref<32x16xf32, #tpu.memory_space<vmem>>, vector<1x16xf32>
    tpu.vector_store %arg12[%c3_184, %c0_185], %167 {strides = array<i32>} : memref<32x16xf32, #tpu.memory_space<vmem>>, vector<1x16xf32>,
    %c48 = arith.constant 48 : index
    %c0_186 = arith.constant 0 : index
    %169 = vector.load %arg11[%c48, %c0_186] : memref<384x48xf32, #tpu.memory_space<vmem>>, vector<10x16xf32>
    %c49_187 = arith.constant 49 : index
    %c16_188 = arith.constant 16 : index
    %170 = vector.load %arg11[%c49_187, %c16_188] : memref<384x48xf32, #tpu.memory_space<vmem>>, vector<10x16xf32>
    %171 = arith.addf %169, %170 : vector<10x16xf32>
    %c50 = arith.constant 50 : index
    %c32_189 = arith.constant 32 : index
    %172 = vector.load %arg11[%c50, %c32_189] : memref<384x48xf32, #tpu.memory_space<vmem>>, vector<10x16xf32>
    %173 = arith.addf %171, %172 : vector<10x16xf32>
    %cst_190 = arith.constant dense<0xFF800000> : vector<16xf32>
    %174 = vector.multi_reduction <maximumf>, %173, %cst_190 [0] : vector<10x16xf32> to vector<16xf32>
    %175 = vector.shape_cast %174 : vector<16xf32> to vector<1x16xf32>
    %c4_191 = arith.constant 4 : index
    %c0_192 = arith.constant 0 : index
    %176 = vector.load %arg12[%c4_191, %c0_192] : memref<32x16xf32, #tpu.memory_space<vmem>>, vector<1x16xf32>
    tpu.vector_store %arg12[%c4_191, %c0_192], %175 {strides = array<i32>} : memref<32x16xf32, #tpu.memory_space<vmem>>, vector<1x16xf32>,
    %c60 = arith.constant 60 : index
    %c0_193 = arith.constant 0 : index
    %177 = vector.load %arg11[%c60, %c0_193] : memref<384x48xf32, #tpu.memory_space<vmem>>, vector<10x16xf32>
    %c61_194 = arith.constant 61 : index
    %c16_195 = arith.constant 16 : index
    %178 = vector.load %arg11[%c61_194, %c16_195] : memref<384x48xf32, #tpu.memory_space<vmem>>, vector<10x16xf32>
    %179 = arith.addf %177, %178 : vector<10x16xf32>
    %c62 = arith.constant 62 : index
    %c32_196 = arith.constant 32 : index
    %180 = vector.load %arg11[%c62, %c32_196] : memref<384x48xf32, #tpu.memory_space<vmem>>, vector<10x16xf32>
    %181 = arith.addf %179, %180 : vector<10x16xf32>
    %cst_197 = arith.constant dense<0xFF800000> : vector<16xf32>
    %182 = vector.multi_reduction <maximumf>, %181, %cst_197 [0] : vector<10x16xf32> to vector<16xf32>
    %183 = vector.shape_cast %182 : vector<16xf32> to vector<1x16xf32>
    %c5_198 = arith.constant 5 : index
    %c0_199 = arith.constant 0 : index
    %184 = vector.load %arg12[%c5_198, %c0_199] : memref<32x16xf32, #tpu.memory_space<vmem>>, vector<1x16xf32>
    tpu.vector_store %arg12[%c5_198, %c0_199], %183 {strides = array<i32>} : memref<32x16xf32, #tpu.memory_space<vmem>>, vector<1x16xf32>,
    %c72 = arith.constant 72 : index
    %c0_200 = arith.constant 0 : index
    %185 = vector.load %arg11[%c72, %c0_200] : memref<384x48xf32, #tpu.memory_space<vmem>>, vector<10x16xf32>
    %c73_201 = arith.constant 73 : index
    %c16_202 = arith.constant 16 : index
    %186 = vector.load %arg11[%c73_201, %c16_202] : memref<384x48xf32, #tpu.memory_space<vmem>>, vector<10x16xf32>
    %187 = arith.addf %185, %186 : vector<10x16xf32>
    %c74 = arith.constant 74 : index
    %c32_203 = arith.constant 32 : index
    %188 = vector.load %arg11[%c74, %c32_203] : memref<384x48xf32, #tpu.memory_space<vmem>>, vector<10x16xf32>
    %189 = arith.addf %187, %188 : vector<10x16xf32>
    %cst_204 = arith.constant dense<0xFF800000> : vector<16xf32>
    %190 = vector.multi_reduction <maximumf>, %189, %cst_204 [0] : vector<10x16xf32> to vector<16xf32>
    %191 = vector.shape_cast %190 : vector<16xf32> to vector<1x16xf32>
    %c6_205 = arith.constant 6 : index
    %c0_206 = arith.constant 0 : index
    %192 = vector.load %arg12[%c6_205, %c0_206] : memref<32x16xf32, #tpu.memory_space<vmem>>, vector<1x16xf32>
    tpu.vector_store %arg12[%c6_205, %c0_206], %191 {strides = array<i32>} : memref<32x16xf32, #tpu.memory_space<vmem>>, vector<1x16xf32>,
    %c84 = arith.constant 84 : index
    %c0_207 = arith.constant 0 : index
    %193 = vector.load %arg11[%c84, %c0_207] : memref<384x48xf32, #tpu.memory_space<vmem>>, vector<10x16xf32>
    %c85_208 = arith.constant 85 : index
    %c16_209 = arith.constant 16 : index
    %194 = vector.load %arg11[%c85_208, %c16_209] : memref<384x48xf32, #tpu.memory_space<vmem>>, vector<10x16xf32>
    %195 = arith.addf %193, %194 : vector<10x16xf32>
    %c86 = arith.constant 86 : index
    %c32_210 = arith.constant 32 : index
    %196 = vector.load %arg11[%c86, %c32_210] : memref<384x48xf32, #tpu.memory_space<vmem>>, vector<10x16xf32>
    %197 = arith.addf %195, %196 : vector<10x16xf32>
    %cst_211 = arith.constant dense<0xFF800000> : vector<16xf32>
    %198 = vector.multi_reduction <maximumf>, %197, %cst_211 [0] : vector<10x16xf32> to vector<16xf32>
    %199 = vector.shape_cast %198 : vector<16xf32> to vector<1x16xf32>
    %c7_212 = arith.constant 7 : index
    %c0_213 = arith.constant 0 : index
    %200 = vector.load %arg12[%c7_212, %c0_213] : memref<32x16xf32, #tpu.memory_space<vmem>>, vector<1x16xf32>
    tpu.vector_store %arg12[%c7_212, %c0_213], %199 {strides = array<i32>} : memref<32x16xf32, #tpu.memory_space<vmem>>, vector<1x16xf32>,
    %c96 = arith.constant 96 : index
    %c0_214 = arith.constant 0 : index
    %201 = vector.load %arg11[%c96, %c0_214] : memref<384x48xf32, #tpu.memory_space<vmem>>, vector<10x16xf32>
    %c97_215 = arith.constant 97 : index
    %c16_216 = arith.constant 16 : index
    %202 = vector.load %arg11[%c97_215, %c16_216] : memref<384x48xf32, #tpu.memory_space<vmem>>, vector<10x16xf32>
    %203 = arith.addf %201, %202 : vector<10x16xf32>
    %c98 = arith.constant 98 : index
    %c32_217 = arith.constant 32 : index
    %204 = vector.load %arg11[%c98, %c32_217] : memref<384x48xf32, #tpu.memory_space<vmem>>, vector<10x16xf32>
    %205 = arith.addf %203, %204 : vector<10x16xf32>
    %cst_218 = arith.constant dense<0xFF800000> : vector<16xf32>
    %206 = vector.multi_reduction <maximumf>, %205, %cst_218 [0] : vector<10x16xf32> to vector<16xf32>
    %207 = vector.shape_cast %206 : vector<16xf32> to vector<1x16xf32>
    %c8_219 = arith.constant 8 : index
    %c0_220 = arith.constant 0 : index
    %208 = vector.load %arg12[%c8_219, %c0_220] : memref<32x16xf32, #tpu.memory_space<vmem>>, vector<1x16xf32>
    tpu.vector_store %arg12[%c8_219, %c0_220], %207 {strides = array<i32>} : memref<32x16xf32, #tpu.memory_space<vmem>>, vector<1x16xf32>,
    %c108 = arith.constant 108 : index
    %c0_221 = arith.constant 0 : index
    %209 = vector.load %arg11[%c108, %c0_221] : memref<384x48xf32, #tpu.memory_space<vmem>>, vector<10x16xf32>
    %c109_222 = arith.constant 109 : index
    %c16_223 = arith.constant 16 : index
    %210 = vector.load %arg11[%c109_222, %c16_223] : memref<384x48xf32, #tpu.memory_space<vmem>>, vector<10x16xf32>
    %211 = arith.addf %209, %210 : vector<10x16xf32>
    %c110 = arith.constant 110 : index
    %c32_224 = arith.constant 32 : index
    %212 = vector.load %arg11[%c110, %c32_224] : memref<384x48xf32, #tpu.memory_space<vmem>>, vector<10x16xf32>
    %213 = arith.addf %211, %212 : vector<10x16xf32>
    %cst_225 = arith.constant dense<0xFF800000> : vector<16xf32>
    %214 = vector.multi_reduction <maximumf>, %213, %cst_225 [0] : vector<10x16xf32> to vector<16xf32>
    %215 = vector.shape_cast %214 : vector<16xf32> to vector<1x16xf32>
    %c9_226 = arith.constant 9 : index
    %c0_227 = arith.constant 0 : index
    %216 = vector.load %arg12[%c9_226, %c0_227] : memref<32x16xf32, #tpu.memory_space<vmem>>, vector<1x16xf32>
    tpu.vector_store %arg12[%c9_226, %c0_227], %215 {strides = array<i32>} : memref<32x16xf32, #tpu.memory_space<vmem>>, vector<1x16xf32>,
    %c120 = arith.constant 120 : index
    %c0_228 = arith.constant 0 : index
    %217 = vector.load %arg11[%c120, %c0_228] : memref<384x48xf32, #tpu.memory_space<vmem>>, vector<10x16xf32>
    %c121_229 = arith.constant 121 : index
    %c16_230 = arith.constant 16 : index
    %218 = vector.load %arg11[%c121_229, %c16_230] : memref<384x48xf32, #tpu.memory_space<vmem>>, vector<10x16xf32>
    %219 = arith.addf %217, %218 : vector<10x16xf32>
    %c122 = arith.constant 122 : index
    %c32_231 = arith.constant 32 : index
    %220 = vector.load %arg11[%c122, %c32_231] : memref<384x48xf32, #tpu.memory_space<vmem>>, vector<10x16xf32>
    %221 = arith.addf %219, %220 : vector<10x16xf32>
    %cst_232 = arith.constant dense<0xFF800000> : vector<16xf32>
    %222 = vector.multi_reduction <maximumf>, %221, %cst_232 [0] : vector<10x16xf32> to vector<16xf32>
    %223 = vector.shape_cast %222 : vector<16xf32> to vector<1x16xf32>
    %c10_233 = arith.constant 10 : index
    %c0_234 = arith.constant 0 : index
    %224 = vector.load %arg12[%c10_233, %c0_234] : memref<32x16xf32, #tpu.memory_space<vmem>>, vector<1x16xf32>
    tpu.vector_store %arg12[%c10_233, %c0_234], %223 {strides = array<i32>} : memref<32x16xf32, #tpu.memory_space<vmem>>, vector<1x16xf32>,
    %c132 = arith.constant 132 : index
    %c0_235 = arith.constant 0 : index
    %225 = vector.load %arg11[%c132, %c0_235] : memref<384x48xf32, #tpu.memory_space<vmem>>, vector<10x16xf32>
    %c133_236 = arith.constant 133 : index
    %c16_237 = arith.constant 16 : index
    %226 = vector.load %arg11[%c133_236, %c16_237] : memref<384x48xf32, #tpu.memory_space<vmem>>, vector<10x16xf32>
    %227 = arith.addf %225, %226 : vector<10x16xf32>
    %c134 = arith.constant 134 : index
    %c32_238 = arith.constant 32 : index
    %228 = vector.load %arg11[%c134, %c32_238] : memref<384x48xf32, #tpu.memory_space<vmem>>, vector<10x16xf32>
    %229 = arith.addf %227, %228 : vector<10x16xf32>
    %cst_239 = arith.constant dense<0xFF800000> : vector<16xf32>
    %230 = vector.multi_reduction <maximumf>, %229, %cst_239 [0] : vector<10x16xf32> to vector<16xf32>
    %231 = vector.shape_cast %230 : vector<16xf32> to vector<1x16xf32>
    %c11_240 = arith.constant 11 : index
    %c0_241 = arith.constant 0 : index
    %232 = vector.load %arg12[%c11_240, %c0_241] : memref<32x16xf32, #tpu.memory_space<vmem>>, vector<1x16xf32>
    tpu.vector_store %arg12[%c11_240, %c0_241], %231 {strides = array<i32>} : memref<32x16xf32, #tpu.memory_space<vmem>>, vector<1x16xf32>,
    %c144 = arith.constant 144 : index
    %c0_242 = arith.constant 0 : index
    %233 = vector.load %arg11[%c144, %c0_242] : memref<384x48xf32, #tpu.memory_space<vmem>>, vector<10x16xf32>
    %c145_243 = arith.constant 145 : index
    %c16_244 = arith.constant 16 : index
    %234 = vector.load %arg11[%c145_243, %c16_244] : memref<384x48xf32, #tpu.memory_space<vmem>>, vector<10x16xf32>
    %235 = arith.addf %233, %234 : vector<10x16xf32>
    %c146 = arith.constant 146 : index
    %c32_245 = arith.constant 32 : index
    %236 = vector.load %arg11[%c146, %c32_245] : memref<384x48xf32, #tpu.memory_space<vmem>>, vector<10x16xf32>
    %237 = arith.addf %235, %236 : vector<10x16xf32>
    %cst_246 = arith.constant dense<0xFF800000> : vector<16xf32>
    %238 = vector.multi_reduction <maximumf>, %237, %cst_246 [0] : vector<10x16xf32> to vector<16xf32>
    %239 = vector.shape_cast %238 : vector<16xf32> to vector<1x16xf32>
    %c12_247 = arith.constant 12 : index
    %c0_248 = arith.constant 0 : index
    %240 = vector.load %arg12[%c12_247, %c0_248] : memref<32x16xf32, #tpu.memory_space<vmem>>, vector<1x16xf32>
    tpu.vector_store %arg12[%c12_247, %c0_248], %239 {strides = array<i32>} : memref<32x16xf32, #tpu.memory_space<vmem>>, vector<1x16xf32>,
    %c156 = arith.constant 156 : index
    %c0_249 = arith.constant 0 : index
    %241 = vector.load %arg11[%c156, %c0_249] : memref<384x48xf32, #tpu.memory_space<vmem>>, vector<10x16xf32>
    %c157_250 = arith.constant 157 : index
    %c16_251 = arith.constant 16 : index
    %242 = vector.load %arg11[%c157_250, %c16_251] : memref<384x48xf32, #tpu.memory_space<vmem>>, vector<10x16xf32>
    %243 = arith.addf %241, %242 : vector<10x16xf32>
    %c158 = arith.constant 158 : index
    %c32_252 = arith.constant 32 : index
    %244 = vector.load %arg11[%c158, %c32_252] : memref<384x48xf32, #tpu.memory_space<vmem>>, vector<10x16xf32>
    %245 = arith.addf %243, %244 : vector<10x16xf32>
    %cst_253 = arith.constant dense<0xFF800000> : vector<16xf32>
    %246 = vector.multi_reduction <maximumf>, %245, %cst_253 [0] : vector<10x16xf32> to vector<16xf32>
    %247 = vector.shape_cast %246 : vector<16xf32> to vector<1x16xf32>
    %c13_254 = arith.constant 13 : index
    %c0_255 = arith.constant 0 : index
    %248 = vector.load %arg12[%c13_254, %c0_255] : memref<32x16xf32, #tpu.memory_space<vmem>>, vector<1x16xf32>
    tpu.vector_store %arg12[%c13_254, %c0_255], %247 {strides = array<i32>} : memref<32x16xf32, #tpu.memory_space<vmem>>, vector<1x16xf32>,
    %c168 = arith.constant 168 : index
    %c0_256 = arith.constant 0 : index
    %249 = vector.load %arg11[%c168, %c0_256] : memref<384x48xf32, #tpu.memory_space<vmem>>, vector<10x16xf32>
    %c169_257 = arith.constant 169 : index
    %c16_258 = arith.constant 16 : index
    %250 = vector.load %arg11[%c169_257, %c16_258] : memref<384x48xf32, #tpu.memory_space<vmem>>, vector<10x16xf32>
    %251 = arith.addf %249, %250 : vector<10x16xf32>
    %c170 = arith.constant 170 : index
    %c32_259 = arith.constant 32 : index
    %252 = vector.load %arg11[%c170, %c32_259] : memref<384x48xf32, #tpu.memory_space<vmem>>, vector<10x16xf32>
    %253 = arith.addf %251, %252 : vector<10x16xf32>
    %cst_260 = arith.constant dense<0xFF800000> : vector<16xf32>
    %254 = vector.multi_reduction <maximumf>, %253, %cst_260 [0] : vector<10x16xf32> to vector<16xf32>
    %255 = vector.shape_cast %254 : vector<16xf32> to vector<1x16xf32>
    %c14_261 = arith.constant 14 : index
    %c0_262 = arith.constant 0 : index
    %256 = vector.load %arg12[%c14_261, %c0_262] : memref<32x16xf32, #tpu.memory_space<vmem>>, vector<1x16xf32>
    tpu.vector_store %arg12[%c14_261, %c0_262], %255 {strides = array<i32>} : memref<32x16xf32, #tpu.memory_space<vmem>>, vector<1x16xf32>,
    %c180 = arith.constant 180 : index
    %c0_263 = arith.constant 0 : index
    %257 = vector.load %arg11[%c180, %c0_263] : memref<384x48xf32, #tpu.memory_space<vmem>>, vector<10x16xf32>
    %c181_264 = arith.constant 181 : index
    %c16_265 = arith.constant 16 : index
    %258 = vector.load %arg11[%c181_264, %c16_265] : memref<384x48xf32, #tpu.memory_space<vmem>>, vector<10x16xf32>
    %259 = arith.addf %257, %258 : vector<10x16xf32>
    %c182 = arith.constant 182 : index
    %c32_266 = arith.constant 32 : index
    %260 = vector.load %arg11[%c182, %c32_266] : memref<384x48xf32, #tpu.memory_space<vmem>>, vector<10x16xf32>
    %261 = arith.addf %259, %260 : vector<10x16xf32>
    %cst_267 = arith.constant dense<0xFF800000> : vector<16xf32>
    %262 = vector.multi_reduction <maximumf>, %261, %cst_267 [0] : vector<10x16xf32> to vector<16xf32>
    %263 = vector.shape_cast %262 : vector<16xf32> to vector<1x16xf32>
    %c15_268 = arith.constant 15 : index
    %c0_269 = arith.constant 0 : index
    %264 = vector.load %arg12[%c15_268, %c0_269] : memref<32x16xf32, #tpu.memory_space<vmem>>, vector<1x16xf32>
    tpu.vector_store %arg12[%c15_268, %c0_269], %263 {strides = array<i32>} : memref<32x16xf32, #tpu.memory_space<vmem>>, vector<1x16xf32>,
    %c192 = arith.constant 192 : index
    %c0_270 = arith.constant 0 : index
    %265 = vector.load %arg11[%c192, %c0_270] : memref<384x48xf32, #tpu.memory_space<vmem>>, vector<10x16xf32>
    %c193_271 = arith.constant 193 : index
    %c16_272 = arith.constant 16 : index
    %266 = vector.load %arg11[%c193_271, %c16_272] : memref<384x48xf32, #tpu.memory_space<vmem>>, vector<10x16xf32>
    %267 = arith.addf %265, %266 : vector<10x16xf32>
    %c194 = arith.constant 194 : index
    %c32_273 = arith.constant 32 : index
    %268 = vector.load %arg11[%c194, %c32_273] : memref<384x48xf32, #tpu.memory_space<vmem>>, vector<10x16xf32>
    %269 = arith.addf %267, %268 : vector<10x16xf32>
    %cst_274 = arith.constant dense<0xFF800000> : vector<16xf32>
    %270 = vector.multi_reduction <maximumf>, %269, %cst_274 [0] : vector<10x16xf32> to vector<16xf32>
    %271 = vector.shape_cast %270 : vector<16xf32> to vector<1x16xf32>
    %c16_275 = arith.constant 16 : index
    %c0_276 = arith.constant 0 : index
    %272 = vector.load %arg12[%c16_275, %c0_276] : memref<32x16xf32, #tpu.memory_space<vmem>>, vector<1x16xf32>
    tpu.vector_store %arg12[%c16_275, %c0_276], %271 {strides = array<i32>} : memref<32x16xf32, #tpu.memory_space<vmem>>, vector<1x16xf32>,
    %c204 = arith.constant 204 : index
    %c0_277 = arith.constant 0 : index
    %273 = vector.load %arg11[%c204, %c0_277] : memref<384x48xf32, #tpu.memory_space<vmem>>, vector<10x16xf32>
    %c205_278 = arith.constant 205 : index
    %c16_279 = arith.constant 16 : index
    %274 = vector.load %arg11[%c205_278, %c16_279] : memref<384x48xf32, #tpu.memory_space<vmem>>, vector<10x16xf32>
    %275 = arith.addf %273, %274 : vector<10x16xf32>
    %c206 = arith.constant 206 : index
    %c32_280 = arith.constant 32 : index
    %276 = vector.load %arg11[%c206, %c32_280] : memref<384x48xf32, #tpu.memory_space<vmem>>, vector<10x16xf32>
    %277 = arith.addf %275, %276 : vector<10x16xf32>
    %cst_281 = arith.constant dense<0xFF800000> : vector<16xf32>
    %278 = vector.multi_reduction <maximumf>, %277, %cst_281 [0] : vector<10x16xf32> to vector<16xf32>
    %279 = vector.shape_cast %278 : vector<16xf32> to vector<1x16xf32>
    %c17_282 = arith.constant 17 : index
    %c0_283 = arith.constant 0 : index
    %280 = vector.load %arg12[%c17_282, %c0_283] : memref<32x16xf32, #tpu.memory_space<vmem>>, vector<1x16xf32>
    tpu.vector_store %arg12[%c17_282, %c0_283], %279 {strides = array<i32>} : memref<32x16xf32, #tpu.memory_space<vmem>>, vector<1x16xf32>,
    %c216 = arith.constant 216 : index
    %c0_284 = arith.constant 0 : index
    %281 = vector.load %arg11[%c216, %c0_284] : memref<384x48xf32, #tpu.memory_space<vmem>>, vector<10x16xf32>
    %c217_285 = arith.constant 217 : index
    %c16_286 = arith.constant 16 : index
    %282 = vector.load %arg11[%c217_285, %c16_286] : memref<384x48xf32, #tpu.memory_space<vmem>>, vector<10x16xf32>
    %283 = arith.addf %281, %282 : vector<10x16xf32>
    %c218 = arith.constant 218 : index
    %c32_287 = arith.constant 32 : index
    %284 = vector.load %arg11[%c218, %c32_287] : memref<384x48xf32, #tpu.memory_space<vmem>>, vector<10x16xf32>
    %285 = arith.addf %283, %284 : vector<10x16xf32>
    %cst_288 = arith.constant dense<0xFF800000> : vector<16xf32>
    %286 = vector.multi_reduction <maximumf>, %285, %cst_288 [0] : vector<10x16xf32> to vector<16xf32>
    %287 = vector.shape_cast %286 : vector<16xf32> to vector<1x16xf32>
    %c18_289 = arith.constant 18 : index
    %c0_290 = arith.constant 0 : index
    %288 = vector.load %arg12[%c18_289, %c0_290] : memref<32x16xf32, #tpu.memory_space<vmem>>, vector<1x16xf32>
    tpu.vector_store %arg12[%c18_289, %c0_290], %287 {strides = array<i32>} : memref<32x16xf32, #tpu.memory_space<vmem>>, vector<1x16xf32>,
    %c228 = arith.constant 228 : index
    %c0_291 = arith.constant 0 : index
    %289 = vector.load %arg11[%c228, %c0_291] : memref<384x48xf32, #tpu.memory_space<vmem>>, vector<10x16xf32>
    %c229_292 = arith.constant 229 : index
    %c16_293 = arith.constant 16 : index
    %290 = vector.load %arg11[%c229_292, %c16_293] : memref<384x48xf32, #tpu.memory_space<vmem>>, vector<10x16xf32>
    %291 = arith.addf %289, %290 : vector<10x16xf32>
    %c230 = arith.constant 230 : index
    %c32_294 = arith.constant 32 : index
    %292 = vector.load %arg11[%c230, %c32_294] : memref<384x48xf32, #tpu.memory_space<vmem>>, vector<10x16xf32>
    %293 = arith.addf %291, %292 : vector<10x16xf32>
    %cst_295 = arith.constant dense<0xFF800000> : vector<16xf32>
    %294 = vector.multi_reduction <maximumf>, %293, %cst_295 [0] : vector<10x16xf32> to vector<16xf32>
    %295 = vector.shape_cast %294 : vector<16xf32> to vector<1x16xf32>
    %c19_296 = arith.constant 19 : index
    %c0_297 = arith.constant 0 : index
    %296 = vector.load %arg12[%c19_296, %c0_297] : memref<32x16xf32, #tpu.memory_space<vmem>>, vector<1x16xf32>
    tpu.vector_store %arg12[%c19_296, %c0_297], %295 {strides = array<i32>} : memref<32x16xf32, #tpu.memory_space<vmem>>, vector<1x16xf32>,
    %c240 = arith.constant 240 : index
    %c0_298 = arith.constant 0 : index
    %297 = vector.load %arg11[%c240, %c0_298] : memref<384x48xf32, #tpu.memory_space<vmem>>, vector<10x16xf32>
    %c241_299 = arith.constant 241 : index
    %c16_300 = arith.constant 16 : index
    %298 = vector.load %arg11[%c241_299, %c16_300] : memref<384x48xf32, #tpu.memory_space<vmem>>, vector<10x16xf32>
    %299 = arith.addf %297, %298 : vector<10x16xf32>
    %c242 = arith.constant 242 : index
    %c32_301 = arith.constant 32 : index
    %300 = vector.load %arg11[%c242, %c32_301] : memref<384x48xf32, #tpu.memory_space<vmem>>, vector<10x16xf32>
    %301 = arith.addf %299, %300 : vector<10x16xf32>
    %cst_302 = arith.constant dense<0xFF800000> : vector<16xf32>
    %302 = vector.multi_reduction <maximumf>, %301, %cst_302 [0] : vector<10x16xf32> to vector<16xf32>
    %303 = vector.shape_cast %302 : vector<16xf32> to vector<1x16xf32>
    %c20_303 = arith.constant 20 : index
    %c0_304 = arith.constant 0 : index
    %304 = vector.load %arg12[%c20_303, %c0_304] : memref<32x16xf32, #tpu.memory_space<vmem>>, vector<1x16xf32>
    tpu.vector_store %arg12[%c20_303, %c0_304], %303 {strides = array<i32>} : memref<32x16xf32, #tpu.memory_space<vmem>>, vector<1x16xf32>,
    %c252 = arith.constant 252 : index
    %c0_305 = arith.constant 0 : index
    %305 = vector.load %arg11[%c252, %c0_305] : memref<384x48xf32, #tpu.memory_space<vmem>>, vector<10x16xf32>
    %c253_306 = arith.constant 253 : index
    %c16_307 = arith.constant 16 : index
    %306 = vector.load %arg11[%c253_306, %c16_307] : memref<384x48xf32, #tpu.memory_space<vmem>>, vector<10x16xf32>
    %307 = arith.addf %305, %306 : vector<10x16xf32>
    %c254 = arith.constant 254 : index
    %c32_308 = arith.constant 32 : index
    %308 = vector.load %arg11[%c254, %c32_308] : memref<384x48xf32, #tpu.memory_space<vmem>>, vector<10x16xf32>
    %309 = arith.addf %307, %308 : vector<10x16xf32>
    %cst_309 = arith.constant dense<0xFF800000> : vector<16xf32>
    %310 = vector.multi_reduction <maximumf>, %309, %cst_309 [0] : vector<10x16xf32> to vector<16xf32>
    %311 = vector.shape_cast %310 : vector<16xf32> to vector<1x16xf32>
    %c21_310 = arith.constant 21 : index
    %c0_311 = arith.constant 0 : index
    %312 = vector.load %arg12[%c21_310, %c0_311] : memref<32x16xf32, #tpu.memory_space<vmem>>, vector<1x16xf32>
    tpu.vector_store %arg12[%c21_310, %c0_311], %311 {strides = array<i32>} : memref<32x16xf32, #tpu.memory_space<vmem>>, vector<1x16xf32>,
    %c264 = arith.constant 264 : index
    %c0_312 = arith.constant 0 : index
    %313 = vector.load %arg11[%c264, %c0_312] : memref<384x48xf32, #tpu.memory_space<vmem>>, vector<10x16xf32>
    %c265_313 = arith.constant 265 : index
    %c16_314 = arith.constant 16 : index
    %314 = vector.load %arg11[%c265_313, %c16_314] : memref<384x48xf32, #tpu.memory_space<vmem>>, vector<10x16xf32>
    %315 = arith.addf %313, %314 : vector<10x16xf32>
    %c266 = arith.constant 266 : index
    %c32_315 = arith.constant 32 : index
    %316 = vector.load %arg11[%c266, %c32_315] : memref<384x48xf32, #tpu.memory_space<vmem>>, vector<10x16xf32>
    %317 = arith.addf %315, %316 : vector<10x16xf32>
    %cst_316 = arith.constant dense<0xFF800000> : vector<16xf32>
    %318 = vector.multi_reduction <maximumf>, %317, %cst_316 [0] : vector<10x16xf32> to vector<16xf32>
    %319 = vector.shape_cast %318 : vector<16xf32> to vector<1x16xf32>
    %c22_317 = arith.constant 22 : index
    %c0_318 = arith.constant 0 : index
    %320 = vector.load %arg12[%c22_317, %c0_318] : memref<32x16xf32, #tpu.memory_space<vmem>>, vector<1x16xf32>
    tpu.vector_store %arg12[%c22_317, %c0_318], %319 {strides = array<i32>} : memref<32x16xf32, #tpu.memory_space<vmem>>, vector<1x16xf32>,
    %c276 = arith.constant 276 : index
    %c0_319 = arith.constant 0 : index
    %321 = vector.load %arg11[%c276, %c0_319] : memref<384x48xf32, #tpu.memory_space<vmem>>, vector<10x16xf32>
    %c277_320 = arith.constant 277 : index
    %c16_321 = arith.constant 16 : index
    %322 = vector.load %arg11[%c277_320, %c16_321] : memref<384x48xf32, #tpu.memory_space<vmem>>, vector<10x16xf32>
    %323 = arith.addf %321, %322 : vector<10x16xf32>
    %c278 = arith.constant 278 : index
    %c32_322 = arith.constant 32 : index
    %324 = vector.load %arg11[%c278, %c32_322] : memref<384x48xf32, #tpu.memory_space<vmem>>, vector<10x16xf32>
    %325 = arith.addf %323, %324 : vector<10x16xf32>
    %cst_323 = arith.constant dense<0xFF800000> : vector<16xf32>
    %326 = vector.multi_reduction <maximumf>, %325, %cst_323 [0] : vector<10x16xf32> to vector<16xf32>
    %327 = vector.shape_cast %326 : vector<16xf32> to vector<1x16xf32>
    %c23_324 = arith.constant 23 : index
    %c0_325 = arith.constant 0 : index
    %328 = vector.load %arg12[%c23_324, %c0_325] : memref<32x16xf32, #tpu.memory_space<vmem>>, vector<1x16xf32>
    tpu.vector_store %arg12[%c23_324, %c0_325], %327 {strides = array<i32>} : memref<32x16xf32, #tpu.memory_space<vmem>>, vector<1x16xf32>,
    %c288 = arith.constant 288 : index
    %c0_326 = arith.constant 0 : index
    %329 = vector.load %arg11[%c288, %c0_326] : memref<384x48xf32, #tpu.memory_space<vmem>>, vector<10x16xf32>
    %c289_327 = arith.constant 289 : index
    %c16_328 = arith.constant 16 : index
    %330 = vector.load %arg11[%c289_327, %c16_328] : memref<384x48xf32, #tpu.memory_space<vmem>>, vector<10x16xf32>
    %331 = arith.addf %329, %330 : vector<10x16xf32>
    %c290 = arith.constant 290 : index
    %c32_329 = arith.constant 32 : index
    %332 = vector.load %arg11[%c290, %c32_329] : memref<384x48xf32, #tpu.memory_space<vmem>>, vector<10x16xf32>
    %333 = arith.addf %331, %332 : vector<10x16xf32>
    %cst_330 = arith.constant dense<0xFF800000> : vector<16xf32>
    %334 = vector.multi_reduction <maximumf>, %333, %cst_330 [0] : vector<10x16xf32> to vector<16xf32>
    %335 = vector.shape_cast %334 : vector<16xf32> to vector<1x16xf32>
    %c24_331 = arith.constant 24 : index
    %c0_332 = arith.constant 0 : index
    %336 = vector.load %arg12[%c24_331, %c0_332] : memref<32x16xf32, #tpu.memory_space<vmem>>, vector<1x16xf32>
    tpu.vector_store %arg12[%c24_331, %c0_332], %335 {strides = array<i32>} : memref<32x16xf32, #tpu.memory_space<vmem>>, vector<1x16xf32>,
    %c300 = arith.constant 300 : index
    %c0_333 = arith.constant 0 : index
    %337 = vector.load %arg11[%c300, %c0_333] : memref<384x48xf32, #tpu.memory_space<vmem>>, vector<10x16xf32>
    %c301_334 = arith.constant 301 : index
    %c16_335 = arith.constant 16 : index
    %338 = vector.load %arg11[%c301_334, %c16_335] : memref<384x48xf32, #tpu.memory_space<vmem>>, vector<10x16xf32>
    %339 = arith.addf %337, %338 : vector<10x16xf32>
    %c302 = arith.constant 302 : index
    %c32_336 = arith.constant 32 : index
    %340 = vector.load %arg11[%c302, %c32_336] : memref<384x48xf32, #tpu.memory_space<vmem>>, vector<10x16xf32>
    %341 = arith.addf %339, %340 : vector<10x16xf32>
    %cst_337 = arith.constant dense<0xFF800000> : vector<16xf32>
    %342 = vector.multi_reduction <maximumf>, %341, %cst_337 [0] : vector<10x16xf32> to vector<16xf32>
    %343 = vector.shape_cast %342 : vector<16xf32> to vector<1x16xf32>
    %c25_338 = arith.constant 25 : index
    %c0_339 = arith.constant 0 : index
    %344 = vector.load %arg12[%c25_338, %c0_339] : memref<32x16xf32, #tpu.memory_space<vmem>>, vector<1x16xf32>
    tpu.vector_store %arg12[%c25_338, %c0_339], %343 {strides = array<i32>} : memref<32x16xf32, #tpu.memory_space<vmem>>, vector<1x16xf32>,
    %c312 = arith.constant 312 : index
    %c0_340 = arith.constant 0 : index
    %345 = vector.load %arg11[%c312, %c0_340] : memref<384x48xf32, #tpu.memory_space<vmem>>, vector<10x16xf32>
    %c313_341 = arith.constant 313 : index
    %c16_342 = arith.constant 16 : index
    %346 = vector.load %arg11[%c313_341, %c16_342] : memref<384x48xf32, #tpu.memory_space<vmem>>, vector<10x16xf32>
    %347 = arith.addf %345, %346 : vector<10x16xf32>
    %c314 = arith.constant 314 : index
    %c32_343 = arith.constant 32 : index
    %348 = vector.load %arg11[%c314, %c32_343] : memref<384x48xf32, #tpu.memory_space<vmem>>, vector<10x16xf32>
    %349 = arith.addf %347, %348 : vector<10x16xf32>
    %cst_344 = arith.constant dense<0xFF800000> : vector<16xf32>
    %350 = vector.multi_reduction <maximumf>, %349, %cst_344 [0] : vector<10x16xf32> to vector<16xf32>
    %351 = vector.shape_cast %350 : vector<16xf32> to vector<1x16xf32>
    %c26_345 = arith.constant 26 : index
    %c0_346 = arith.constant 0 : index
    %352 = vector.load %arg12[%c26_345, %c0_346] : memref<32x16xf32, #tpu.memory_space<vmem>>, vector<1x16xf32>
    tpu.vector_store %arg12[%c26_345, %c0_346], %351 {strides = array<i32>} : memref<32x16xf32, #tpu.memory_space<vmem>>, vector<1x16xf32>,
    %c324 = arith.constant 324 : index
    %c0_347 = arith.constant 0 : index
    %353 = vector.load %arg11[%c324, %c0_347] : memref<384x48xf32, #tpu.memory_space<vmem>>, vector<10x16xf32>
    %c325_348 = arith.constant 325 : index
    %c16_349 = arith.constant 16 : index
    %354 = vector.load %arg11[%c325_348, %c16_349] : memref<384x48xf32, #tpu.memory_space<vmem>>, vector<10x16xf32>
    %355 = arith.addf %353, %354 : vector<10x16xf32>
    %c326 = arith.constant 326 : index
    %c32_350 = arith.constant 32 : index
    %356 = vector.load %arg11[%c326, %c32_350] : memref<384x48xf32, #tpu.memory_space<vmem>>, vector<10x16xf32>
    %357 = arith.addf %355, %356 : vector<10x16xf32>
    %cst_351 = arith.constant dense<0xFF800000> : vector<16xf32>
    %358 = vector.multi_reduction <maximumf>, %357, %cst_351 [0] : vector<10x16xf32> to vector<16xf32>
    %359 = vector.shape_cast %358 : vector<16xf32> to vector<1x16xf32>
    %c27_352 = arith.constant 27 : index
    %c0_353 = arith.constant 0 : index
    %360 = vector.load %arg12[%c27_352, %c0_353] : memref<32x16xf32, #tpu.memory_space<vmem>>, vector<1x16xf32>
    tpu.vector_store %arg12[%c27_352, %c0_353], %359 {strides = array<i32>} : memref<32x16xf32, #tpu.memory_space<vmem>>, vector<1x16xf32>,
    %c336 = arith.constant 336 : index
    %c0_354 = arith.constant 0 : index
    %361 = vector.load %arg11[%c336, %c0_354] : memref<384x48xf32, #tpu.memory_space<vmem>>, vector<10x16xf32>
    %c337_355 = arith.constant 337 : index
    %c16_356 = arith.constant 16 : index
    %362 = vector.load %arg11[%c337_355, %c16_356] : memref<384x48xf32, #tpu.memory_space<vmem>>, vector<10x16xf32>
    %363 = arith.addf %361, %362 : vector<10x16xf32>
    %c338 = arith.constant 338 : index
    %c32_357 = arith.constant 32 : index
    %364 = vector.load %arg11[%c338, %c32_357] : memref<384x48xf32, #tpu.memory_space<vmem>>, vector<10x16xf32>
    %365 = arith.addf %363, %364 : vector<10x16xf32>
    %cst_358 = arith.constant dense<0xFF800000> : vector<16xf32>
    %366 = vector.multi_reduction <maximumf>, %365, %cst_358 [0] : vector<10x16xf32> to vector<16xf32>
    %367 = vector.shape_cast %366 : vector<16xf32> to vector<1x16xf32>
    %c28_359 = arith.constant 28 : index
    %c0_360 = arith.constant 0 : index
    %368 = vector.load %arg12[%c28_359, %c0_360] : memref<32x16xf32, #tpu.memory_space<vmem>>, vector<1x16xf32>
    tpu.vector_store %arg12[%c28_359, %c0_360], %367 {strides = array<i32>} : memref<32x16xf32, #tpu.memory_space<vmem>>, vector<1x16xf32>,
    %c348 = arith.constant 348 : index
    %c0_361 = arith.constant 0 : index
    %369 = vector.load %arg11[%c348, %c0_361] : memref<384x48xf32, #tpu.memory_space<vmem>>, vector<10x16xf32>
    %c349_362 = arith.constant 349 : index
    %c16_363 = arith.constant 16 : index
    %370 = vector.load %arg11[%c349_362, %c16_363] : memref<384x48xf32, #tpu.memory_space<vmem>>, vector<10x16xf32>
    %371 = arith.addf %369, %370 : vector<10x16xf32>
    %c350 = arith.constant 350 : index
    %c32_364 = arith.constant 32 : index
    %372 = vector.load %arg11[%c350, %c32_364] : memref<384x48xf32, #tpu.memory_space<vmem>>, vector<10x16xf32>
    %373 = arith.addf %371, %372 : vector<10x16xf32>
    %cst_365 = arith.constant dense<0xFF800000> : vector<16xf32>
    %374 = vector.multi_reduction <maximumf>, %373, %cst_365 [0] : vector<10x16xf32> to vector<16xf32>
    %375 = vector.shape_cast %374 : vector<16xf32> to vector<1x16xf32>
    %c29_366 = arith.constant 29 : index
    %c0_367 = arith.constant 0 : index
    %376 = vector.load %arg12[%c29_366, %c0_367] : memref<32x16xf32, #tpu.memory_space<vmem>>, vector<1x16xf32>
    tpu.vector_store %arg12[%c29_366, %c0_367], %375 {strides = array<i32>} : memref<32x16xf32, #tpu.memory_space<vmem>>, vector<1x16xf32>,
    %c360 = arith.constant 360 : index
    %c0_368 = arith.constant 0 : index
    %377 = vector.load %arg11[%c360, %c0_368] : memref<384x48xf32, #tpu.memory_space<vmem>>, vector<10x16xf32>
    %c361_369 = arith.constant 361 : index
    %c16_370 = arith.constant 16 : index
    %378 = vector.load %arg11[%c361_369, %c16_370] : memref<384x48xf32, #tpu.memory_space<vmem>>, vector<10x16xf32>
    %379 = arith.addf %377, %378 : vector<10x16xf32>
    %c362 = arith.constant 362 : index
    %c32_371 = arith.constant 32 : index
    %380 = vector.load %arg11[%c362, %c32_371] : memref<384x48xf32, #tpu.memory_space<vmem>>, vector<10x16xf32>
    %381 = arith.addf %379, %380 : vector<10x16xf32>
    %cst_372 = arith.constant dense<0xFF800000> : vector<16xf32>
    %382 = vector.multi_reduction <maximumf>, %381, %cst_372 [0] : vector<10x16xf32> to vector<16xf32>
    %383 = vector.shape_cast %382 : vector<16xf32> to vector<1x16xf32>
    %c30_373 = arith.constant 30 : index
    %c0_374 = arith.constant 0 : index
    %384 = vector.load %arg12[%c30_373, %c0_374] : memref<32x16xf32, #tpu.memory_space<vmem>>, vector<1x16xf32>
    tpu.vector_store %arg12[%c30_373, %c0_374], %383 {strides = array<i32>} : memref<32x16xf32, #tpu.memory_space<vmem>>, vector<1x16xf32>,
    %c372 = arith.constant 372 : index
    %c0_375 = arith.constant 0 : index
    %385 = vector.load %arg11[%c372, %c0_375] : memref<384x48xf32, #tpu.memory_space<vmem>>, vector<10x16xf32>
    %c373_376 = arith.constant 373 : index
    %c16_377 = arith.constant 16 : index
    %386 = vector.load %arg11[%c373_376, %c16_377] : memref<384x48xf32, #tpu.memory_space<vmem>>, vector<10x16xf32>
    %387 = arith.addf %385, %386 : vector<10x16xf32>
    %c374 = arith.constant 374 : index
    %c32_378 = arith.constant 32 : index
    %388 = vector.load %arg11[%c374, %c32_378] : memref<384x48xf32, #tpu.memory_space<vmem>>, vector<10x16xf32>
    %389 = arith.addf %387, %388 : vector<10x16xf32>
    %cst_379 = arith.constant dense<0xFF800000> : vector<16xf32>
    %390 = vector.multi_reduction <maximumf>, %389, %cst_379 [0] : vector<10x16xf32> to vector<16xf32>
    %391 = vector.shape_cast %390 : vector<16xf32> to vector<1x16xf32>
    %c31_380 = arith.constant 31 : index
    %c0_381 = arith.constant 0 : index
    %392 = vector.load %arg12[%c31_380, %c0_381] : memref<32x16xf32, #tpu.memory_space<vmem>>, vector<1x16xf32>
    tpu.vector_store %arg12[%c31_380, %c0_381], %391 {strides = array<i32>} : memref<32x16xf32, #tpu.memory_space<vmem>>, vector<1x16xf32>,
    %c0_382 = arith.constant 0 : index
    %c0_383 = arith.constant 0 : index
    %393 = vector.load %arg12[%c0_382, %c0_383] : memref<32x16xf32, #tpu.memory_space<vmem>>, vector<32x16xf32>
    %c0_384 = arith.constant 0 : index
    %c0_385 = arith.constant 0 : index
    %394 = vector.load %arg4[%c0_384, %c0_385] : memref<16x32xf32, #tpu.memory_space<vmem>>, vector<16x32xf32>
    %cst_386 = arith.constant dense<0.000000e+00> : vector<32x32xf32>
    %395 = tpu.matmul %393, %394, %cst_386 {dimension_numbers = #tpu.dot_dimension_numbers<[1], [0], [0], [1], [0, 0, 1, 1], [], []>} : vector<32x16xf32>, vector<16x32xf32>, vector<32x32xf32> -> vector<32x32xf32>
    %c0_387 = arith.constant 0 : index
    %c0_388 = arith.constant 0 : index
    %396 = vector.load %arg5[%c0_387, %c0_388] : memref<1x32xf32, #tpu.memory_space<vmem>>, vector<1x32xf32>
    %397 = vector.broadcast %396 : vector<1x32xf32> to vector<32x32xf32>
    %398 = arith.addf %395, %397 : vector<32x32xf32>
    %399 = math.tanh %398 : vector<32x32xf32>
    %400 = vector.extract_strided_slice %399 {offsets = [0, 0], sizes = [4, 32], strides = [1, 1]} : vector<32x32xf32> to vector<4x32xf32>
    %cst_389 = arith.constant dense<0xFF800000> : vector<32xf32>
    %401 = vector.multi_reduction <maximumf>, %400, %cst_389 [0] : vector<4x32xf32> to vector<32xf32>
    %402 = vector.shape_cast %401 : vector<32xf32> to vector<1x32xf32>
    %c0_390 = arith.constant 0 : index
    %c0_391 = arith.constant 0 : index
    %403 = vector.load %arg13[%c0_390, %c0_391] : memref<8x32xf32, #tpu.memory_space<vmem>>, vector<1x32xf32>
    tpu.vector_store %arg13[%c0_390, %c0_391], %402 {strides = array<i32>} : memref<8x32xf32, #tpu.memory_space<vmem>>, vector<1x32xf32>,
    %404 = vector.extract_strided_slice %399 {offsets = [4, 0], sizes = [4, 32], strides = [1, 1]} : vector<32x32xf32> to vector<4x32xf32>
    %cst_392 = arith.constant dense<0xFF800000> : vector<32xf32>
    %405 = vector.multi_reduction <maximumf>, %404, %cst_392 [0] : vector<4x32xf32> to vector<32xf32>
    %406 = vector.shape_cast %405 : vector<32xf32> to vector<1x32xf32>
    %c1_393 = arith.constant 1 : index
    %c0_394 = arith.constant 0 : index
    %407 = vector.load %arg13[%c1_393, %c0_394] : memref<8x32xf32, #tpu.memory_space<vmem>>, vector<1x32xf32>
    tpu.vector_store %arg13[%c1_393, %c0_394], %406 {strides = array<i32>} : memref<8x32xf32, #tpu.memory_space<vmem>>, vector<1x32xf32>,
    %408 = vector.extract_strided_slice %399 {offsets = [8, 0], sizes = [4, 32], strides = [1, 1]} : vector<32x32xf32> to vector<4x32xf32>
    %cst_395 = arith.constant dense<0xFF800000> : vector<32xf32>
    %409 = vector.multi_reduction <maximumf>, %408, %cst_395 [0] : vector<4x32xf32> to vector<32xf32>
    %410 = vector.shape_cast %409 : vector<32xf32> to vector<1x32xf32>
    %c2_396 = arith.constant 2 : index
    %c0_397 = arith.constant 0 : index
    %411 = vector.load %arg13[%c2_396, %c0_397] : memref<8x32xf32, #tpu.memory_space<vmem>>, vector<1x32xf32>
    tpu.vector_store %arg13[%c2_396, %c0_397], %410 {strides = array<i32>} : memref<8x32xf32, #tpu.memory_space<vmem>>, vector<1x32xf32>,
    %412 = vector.extract_strided_slice %399 {offsets = [12, 0], sizes = [4, 32], strides = [1, 1]} : vector<32x32xf32> to vector<4x32xf32>
    %cst_398 = arith.constant dense<0xFF800000> : vector<32xf32>
    %413 = vector.multi_reduction <maximumf>, %412, %cst_398 [0] : vector<4x32xf32> to vector<32xf32>
    %414 = vector.shape_cast %413 : vector<32xf32> to vector<1x32xf32>
    %c3_399 = arith.constant 3 : index
    %c0_400 = arith.constant 0 : index
    %415 = vector.load %arg13[%c3_399, %c0_400] : memref<8x32xf32, #tpu.memory_space<vmem>>, vector<1x32xf32>
    tpu.vector_store %arg13[%c3_399, %c0_400], %414 {strides = array<i32>} : memref<8x32xf32, #tpu.memory_space<vmem>>, vector<1x32xf32>,
    %416 = vector.extract_strided_slice %399 {offsets = [16, 0], sizes = [4, 32], strides = [1, 1]} : vector<32x32xf32> to vector<4x32xf32>
    %cst_401 = arith.constant dense<0xFF800000> : vector<32xf32>
    %417 = vector.multi_reduction <maximumf>, %416, %cst_401 [0] : vector<4x32xf32> to vector<32xf32>
    %418 = vector.shape_cast %417 : vector<32xf32> to vector<1x32xf32>
    %c4_402 = arith.constant 4 : index
    %c0_403 = arith.constant 0 : index
    %419 = vector.load %arg13[%c4_402, %c0_403] : memref<8x32xf32, #tpu.memory_space<vmem>>, vector<1x32xf32>
    tpu.vector_store %arg13[%c4_402, %c0_403], %418 {strides = array<i32>} : memref<8x32xf32, #tpu.memory_space<vmem>>, vector<1x32xf32>,
    %420 = vector.extract_strided_slice %399 {offsets = [20, 0], sizes = [4, 32], strides = [1, 1]} : vector<32x32xf32> to vector<4x32xf32>
    %cst_404 = arith.constant dense<0xFF800000> : vector<32xf32>
    %421 = vector.multi_reduction <maximumf>, %420, %cst_404 [0] : vector<4x32xf32> to vector<32xf32>
    %422 = vector.shape_cast %421 : vector<32xf32> to vector<1x32xf32>
    %c5_405 = arith.constant 5 : index
    %c0_406 = arith.constant 0 : index
    %423 = vector.load %arg13[%c5_405, %c0_406] : memref<8x32xf32, #tpu.memory_space<vmem>>, vector<1x32xf32>
    tpu.vector_store %arg13[%c5_405, %c0_406], %422 {strides = array<i32>} : memref<8x32xf32, #tpu.memory_space<vmem>>, vector<1x32xf32>,
    %424 = vector.extract_strided_slice %399 {offsets = [24, 0], sizes = [4, 32], strides = [1, 1]} : vector<32x32xf32> to vector<4x32xf32>
    %cst_407 = arith.constant dense<0xFF800000> : vector<32xf32>
    %425 = vector.multi_reduction <maximumf>, %424, %cst_407 [0] : vector<4x32xf32> to vector<32xf32>
    %426 = vector.shape_cast %425 : vector<32xf32> to vector<1x32xf32>
    %c6_408 = arith.constant 6 : index
    %c0_409 = arith.constant 0 : index
    %427 = vector.load %arg13[%c6_408, %c0_409] : memref<8x32xf32, #tpu.memory_space<vmem>>, vector<1x32xf32>
    tpu.vector_store %arg13[%c6_408, %c0_409], %426 {strides = array<i32>} : memref<8x32xf32, #tpu.memory_space<vmem>>, vector<1x32xf32>,
    %428 = vector.extract_strided_slice %399 {offsets = [28, 0], sizes = [4, 32], strides = [1, 1]} : vector<32x32xf32> to vector<4x32xf32>
    %cst_410 = arith.constant dense<0xFF800000> : vector<32xf32>
    %429 = vector.multi_reduction <maximumf>, %428, %cst_410 [0] : vector<4x32xf32> to vector<32xf32>
    %430 = vector.shape_cast %429 : vector<32xf32> to vector<1x32xf32>
    %c7_411 = arith.constant 7 : index
    %c0_412 = arith.constant 0 : index
    %431 = vector.load %arg13[%c7_411, %c0_412] : memref<8x32xf32, #tpu.memory_space<vmem>>, vector<1x32xf32>
    tpu.vector_store %arg13[%c7_411, %c0_412], %430 {strides = array<i32>} : memref<8x32xf32, #tpu.memory_space<vmem>>, vector<1x32xf32>,
    %c0_413 = arith.constant 0 : index
    %c0_414 = arith.constant 0 : index
    %432 = vector.load %arg13[%c0_413, %c0_414] : memref<8x32xf32, #tpu.memory_space<vmem>>, vector<4x32xf32>
    %433 = vector.extract_strided_slice %34 {offsets = [0, 0], sizes = [1, 32], strides = [1, 1]} : vector<2x32xf32> to vector<1x32xf32>
    %434 = vector.broadcast %433 : vector<1x32xf32> to vector<4x32xf32>
    %435 = arith.mulf %432, %434 : vector<4x32xf32>
    %cst_415 = arith.constant dense<0.000000e+00> : vector<4xf32>
    %436 = vector.multi_reduction <add>, %435, %cst_415 [1] : vector<4x32xf32> to vector<4xf32>
    %437 = vector.shape_cast %436 : vector<4xf32> to vector<4x1xf32>
    %cst_416 = arith.constant dense<0xFF800000> : vector<1xf32>
    %438 = vector.multi_reduction <maximumf>, %437, %cst_416 [0] : vector<4x1xf32> to vector<1xf32>
    %439 = vector.shape_cast %438 : vector<1xf32> to vector<1x1xf32>
    %440 = vector.broadcast %439 : vector<1x1xf32> to vector<4x1xf32>
    %441 = arith.subf %437, %440 : vector<4x1xf32>
    %442 = math.exp %441 : vector<4x1xf32>
    %cst_417 = arith.constant dense<0.000000e+00> : vector<1xf32>
    %443 = vector.multi_reduction <add>, %442, %cst_417 [0] : vector<4x1xf32> to vector<1xf32>
    %444 = vector.shape_cast %443 : vector<1xf32> to vector<1x1xf32>
    %445 = math.log %444 : vector<1x1xf32>
    %446 = vector.broadcast %445 : vector<1x1xf32> to vector<4x1xf32>
    %447 = arith.subf %441, %446 : vector<4x1xf32>
    %c0_418 = arith.constant 0 : index
    %c0_419 = arith.constant 0 : index
    %448 = vector.load %arg6[%c0_418, %c0_419] : memref<8x1xf32, #tpu.memory_space<vmem>>, vector<4x1xf32>
    tpu.vector_store %arg6[%c0_418, %c0_419], %447 {strides = array<i32>} : memref<8x1xf32, #tpu.memory_space<vmem>>, vector<4x1xf32>,
    %c4_420 = arith.constant 4 : index
    %c0_421 = arith.constant 0 : index
    %449 = vector.load %arg13[%c4_420, %c0_421] : memref<8x32xf32, #tpu.memory_space<vmem>>, vector<4x32xf32>
    %450 = vector.extract_strided_slice %34 {offsets = [1, 0], sizes = [1, 32], strides = [1, 1]} : vector<2x32xf32> to vector<1x32xf32>
    %451 = vector.broadcast %450 : vector<1x32xf32> to vector<4x32xf32>
    %452 = arith.mulf %449, %451 : vector<4x32xf32>
    %cst_422 = arith.constant dense<0.000000e+00> : vector<4xf32>
    %453 = vector.multi_reduction <add>, %452, %cst_422 [1] : vector<4x32xf32> to vector<4xf32>
    %454 = vector.shape_cast %453 : vector<4xf32> to vector<4x1xf32>
    %cst_423 = arith.constant dense<0xFF800000> : vector<1xf32>
    %455 = vector.multi_reduction <maximumf>, %454, %cst_423 [0] : vector<4x1xf32> to vector<1xf32>
    %456 = vector.shape_cast %455 : vector<1xf32> to vector<1x1xf32>
    %457 = vector.broadcast %456 : vector<1x1xf32> to vector<4x1xf32>
    %458 = arith.subf %454, %457 : vector<4x1xf32>
    %459 = math.exp %458 : vector<4x1xf32>
    %cst_424 = arith.constant dense<0.000000e+00> : vector<1xf32>
    %460 = vector.multi_reduction <add>, %459, %cst_424 [0] : vector<4x1xf32> to vector<1xf32>
    %461 = vector.shape_cast %460 : vector<1xf32> to vector<1x1xf32>
    %462 = math.log %461 : vector<1x1xf32>
    %463 = vector.broadcast %462 : vector<1x1xf32> to vector<4x1xf32>
    %464 = arith.subf %458, %463 : vector<4x1xf32>
    %c4_425 = arith.constant 4 : index
    %c0_426 = arith.constant 0 : index
    %465 = vector.load %arg6[%c4_425, %c0_426] : memref<8x1xf32, #tpu.memory_space<vmem>>, vector<4x1xf32>
    tpu.vector_store %arg6[%c4_425, %c0_426], %464 {strides = array<i32>} : memref<8x1xf32, #tpu.memory_space<vmem>>, vector<4x1xf32>,
    return
  }
  func.func @transform_0(%arg0: i32) -> (i32, i32, i32) {
    %c0_i32 = arith.constant 0 : i32
    %c0_i32_0 = arith.constant 0 : i32
    %c0_i32_1 = arith.constant 0 : i32
    %c0_i32_2 = arith.constant 0 : i32
    return %c0_i32, %c0_i32_0, %c0_i32_1 : i32, i32, i32
  }
  func.func @transform_1(%arg0: i32) -> (i32, i32, i32) {
    %c0_i32 = arith.constant 0 : i32
    %c0_i32_0 = arith.constant 0 : i32
    %c0_i32_1 = arith.constant 0 : i32
    %c0_i32_2 = arith.constant 0 : i32
    return %c0_i32, %c0_i32_0, %c0_i32_1 : i32, i32, i32
  }
  func.func @transform_2(%arg0: i32) -> (i32, i32) {
    %c0_i32 = arith.constant 0 : i32
    %c0_i32_0 = arith.constant 0 : i32
    %c0_i32_1 = arith.constant 0 : i32
    return %c0_i32, %c0_i32_0 : i32, i32
  }
  func.func @transform_3(%arg0: i32) -> (i32, i32) {
    %c0_i32 = arith.constant 0 : i32
    %c0_i32_0 = arith.constant 0 : i32
    %c0_i32_1 = arith.constant 0 : i32
    return %c0_i32, %c0_i32_0 : i32, i32
  }
  func.func @transform_4(%arg0: i32) -> (i32, i32) {
    %c0_i32 = arith.constant 0 : i32
    %c0_i32_0 = arith.constant 0 : i32
    %c0_i32_1 = arith.constant 0 : i32
    return %c0_i32, %c0_i32_0 : i32, i32
  }
  func.func @transform_5(%arg0: i32) -> (i32, i32) {
    %c0_i32 = arith.constant 0 : i32
    %c0_i32_0 = arith.constant 0 : i32
    %c0_i32_1 = arith.constant 0 : i32
    return %c0_i32, %c0_i32_0 : i32, i32
  }
}

</mosaic_0001>

<llo_original>
// kernel: brothers_forward.1
$region0: #{brothers_forward.1}
  #allocation0 [shape = 'u32[]', space=smem, size = 0x4, offset = 0x4, fixed_abs, tag = 'smem constant byte address 0x4 - core index']
  #allocation1 [shape = 'u32[144,128]{1,0:T(1,128)}', space=vmem, size = 0x12000, scoped, tag = 'internal scratch']
  #allocation2 [shape = 'f32[28,8]{1,0:T(8,128)}', space=vmem, size = 0x4000, scoped, tag = 'scratch operand']
  #allocation3 [shape = 'f32[28,48]{1,0:T(8,128)}', space=vmem, size = 0x4000, scoped, tag = 'scratch operand']
  #allocation4 [shape = 'f32[2,16]{1,0:T(2,128)}', space=vmem, size = 0x400, scoped, tag = 'scratch operand']
  #allocation5 [shape = 'f32[384,8]{1,0:T(8,128)}', space=vmem, size = 0x30000, scoped, tag = 'scratch operand']
  #allocation6 [shape = 'f32[384,48]{1,0:T(8,128)}', space=vmem, size = 0x30000, scoped, tag = 'scratch operand']
  #allocation7 [shape = 'f32[32,16]{1,0:T(8,128)}', space=vmem, size = 0x4000, scoped, tag = 'scratch operand']
  #allocation8 [shape = 'f32[8,32]{1,0:T(8,128)}', space=vmem, size = 0x1000, scoped, tag = 'scratch operand']
  %s0 = inlined_call_operand.vmem [shape: f32[2,12,8], index: 0, kind: input, shape index: {}]
  %s1 = inlined_call_operand.vmem [shape: f32[32,10,8], index: 1, kind: input, shape index: {}]
  %s2 = inlined_call_operand.vmem [shape: f32[8,48], index: 2, kind: input, shape index: {}]
  %s3 = inlined_call_operand.vmem [shape: f32[16,32], index: 3, kind: input, shape index: {}]
  %s4 = inlined_call_operand.vmem [shape: f32[1,32], index: 4, kind: input, shape index: {}]
  %s5 = inlined_call_operand.vmem [shape: f32[8,1], index: 5, kind: output, shape index: {}]
  %s6 = sld [smem:[#allocation0]]
  $region30: #{brothers_forward.1} parent=0
    _
  %s8 = ssub.s32 1, %s6
  %s9 = scalar_select 0, %s8, %s6
  // Predicated region
  $region2: #{brothers_forward.1} parent=0 // pred_check
    _
  $region3: #{brothers_forward.1} parent=0 // pred_check_branch
    %11 = sbr.rel (0) target = $region5
  $region4: #{brothers_forward.1} parent=0 // pred_region
    _
  $region5: #{brothers_forward.1} parent=0 // pred_fallthru
    _
  // Predicated region
  $region6: #{brothers_forward.1} parent=0 // pred_check
    _
  $region7: #{brothers_forward.1} parent=0 // pred_check_branch
    %13 = sbr.rel (0) target = $region9
  $region8: #{brothers_forward.1} parent=0 // pred_region
    _
  $region9: #{brothers_forward.1} parent=0 // pred_fallthru
    _
  // Predicated region
  $region10: #{brothers_forward.1} parent=0 // pred_check
    _
  $region11: #{brothers_forward.1} parent=0 // pred_check_branch
    %15 = sbr.rel (0) target = $region13
  $region12: #{brothers_forward.1} parent=0 // pred_region
    _
  $region13: #{brothers_forward.1} parent=0 // pred_fallthru
    _
  // Predicated region
  $region14: #{brothers_forward.1} parent=0 // pred_check
    _
  $region15: #{brothers_forward.1} parent=0 // pred_check_branch
    %17 = sbr.rel (0) target = $region17
  $region16: #{brothers_forward.1} parent=0 // pred_region
    _
  $region17: #{brothers_forward.1} parent=0 // pred_fallthru
    _
  // Predicated region
  $region18: #{brothers_forward.1} parent=0 // pred_check
    _
  $region19: #{brothers_forward.1} parent=0 // pred_check_branch
    %19 = sbr.rel (0) target = $region21
  $region20: #{brothers_forward.1} parent=0 // pred_region
    _
  $region21: #{brothers_forward.1} parent=0 // pred_fallthru
    _
  %vm20 = vcmask 64512
  %21 = vst.msk [vmem:[#allocation2] sm:$0xff] %vm20, 0.0
  %22 = vst.msk [vmem:[#allocation2 + $0x8] sm:$0xff] %vm20, 0.0
  %23 = vst.msk [vmem:[#allocation2 + $0x10] sm:$0xff] %vm20, 0.0
  %vm24 = vcmask 60416
  %25 = vst.msk [vmem:[#allocation2 + $0x18] sm:$0xf] %vm24, 0.0
  %v26 = vld [vmem:[%s0] sm:$0xff]
  %v27 = vld [vmem:[%s0 + $0x8] sm:$0xf]
  %28 = vst.msk [vmem:[#allocation2 + $0x1] sm:$0xff] %vm20, %v26
  %29 = vst.msk [vmem:[#allocation2 + $0x9] sm:$0xf] %vm24, %v27
  %s30 = scalar_lea.vmem %s0, 16
  %v31 = vld [vmem:[%s30] sm:$0xff]
  %v32 = vld [vmem:[%s30 + $0x8] sm:$0xf]
  %33 = vst.msk [vmem:[#allocation2 + $0xf] sm:$0xff] %vm20, %v31
  %34 = vst.msk [vmem:[#allocation2 + $0x17] sm:$0xf] %vm24, %v32
  %v35 = vld [vmem:[#allocation2] sm:$0xff]
  %v36 = vld [vmem:[#allocation2 + $0x8] sm:$0xff]
  %v37 = vld [vmem:[#allocation2 + $0x10] sm:$0xff]
  %v38 = vld [vmem:[#allocation2 + $0x18] sm:$0xf]
  %v39 = vld [vmem:[%s2] sm:$0xff]
  %v41 = vsel %vm20, %v35, 0
  %v44 = vsel %vm20, %v36, 0
  %v47 = vsel %vm20, %v37, 0
  %v50 = vsel %vm20, %v38, 0
  %52 = vmatprep.subr.mxu0 0.0
  %53 = vmatpush1.msra.mxu0 %v39
  %54 = vmatprep.subr.mxu0 0.0
  %55 = vmatpush1.msra.mxu0 0.0
  %56 = vmatprep.subr.mxu0 0.0
  %57 = vmatpush1.msra.mxu0 0.0
  %58 = vmatprep.subr.mxu0 0.0
  %59 = vmatpush1.msra.mxu0 0.0
  %60 = vmatprep.subr.mxu0 0.0
  %61 = vmatpush1.msra.mxu0 0.0
  %62 = vmatprep.subr.mxu0 0.0
  %63 = vmatpush1.msra.mxu0 0.0
  %64 = vmatprep.subr.mxu0 0.0
  %65 = vmatpush1.msra.mxu0 0.0
  %66 = vmatprep.subr.mxu0 0.0
  %67 = vmatpush1.msra.mxu0 0.0
  %68 = vmatprep.subr.mxu0 0.0
  %69 = vmatpush1.msra.mxu0 0.0
  %70 = vmatprep.subr.mxu0 0.0
  %71 = vmatpush1.msra.mxu0 0.0
  %72 = vmatprep.subr.mxu0 0.0
  %73 = vmatpush1.msra.mxu0 0.0
  %74 = vmatprep.subr.mxu0 0.0
  %75 = vmatpush1.msra.mxu0 0.0
  %76 = vmatprep.subr.mxu0 0.0
  %77 = vmatpush1.msra.mxu0 0.0
  %78 = vmatprep.subr.mxu0 0.0
  %79 = vmatpush1.msra.mxu0 0.0
  %80 = vmatprep.subr.mxu0 0.0
  %81 = vmatpush1.msra.mxu0 0.0
  %82 = vmatprep.subr.mxu0 0.0
  %83 = vmatpush1.msra.mxu0 0.0
  %84 = vmatprep.subr.mxu0 0.0
  %85 = vmatpush1.msra.mxu0 0.0
  %86 = vmatprep.subr.mxu0 0.0
  %87 = vmatpush1.msra.mxu0 0.0
  %88 = vmatprep.subr.mxu0 0.0
  %89 = vmatpush1.msra.mxu0 0.0
  %90 = vmatprep.subr.mxu0 0.0
  %91 = vmatpush1.msra.mxu0 0.0
  %92 = vmatprep.subr.mxu0 0.0
  %93 = vmatpush1.msra.mxu0 0.0
  %94 = vmatprep.subr.mxu0 0.0
  %95 = vmatpush1.msra.mxu0 0.0
  %96 = vmatprep.subr.mxu0 0.0
  %97 = vmatpush1.msra.mxu0 0.0
  %98 = vmatprep.subr.mxu0 0.0
  %99 = vmatpush1.msra.mxu0 0.0
  %100 = vmatprep.subr.mxu0 0.0
  %101 = vmatpush1.msra.mxu0 0.0
  %102 = vmatprep.subr.mxu0 0.0
  %103 = vmatpush1.msra.mxu0 0.0
  %104 = vmatprep.subr.mxu0 0.0
  %105 = vmatpush1.msra.mxu0 0.0
  %106 = vmatprep.subr.mxu0 0.0
  %107 = vmatpush1.msra.mxu0 0.0
  %108 = vmatprep.subr.mxu0 0.0
  %109 = vmatpush1.msra.mxu0 0.0
  %110 = vmatprep.subr.mxu0 0.0
  %111 = vmatpush1.msra.mxu0 0.0
  %112 = vmatprep.subr.mxu0 0.0
  %113 = vmatpush1.msra.mxu0 0.0
  %114 = vmatprep.subr.mxu0 0.0
  %115 = vmatpush1.msra.mxu0 0.0
  %116 = vmatprep.mubr.f32.mxu0 0.0
  %117 = vmatmul.mubr.f32.gmra.mrb[0].mxu0 %v41
  %v118 = vpop.f32.mrb[0].mxu0
  %v119 = vadd.f32 0.0, %v118
  %v120 = vpop.f32.mrb[0].mxu0
  %121 = vmatprep.mubr.f32.mxu0 0.0
  %122 = vmatmul.mubr.f32.gmra.mrb[0].mxu0 %v44
  %v123 = vpop.f32.mrb[0].mxu0
  %v124 = vadd.f32 0.0, %v123
  %v125 = vpop.f32.mrb[0].mxu0
  %126 = vmatprep.mubr.f32.mxu0 0.0
  %127 = vmatmul.mubr.f32.gmra.mrb[0].mxu0 %v47
  %v128 = vpop.f32.mrb[0].mxu0
  %v129 = vadd.f32 0.0, %v128
  %v130 = vpop.f32.mrb[0].mxu0
  %131 = vmatprep.mubr.f32.mxu0 0.0
  %132 = vmatmul.mubr.f32.gmra.mrb[0].mxu0 %v50
  %v133 = vpop.f32.mrb[0].mxu0
  %v134 = vadd.f32 0.0, %v133
  %v135 = vpop.f32.mrb[0].mxu0
  %136 = vdwg.mxu0
  %vm137 = vcmask 392192
  %138 = vst.msk [vmem:[#allocation3] sm:$0xff] %vm137, %v119
  %139 = vst.msk [vmem:[#allocation3 + $0x8] sm:$0xff] %vm137, %v124
  %140 = vst.msk [vmem:[#allocation3 + $0x10] sm:$0xff] %vm137, %v129
  %vm141 = vcmask 388096
  %142 = vst.msk [vmem:[#allocation3 + $0x18] sm:$0xf] %vm141, %v134
  %v143 = vld [vmem:[#allocation3] sm:$0xff]
  %v144 = vld [vmem:[#allocation3 + $0x8] sm:$0xf]
  %v145 = vld [vmem:[#allocation3 + $0x1] sm:$0xff]
  %v146 = vld [vmem:[#allocation3 + $0x9] sm:$0xf]
  %149 = vrot.lane.b32.xlu0 %v145, 112
  %v150 = vpop.permute.xlu0 %149
  %151 = vrot.lane.b32.xlu0 %v146, 112
  %v152 = vpop.permute.xlu0 %151
  %v155 = vadd.f32 %v143, %v150
  %v156 = vadd.f32 %v144, %v152
  %v157 = vld [vmem:[#allocation3 + $0x2] sm:$0xff]
  %v158 = vld [vmem:[#allocation3 + $0xa] sm:$0xf]
  %161 = vrot.lane.b32.xlu0 %v157, 96
  %v162 = vpop.permute.xlu0 %161
  %163 = vrot.lane.b32.xlu0 %v158, 96
  %v164 = vpop.permute.xlu0 %163
  %v167 = vadd.f32 %v155, %v162
  %v168 = vadd.f32 %v156, %v164
  %vm169 = vcmask 130048
  %v170 = vsel %vm169, %v167, -inf
  %vm171 = vcmask 125952
  %v172 = vsel %vm171, %v168, -inf
  %v173 = vmax.f32 %v170, %v172
  %v174 = vrot.slane %v173, 4
  %v175 = vmax.f32 %v173, %v174
  %v176 = vrot.slane %v175, 2
  %v177 = vmax.f32 %v175, %v176
  %v178 = vrot.slane %v177, 1
  %v179 = vmax.f32 %v177, %v178
  %vm180 = vcmask 122880
  %181 = vst.msk [vmem:[#allocation4] sm:$0x1] %vm180, %v179
  %v182 = vld [vmem:[#allocation3 + $0xe] sm:$0xff]
  %v183 = vld [vmem:[#allocation3 + $0x16] sm:$0xf]
  %v184 = vld [vmem:[#allocation3 + $0xf] sm:$0xff]
  %v185 = vld [vmem:[#allocation3 + $0x17] sm:$0xf]
  %188 = vrot.lane.b32.xlu0 %v184, 112
  %v189 = vpop.permute.xlu0 %188
  %190 = vrot.lane.b32.xlu0 %v185, 112
  %v191 = vpop.permute.xlu0 %190
  %v194 = vadd.f32 %v182, %v189
  %v195 = vadd.f32 %v183, %v191
  %v196 = vld [vmem:[#allocation3 + $0x10] sm:$0xff]
  %v197 = vld [vmem:[#allocation3 + $0x18] sm:$0xf]
  %200 = vrot.lane.b32.xlu0 %v196, 96
  %v201 = vpop.permute.xlu0 %200
  %202 = vrot.lane.b32.xlu0 %v197, 96
  %v203 = vpop.permute.xlu0 %202
  %v206 = vadd.f32 %v194, %v201
  %v207 = vadd.f32 %v195, %v203
  %v208 = vsel %vm169, %v206, -inf
  %v209 = vsel %vm171, %v207, -inf
  %v210 = vmax.f32 %v208, %v209
  %v211 = vrot.slane %v210, 4
  %v212 = vmax.f32 %v210, %v211
  %v213 = vrot.slane %v212, 2
  %v214 = vmax.f32 %v212, %v213
  %v215 = vrot.slane %v214, 1
  %v216 = vmax.f32 %v214, %v215
  %217 = vst.msk [vmem:[#allocation4 + $0x1] sm:$0x1] %vm180, %v216
  %v218 = vld [vmem:[#allocation4] sm:$0x3]
  %v219 = vld [vmem:[%s3] sm:$0xff]
  %v220 = vld [vmem:[%s3 + $0x8] sm:$0xff]
  %v221 = vld [vmem:[%s4] sm:$0x1]
  %v223 = vlaneseq
  %v224 = vshrl.u32 %v223, 7
  %v225 = vsub.s32 0, %v224
  %v226 = vrot.slane %v221, %v225
  %v229 = vsel %vm169, %v218, 0
  %231 = vmatprep.subr.mxu0 0.0
  %232 = vmatpush1.msra.mxu0 %v219
  %233 = vmatprep.subr.mxu0 0.0
  %234 = vmatpush1.msra.mxu0 %v220
  %235 = vmatprep.subr.mxu0 0.0
  %236 = vmatpush1.msra.mxu0 0.0
  %237 = vmatprep.subr.mxu0 0.0
  %238 = vmatpush1.msra.mxu0 0.0
  %239 = vmatprep.subr.mxu0 0.0
  %240 = vmatpush1.msra.mxu0 0.0
  %241 = vmatprep.subr.mxu0 0.0
  %242 = vmatpush1.msra.mxu0 0.0
  %243 = vmatprep.subr.mxu0 0.0
  %244 = vmatpush1.msra.mxu0 0.0
  %245 = vmatprep.subr.mxu0 0.0
  %246 = vmatpush1.msra.mxu0 0.0
  %247 = vmatprep.subr.mxu0 0.0
  %248 = vmatpush1.msra.mxu0 0.0
  %249 = vmatprep.subr.mxu0 0.0
  %250 = vmatpush1.msra.mxu0 0.0
  %251 = vmatprep.subr.mxu0 0.0
  %252 = vmatpush1.msra.mxu0 0.0
  %253 = vmatprep.subr.mxu0 0.0
  %254 = vmatpush1.msra.mxu0 0.0
  %255 = vmatprep.subr.mxu0 0.0
  %256 = vmatpush1.msra.mxu0 0.0
  %257 = vmatprep.subr.mxu0 0.0
  %258 = vmatpush1.msra.mxu0 0.0
  %259 = vmatprep.subr.mxu0 0.0
  %260 = vmatpush1.msra.mxu0 0.0
  %261 = vmatprep.subr.mxu0 0.0
  %262 = vmatpush1.msra.mxu0 0.0
  %263 = vmatprep.subr.mxu0 0.0
  %264 = vmatpush1.msra.mxu0 0.0
  %265 = vmatprep.subr.mxu0 0.0
  %266 = vmatpush1.msra.mxu0 0.0
  %267 = vmatprep.subr.mxu0 0.0
  %268 = vmatpush1.msra.mxu0 0.0
  %269 = vmatprep.subr.mxu0 0.0
  %270 = vmatpush1.msra.mxu0 0.0
  %271 = vmatprep.subr.mxu0 0.0
  %272 = vmatpush1.msra.mxu0 0.0
  %273 = vmatprep.subr.mxu0 0.0
  %274 = vmatpush1.msra.mxu0 0.0
  %275 = vmatprep.subr.mxu0 0.0
  %276 = vmatpush1.msra.mxu0 0.0
  %277 = vmatprep.subr.mxu0 0.0
  %278 = vmatpush1.msra.mxu0 0.0
  %279 = vmatprep.subr.mxu0 0.0
  %280 = vmatpush1.msra.mxu0 0.0
  %281 = vmatprep.subr.mxu0 0.0
  %282 = vmatpush1.msra.mxu0 0.0
  %283 = vmatprep.subr.mxu0 0.0
  %284 = vmatpush1.msra.mxu0 0.0
  %285 = vmatprep.subr.mxu0 0.0
  %286 = vmatpush1.msra.mxu0 0.0
  %287 = vmatprep.subr.mxu0 0.0
  %288 = vmatpush1.msra.mxu0 0.0
  %289 = vmatprep.subr.mxu0 0.0
  %290 = vmatpush1.msra.mxu0 0.0
  %291 = vmatprep.subr.mxu0 0.0
  %292 = vmatpush1.msra.mxu0 0.0
  %293 = vmatprep.subr.mxu0 0.0
  %294 = vmatpush1.msra.mxu0 0.0
  %295 = vmatprep.mubr.f32.mxu0 0.0
  %296 = vmatmul.mubr.f32.gmra.mrb[0].mxu0 %v229
  %v297 = vpop.f32.mrb[0].mxu0
  %v298 = vadd.f32 %v226, %v297
  %v299 = vpop.f32.mrb[0].mxu0
  %300 = vdwg.mxu0
  %v301 = vtanh.pop %v298
  %302 = vst.msk [vmem:[#allocation5] sm:$0xff] %vm20, 0.0
  %303 = vst.msk [vmem:[#allocation5 + $0x8] sm:$0xff] %vm20, 0.0
  %304 = vst.msk [vmem:[#allocation5 + $0x10] sm:$0xff] %vm20, 0.0
  %305 = vst.msk [vmem:[#allocation5 + $0x18] sm:$0xff] %vm20, 0.0
  %306 = vst.msk [vmem:[#allocation5 + $0x20] sm:$0xff] %vm20, 0.0
  %307 = vst.msk [vmem:[#allocation5 + $0x28] sm:$0xff] %vm20, 0.0
  %308 = vst.msk [vmem:[#allocation5 + $0x30] sm:$0xff] %vm20, 0.0
  %309 = vst.msk [vmem:[#allocation5 + $0x38] sm:$0xff] %vm20, 0.0
  %310 = vst.msk [vmem:[#allocation5 + $0x40] sm:$0xff] %vm20, 0.0
  %311 = vst.msk [vmem:[#allocation5 + $0x48] sm:$0xff] %vm20, 0.0
  %312 = vst.msk [vmem:[#allocation5 + $0x50] sm:$0xff] %vm20, 0.0
  %313 = vst.msk [vmem:[#allocation5 + $0x58] sm:$0xff] %vm20, 0.0
  %314 = vst.msk [vmem:[#allocation5 + $0x60] sm:$0xff] %vm20, 0.0
  %315 = vst.msk [vmem:[#allocation5 + $0x68] sm:$0xff] %vm20, 0.0
  %316 = vst.msk [vmem:[#allocation5 + $0x70] sm:$0xff] %vm20, 0.0
  %317 = vst.msk [vmem:[#allocation5 + $0x78] sm:$0xff] %vm20, 0.0
  %318 = vst.msk [vmem:[#allocation5 + $0x80] sm:$0xff] %vm20, 0.0
  %319 = vst.msk [vmem:[#allocation5 + $0x88] sm:$0xff] %vm20, 0.0
  %320 = vst.msk [vmem:[#allocation5 + $0x90] sm:$0xff] %vm20, 0.0
  %321 = vst.msk [vmem:[#allocation5 + $0x98] sm:$0xff] %vm20, 0.0
  %322 = vst.msk [vmem:[#allocation5 + $0xa0] sm:$0xff] %vm20, 0.0
  %323 = vst.msk [vmem:[#allocation5 + $0xa8] sm:$0xff] %vm20, 0.0
  %324 = vst.msk [vmem:[#allocation5 + $0xb0] sm:$0xff] %vm20, 0.0
  %325 = vst.msk [vmem:[#allocation5 + $0xb8] sm:$0xff] %vm20, 0.0
  %326 = vst.msk [vmem:[#allocation5 + $0xc0] sm:$0xff] %vm20, 0.0
  %327 = vst.msk [vmem:[#allocation5 + $0xc8] sm:$0xff] %vm20, 0.0
  %328 = vst.msk [vmem:[#allocation5 + $0xd0] sm:$0xff] %vm20, 0.0
  %329 = vst.msk [vmem:[#allocation5 + $0xd8] sm:$0xff] %vm20, 0.0
  %330 = vst.msk [vmem:[#allocation5 + $0xe0] sm:$0xff] %vm20, 0.0
  %331 = vst.msk [vmem:[#allocation5 + $0xe8] sm:$0xff] %vm20, 0.0
  %332 = vst.msk [vmem:[#allocation5 + $0xf0] sm:$0xff] %vm20, 0.0
  %333 = vst.msk [vmem:[#allocation5 + $0xf8] sm:$0xff] %vm20, 0.0
  %334 = vst.msk [vmem:[#allocation5 + $0x100] sm:$0xff] %vm20, 0.0
  %335 = vst.msk [vmem:[#allocation5 + $0x108] sm:$0xff] %vm20, 0.0
  %336 = vst.msk [vmem:[#allocation5 + $0x110] sm:$0xff] %vm20, 0.0
  %337 = vst.msk [vmem:[#allocation5 + $0x118] sm:$0xff] %vm20, 0.0
  %338 = vst.msk [vmem:[#allocation5 + $0x120] sm:$0xff] %vm20, 0.0
  %339 = vst.msk [vmem:[#allocation5 + $0x128] sm:$0xff] %vm20, 0.0
  %340 = vst.msk [vmem:[#allocation5 + $0x130] sm:$0xff] %vm20, 0.0
  %341 = vst.msk [vmem:[#allocation5 + $0x138] sm:$0xff] %vm20, 0.0
  %342 = vst.msk [vmem:[#allocation5 + $0x140] sm:$0xff] %vm20, 0.0
  %343 = vst.msk [vmem:[#allocation5 + $0x148] sm:$0xff] %vm20, 0.0
  %344 = vst.msk [vmem:[#allocation5 + $0x150] sm:$0xff] %vm20, 0.0
  %345 = vst.msk [vmem:[#allocation5 + $0x158] sm:$0xff] %vm20, 0.0
  %346 = vst.msk [vmem:[#allocation5 + $0x160] sm:$0xff] %vm20, 0.0
  %347 = vst.msk [vmem:[#allocation5 + $0x168] sm:$0xff] %vm20, 0.0
  %348 = vst.msk [vmem:[#allocation5 + $0x170] sm:$0xff] %vm20, 0.0
  %349 = vst.msk [vmem:[#allocation5 + $0x178] sm:$0xff] %vm20, 0.0
  %v350 = vld [vmem:[%s1] sm:$0xff]
  %v351 = vld [vmem:[%s1 + $0x8] sm:$0x3]
  %352 = vst.msk [vmem:[#allocation5 + $0x1] sm:$0xff] %vm20, %v350
  %vm353 = vcmask 58368
  %354 = vst.msk [vmem:[#allocation5 + $0x9] sm:$0x3] %vm353, %v351
  %s355 = scalar_lea.vmem %s1, 16
  %v356 = vld [vmem:[%s355] sm:$0xff]
  %v357 = vld [vmem:[%s355 + $0x8] sm:$0x3]
  %358 = vst.msk [vmem:[#allocation5 + $0xd] sm:$0xff] %vm20, %v356
  %359 = vst.msk [vmem:[#allocation5 + $0x15] sm:$0x3] %vm353, %v357
  %s360 = scalar_lea.vmem %s1, 32
  %v361 = vld [vmem:[%s360] sm:$0xff]
  %v362 = vld [vmem:[%s360 + $0x8] sm:$0x3]
  %363 = vst.msk [vmem:[#allocation5 + $0x19] sm:$0xff] %vm20, %v361
  %364 = vst.msk [vmem:[#allocation5 + $0x21] sm:$0x3] %vm353, %v362
  %s365 = scalar_lea.vmem %s1, 48
  %v366 = vld [vmem:[%s365] sm:$0xff]
  %v367 = vld [vmem:[%s365 + $0x8] sm:$0x3]
  %368 = vst.msk [vmem:[#allocation5 + $0x25] sm:$0xff] %vm20, %v366
  %369 = vst.msk [vmem:[#allocation5 + $0x2d] sm:$0x3] %vm353, %v367
  %s370 = scalar_lea.vmem %s1, 64
  %v371 = vld [vmem:[%s370] sm:$0xff]
  %v372 = vld [vmem:[%s370 + $0x8] sm:$0x3]
  %373 = vst.msk [vmem:[#allocation5 + $0x31] sm:$0xff] %vm20, %v371
  %374 = vst.msk [vmem:[#allocation5 + $0x39] sm:$0x3] %vm353, %v372
  %s375 = scalar_lea.vmem %s1, 80
  %v376 = vld [vmem:[%s375] sm:$0xff]
  %v377 = vld [vmem:[%s375 + $0x8] sm:$0x3]
  %378 = vst.msk [vmem:[#allocation5 + $0x3d] sm:$0xff] %vm20, %v376
  %379 = vst.msk [vmem:[#allocation5 + $0x45] sm:$0x3] %vm353, %v377
  %s380 = scalar_lea.vmem %s1, 96
  %v381 = vld [vmem:[%s380] sm:$0xff]
  %v382 = vld [vmem:[%s380 + $0x8] sm:$0x3]
  %383 = vst.msk [vmem:[#allocation5 + $0x49] sm:$0xff] %vm20, %v381
  %384 = vst.msk [vmem:[#allocation5 + $0x51] sm:$0x3] %vm353, %v382
  %s385 = scalar_lea.vmem %s1, 112
  %v386 = vld [vmem:[%s385] sm:$0xff]
  %v387 = vld [vmem:[%s385 + $0x8] sm:$0x3]
  %388 = vst.msk [vmem:[#allocation5 + $0x55] sm:$0xff] %vm20, %v386
  %389 = vst.msk [vmem:[#allocation5 + $0x5d] sm:$0x3] %vm353, %v387
  %s390 = scalar_lea.vmem %s1, 128
  %v391 = vld [vmem:[%s390] sm:$0xff]
  %v392 = vld [vmem:[%s390 + $0x8] sm:$0x3]
  %393 = vst.msk [vmem:[#allocation5 + $0x61] sm:$0xff] %vm20, %v391
  %394 = vst.msk [vmem:[#allocation5 + $0x69] sm:$0x3] %vm353, %v392
  %s395 = scalar_lea.vmem %s1, 144
  %v396 = vld [vmem:[%s395] sm:$0xff]
  %v397 = vld [vmem:[%s395 + $0x8] sm:$0x3]
  %398 = vst.msk [vmem:[#allocation5 + $0x6d] sm:$0xff] %vm20, %v396
  %399 = vst.msk [vmem:[#allocation5 + $0x75] sm:$0x3] %vm353, %v397
  %s400 = scalar_lea.vmem %s1, 160
  %v401 = vld [vmem:[%s400] sm:$0xff]
  %v402 = vld [vmem:[%s400 + $0x8] sm:$0x3]
  %403 = vst.msk [vmem:[#allocation5 + $0x79] sm:$0xff] %vm20, %v401
  %404 = vst.msk [vmem:[#allocation5 + $0x81] sm:$0x3] %vm353, %v402
  %s405 = scalar_lea.vmem %s1, 176
  %v406 = vld [vmem:[%s405] sm:$0xff]
  %v407 = vld [vmem:[%s405 + $0x8] sm:$0x3]
  %408 = vst.msk [vmem:[#allocation5 + $0x85] sm:$0xff] %vm20, %v406
  %409 = vst.msk [vmem:[#allocation5 + $0x8d] sm:$0x3] %vm353, %v407
  %s410 = scalar_lea.vmem %s1, 192
  %v411 = vld [vmem:[%s410] sm:$0xff]
  %v412 = vld [vmem:[%s410 + $0x8] sm:$0x3]
  %413 = vst.msk [vmem:[#allocation5 + $0x91] sm:$0xff] %vm20, %v411
  %414 = vst.msk [vmem:[#allocation5 + $0x99] sm:$0x3] %vm353, %v412
  %s415 = scalar_lea.vmem %s1, 208
  %v416 = vld [vmem:[%s415] sm:$0xff]
  %v417 = vld [vmem:[%s415 + $0x8] sm:$0x3]
  %418 = vst.msk [vmem:[#allocation5 + $0x9d] sm:$0xff] %vm20, %v416
  %419 = vst.msk [vmem:[#allocation5 + $0xa5] sm:$0x3] %vm353, %v417
  %s420 = scalar_lea.vmem %s1, 224
  %v421 = vld [vmem:[%s420] sm:$0xff]
  %v422 = vld [vmem:[%s420 + $0x8] sm:$0x3]
  %423 = vst.msk [vmem:[#allocation5 + $0xa9] sm:$0xff] %vm20, %v421
  %424 = vst.msk [vmem:[#allocation5 + $0xb1] sm:$0x3] %vm353, %v422
  %s425 = scalar_lea.vmem %s1, 240
  %v426 = vld [vmem:[%s425] sm:$0xff]
  %v427 = vld [vmem:[%s425 + $0x8] sm:$0x3]
  %428 = vst.msk [vmem:[#allocation5 + $0xb5] sm:$0xff] %vm20, %v426
  %429 = vst.msk [vmem:[#allocation5 + $0xbd] sm:$0x3] %vm353, %v427
  %s430 = scalar_lea.vmem %s1, 256
  %v431 = vld [vmem:[%s430] sm:$0xff]
  %v432 = vld [vmem:[%s430 + $0x8] sm:$0x3]
  %433 = vst.msk [vmem:[#allocation5 + $0xc1] sm:$0xff] %vm20, %v431
  %434 = vst.msk [vmem:[#allocation5 + $0xc9] sm:$0x3] %vm353, %v432
  %s435 = scalar_lea.vmem %s1, 272
  %v436 = vld [vmem:[%s435] sm:$0xff]
  %v437 = vld [vmem:[%s435 + $0x8] sm:$0x3]
  %438 = vst.msk [vmem:[#allocation5 + $0xcd] sm:$0xff] %vm20, %v436
  %439 = vst.msk [vmem:[#allocation5 + $0xd5] sm:$0x3] %vm353, %v437
  %s440 = scalar_lea.vmem %s1, 288
  %v441 = vld [vmem:[%s440] sm:$0xff]
  %v442 = vld [vmem:[%s440 + $0x8] sm:$0x3]
  %443 = vst.msk [vmem:[#allocation5 + $0xd9] sm:$0xff] %vm20, %v441
  %444 = vst.msk [vmem:[#allocation5 + $0xe1] sm:$0x3] %vm353, %v442
  %s445 = scalar_lea.vmem %s1, 304
  %v446 = vld [vmem:[%s445] sm:$0xff]
  %v447 = vld [vmem:[%s445 + $0x8] sm:$0x3]
  %448 = vst.msk [vmem:[#allocation5 + $0xe5] sm:$0xff] %vm20, %v446
  %449 = vst.msk [vmem:[#allocation5 + $0xed] sm:$0x3] %vm353, %v447
  %s450 = scalar_lea.vmem %s1, 320
  %v451 = vld [vmem:[%s450] sm:$0xff]
  %v452 = vld [vmem:[%s450 + $0x8] sm:$0x3]
  %453 = vst.msk [vmem:[#allocation5 + $0xf1] sm:$0xff] %vm20, %v451
  %454 = vst.msk [vmem:[#allocation5 + $0xf9] sm:$0x3] %vm353, %v452
  %s455 = scalar_lea.vmem %s1, 336
  %v456 = vld [vmem:[%s455] sm:$0xff]
  %v457 = vld [vmem:[%s455 + $0x8] sm:$0x3]
  %458 = vst.msk [vmem:[#allocation5 + $0xfd] sm:$0xff] %vm20, %v456
  %459 = vst.msk [vmem:[#allocation5 + $0x105] sm:$0x3] %vm353, %v457
  %s460 = scalar_lea.vmem %s1, 352
  %v461 = vld [vmem:[%s460] sm:$0xff]
  %v462 = vld [vmem:[%s460 + $0x8] sm:$0x3]
  %463 = vst.msk [vmem:[#allocation5 + $0x109] sm:$0xff] %vm20, %v461
  %464 = vst.msk [vmem:[#allocation5 + $0x111] sm:$0x3] %vm353, %v462
  %s465 = scalar_lea.vmem %s1, 368
  %v466 = vld [vmem:[%s465] sm:$0xff]
  %v467 = vld [vmem:[%s465 + $0x8] sm:$0x3]
  %468 = vst.msk [vmem:[#allocation5 + $0x115] sm:$0xff] %vm20, %v466
  %469 = vst.msk [vmem:[#allocation5 + $0x11d] sm:$0x3] %vm353, %v467
  %s470 = scalar_lea.vmem %s1, 384
  %v471 = vld [vmem:[%s470] sm:$0xff]
  %v472 = vld [vmem:[%s470 + $0x8] sm:$0x3]
  %473 = vst.msk [vmem:[#allocation5 + $0x121] sm:$0xff] %vm20, %v471
  %474 = vst.msk [vmem:[#allocation5 + $0x129] sm:$0x3] %vm353, %v472
  %s475 = scalar_lea.vmem %s1, 400
  %v476 = vld [vmem:[%s475] sm:$0xff]
  %v477 = vld [vmem:[%s475 + $0x8] sm:$0x3]
  %478 = vst.msk [vmem:[#allocation5 + $0x12d] sm:$0xff] %vm20, %v476
  %479 = vst.msk [vmem:[#allocation5 + $0x135] sm:$0x3] %vm353, %v477
  %s480 = scalar_lea.vmem %s1, 416
  %v481 = vld [vmem:[%s480] sm:$0xff]
  %v482 = vld [vmem:[%s480 + $0x8] sm:$0x3]
  %483 = vst.msk [vmem:[#allocation5 + $0x139] sm:$0xff] %vm20, %v481
  %484 = vst.msk [vmem:[#allocation5 + $0x141] sm:$0x3] %vm353, %v482
  %s485 = scalar_lea.vmem %s1, 432
  %v486 = vld [vmem:[%s485] sm:$0xff]
  %v487 = vld [vmem:[%s485 + $0x8] sm:$0x3]
  %488 = vst.msk [vmem:[#allocation5 + $0x145] sm:$0xff] %vm20, %v486
  %489 = vst.msk [vmem:[#allocation5 + $0x14d] sm:$0x3] %vm353, %v487
  %s490 = scalar_lea.vmem %s1, 448
  %v491 = vld [vmem:[%s490] sm:$0xff]
  %v492 = vld [vmem:[%s490 + $0x8] sm:$0x3]
  %493 = vst.msk [vmem:[#allocation5 + $0x151] sm:$0xff] %vm20, %v491
  %494 = vst.msk [vmem:[#allocation5 + $0x159] sm:$0x3] %vm353, %v492
  %s495 = scalar_lea.vmem %s1, 464
  %v496 = vld [vmem:[%s495] sm:$0xff]
  %v497 = vld [vmem:[%s495 + $0x8] sm:$0x3]
  %498 = vst.msk [vmem:[#allocation5 + $0x15d] sm:$0xff] %vm20, %v496
  %499 = vst.msk [vmem:[#allocation5 + $0x165] sm:$0x3] %vm353, %v497
  %s500 = scalar_lea.vmem %s1, 480
  %v501 = vld [vmem:[%s500] sm:$0xff]
  %v502 = vld [vmem:[%s500 + $0x8] sm:$0x3]
  %503 = vst.msk [vmem:[#allocation5 + $0x169] sm:$0xff] %vm20, %v501
  %504 = vst.msk [vmem:[#allocation5 + $0x171] sm:$0x3] %vm353, %v502
  %s505 = scalar_lea.vmem %s1, 496
  %v506 = vld [vmem:[%s505] sm:$0xff]
  %v507 = vld [vmem:[%s505 + $0x8] sm:$0x3]
  %508 = vst.msk [vmem:[#allocation5 + $0x175] sm:$0xff] %vm20, %v506
  %509 = vst.msk [vmem:[#allocation5 + $0x17d] sm:$0x3] %vm353, %v507
  %v510 = vld [vmem:[#allocation5] sm:$0xff]
  %v511 = vld [vmem:[#allocation5 + $0x8] sm:$0xff]
  %v512 = vld [vmem:[#allocation5 + $0x10] sm:$0xff]
  %v513 = vld [vmem:[#allocation5 + $0x18] sm:$0xff]
  %v514 = vld [vmem:[#allocation5 + $0x20] sm:$0xff]
  %v515 = vld [vmem:[#allocation5 + $0x28] sm:$0xff]
  %v516 = vld [vmem:[#allocation5 + $0x30] sm:$0xff]
  %v517 = vld [vmem:[#allocation5 + $0x38] sm:$0xff]
  %v518 = vld [vmem:[#allocation5 + $0x40] sm:$0xff]
  %v519 = vld [vmem:[#allocation5 + $0x48] sm:$0xff]
  %v520 = vld [vmem:[#allocation5 + $0x50] sm:$0xff]
  %v521 = vld [vmem:[#allocation5 + $0x58] sm:$0xff]
  %v522 = vld [vmem:[#allocation5 + $0x60] sm:$0xff]
  %v523 = vld [vmem:[#allocation5 + $0x68] sm:$0xff]
  %v524 = vld [vmem:[#allocation5 + $0x70] sm:$0xff]
  %v525 = vld [vmem:[#allocation5 + $0x78] sm:$0xff]
  %v526 = vld [vmem:[#allocation5 + $0x80] sm:$0xff]
  %v527 = vld [vmem:[#allocation5 + $0x88] sm:$0xff]
  %v528 = vld [vmem:[#allocation5 + $0x90] sm:$0xff]
  %v529 = vld [vmem:[#allocation5 + $0x98] sm:$0xff]
  %v530 = vld [vmem:[#allocation5 + $0xa0] sm:$0xff]
  %v531 = vld [vmem:[#allocation5 + $0xa8] sm:$0xff]
  %v532 = vld [vmem:[#allocation5 + $0xb0] sm:$0xff]
  %v533 = vld [vmem:[#allocation5 + $0xb8] sm:$0xff]
  %v534 = vld [vmem:[#allocation5 + $0xc0] sm:$0xff]
  %v535 = vld [vmem:[#allocation5 + $0xc8] sm:$0xff]
  %v536 = vld [vmem:[#allocation5 + $0xd0] sm:$0xff]
  %v537 = vld [vmem:[#allocation5 + $0xd8] sm:$0xff]
  %v538 = vld [vmem:[#allocation5 + $0xe0] sm:$0xff]
  %v539 = vld [vmem:[#allocation5 + $0xe8] sm:$0xff]
  %v540 = vld [vmem:[#allocation5 + $0xf0] sm:$0xff]
  %v541 = vld [vmem:[#allocation5 + $0xf8] sm:$0xff]
  %v542 = vld [vmem:[#allocation5 + $0x100] sm:$0xff]
  %v543 = vld [vmem:[#allocation5 + $0x108] sm:$0xff]
  %v544 = vld [vmem:[#allocation5 + $0x110] sm:$0xff]
  %v545 = vld [vmem:[#allocation5 + $0x118] sm:$0xff]
  %v546 = vld [vmem:[#allocation5 + $0x120] sm:$0xff]
  %v547 = vld [vmem:[#allocation5 + $0x128] sm:$0xff]
  %v548 = vld [vmem:[#allocation5 + $0x130] sm:$0xff]
  %v549 = vld [vmem:[#allocation5 + $0x138] sm:$0xff]
  %v550 = vld [vmem:[#allocation5 + $0x140] sm:$0xff]
  %v551 = vld [vmem:[#allocation5 + $0x148] sm:$0xff]
  %v552 = vld [vmem:[#allocation5 + $0x150] sm:$0xff]
  %v553 = vld [vmem:[#allocation5 + $0x158] sm:$0xff]
  %v554 = vld [vmem:[#allocation5 + $0x160] sm:$0xff]
  %v555 = vld [vmem:[#allocation5 + $0x168] sm:$0xff]
  %v556 = vld [vmem:[#allocation5 + $0x170] sm:$0xff]
  %v557 = vld [vmem:[#allocation5 + $0x178] sm:$0xff]
  %v558 = vld [vmem:[%s2] sm:$0xff]
  %v560 = vsel %vm20, %v510, 0
  %v563 = vsel %vm20, %v511, 0
  %v566 = vsel %vm20, %v512, 0
  %v569 = vsel %vm20, %v513, 0
  %v572 = vsel %vm20, %v514, 0
  %v575 = vsel %vm20, %v515, 0
  %v578 = vsel %vm20, %v516, 0
  %v581 = vsel %vm20, %v517, 0
  %v584 = vsel %vm20, %v518, 0
  %v587 = vsel %vm20, %v519, 0
  %v590 = vsel %vm20, %v520, 0
  %v593 = vsel %vm20, %v521, 0
  %v596 = vsel %vm20, %v522, 0
  %v599 = vsel %vm20, %v523, 0
  %v602 = vsel %vm20, %v524, 0
  %v605 = vsel %vm20, %v525, 0
  %v608 = vsel %vm20, %v526, 0
  %v611 = vsel %vm20, %v527, 0
  %v614 = vsel %vm20, %v528, 0
  %v617 = vsel %vm20, %v529, 0
  %v620 = vsel %vm20, %v530, 0
  %v623 = vsel %vm20, %v531, 0
  %v626 = vsel %vm20, %v532, 0
  %v629 = vsel %vm20, %v533, 0
  %v632 = vsel %vm20, %v534, 0
  %v635 = vsel %vm20, %v535, 0
  %v638 = vsel %vm20, %v536, 0
  %v641 = vsel %vm20, %v537, 0
  %v644 = vsel %vm20, %v538, 0
  %v647 = vsel %vm20, %v539, 0
  %v650 = vsel %vm20, %v540, 0
  %v653 = vsel %vm20, %v541, 0
  %v656 = vsel %vm20, %v542, 0
  %v659 = vsel %vm20, %v543, 0
  %v662 = vsel %vm20, %v544, 0
  %v665 = vsel %vm20, %v545, 0
  %v668 = vsel %vm20, %v546, 0
  %v671 = vsel %vm20, %v547, 0
  %v674 = vsel %vm20, %v548, 0
  %v677 = vsel %vm20, %v549, 0
  %v680 = vsel %vm20, %v550, 0
  %v683 = vsel %vm20, %v551, 0
  %v686 = vsel %vm20, %v552, 0
  %v689 = vsel %vm20, %v553, 0
  %v692 = vsel %vm20, %v554, 0
  %v695 = vsel %vm20, %v555, 0
  %v698 = vsel %vm20, %v556, 0
  %v701 = vsel %vm20, %v557, 0
  %703 = vmatprep.subr.mxu0 0.0
  %704 = vmatpush1.msra.mxu0 %v558
  %705 = vmatprep.subr.mxu0 0.0
  %706 = vmatpush1.msra.mxu0 0.0
  %707 = vmatprep.subr.mxu0 0.0
  %708 = vmatpush1.msra.mxu0 0.0
  %709 = vmatprep.subr.mxu0 0.0
  %710 = vmatpush1.msra.mxu0 0.0
  %711 = vmatprep.subr.mxu0 0.0
  %712 = vmatpush1.msra.mxu0 0.0
  %713 = vmatprep.subr.mxu0 0.0
  %714 = vmatpush1.msra.mxu0 0.0
  %715 = vmatprep.subr.mxu0 0.0
  %716 = vmatpush1.msra.mxu0 0.0
  %717 = vmatprep.subr.mxu0 0.0
  %718 = vmatpush1.msra.mxu0 0.0
  %719 = vmatprep.subr.mxu0 0.0
  %720 = vmatpush1.msra.mxu0 0.0
  %721 = vmatprep.subr.mxu0 0.0
  %722 = vmatpush1.msra.mxu0 0.0
  %723 = vmatprep.subr.mxu0 0.0
  %724 = vmatpush1.msra.mxu0 0.0
  %725 = vmatprep.subr.mxu0 0.0
  %726 = vmatpush1.msra.mxu0 0.0
  %727 = vmatprep.subr.mxu0 0.0
  %728 = vmatpush1.msra.mxu0 0.0
  %729 = vmatprep.subr.mxu0 0.0
  %730 = vmatpush1.msra.mxu0 0.0
  %731 = vmatprep.subr.mxu0 0.0
  %732 = vmatpush1.msra.mxu0 0.0
  %733 = vmatprep.subr.mxu0 0.0
  %734 = vmatpush1.msra.mxu0 0.0
  %735 = vmatprep.subr.mxu0 0.0
  %736 = vmatpush1.msra.mxu0 0.0
  %737 = vmatprep.subr.mxu0 0.0
  %738 = vmatpush1.msra.mxu0 0.0
  %739 = vmatprep.subr.mxu0 0.0
  %740 = vmatpush1.msra.mxu0 0.0
  %741 = vmatprep.subr.mxu0 0.0
  %742 = vmatpush1.msra.mxu0 0.0
  %743 = vmatprep.subr.mxu0 0.0
  %744 = vmatpush1.msra.mxu0 0.0
  %745 = vmatprep.subr.mxu0 0.0
  %746 = vmatpush1.msra.mxu0 0.0
  %747 = vmatprep.subr.mxu0 0.0
  %748 = vmatpush1.msra.mxu0 0.0
  %749 = vmatprep.subr.mxu0 0.0
  %750 = vmatpush1.msra.mxu0 0.0
  %751 = vmatprep.subr.mxu0 0.0
  %752 = vmatpush1.msra.mxu0 0.0
  %753 = vmatprep.subr.mxu0 0.0
  %754 = vmatpush1.msra.mxu0 0.0
  %755 = vmatprep.subr.mxu0 0.0
  %756 = vmatpush1.msra.mxu0 0.0
  %757 = vmatprep.subr.mxu0 0.0
  %758 = vmatpush1.msra.mxu0 0.0
  %759 = vmatprep.subr.mxu0 0.0
  %760 = vmatpush1.msra.mxu0 0.0
  %761 = vmatprep.subr.mxu0 0.0
  %762 = vmatpush1.msra.mxu0 0.0
  %763 = vmatprep.subr.mxu0 0.0
  %764 = vmatpush1.msra.mxu0 0.0
  %765 = vmatprep.subr.mxu0 0.0
  %766 = vmatpush1.msra.mxu0 0.0
  %767 = vmatprep.mubr.f32.mxu0 0.0
  %768 = vmatmul.mubr.f32.gmra.mrb[0].mxu0 %v560
  %v769 = vpop.f32.mrb[0].mxu0
  %v770 = vadd.f32 0.0, %v769
  %v771 = vpop.f32.mrb[0].mxu0
  %772 = vmatprep.mubr.f32.mxu0 0.0
  %773 = vmatmul.mubr.f32.gmra.mrb[0].mxu0 %v563
  %v774 = vpop.f32.mrb[0].mxu0
  %v775 = vadd.f32 0.0, %v774
  %v776 = vpop.f32.mrb[0].mxu0
  %777 = vmatprep.mubr.f32.mxu0 0.0
  %778 = vmatmul.mubr.f32.gmra.mrb[0].mxu0 %v566
  %v779 = vpop.f32.mrb[0].mxu0
  %v780 = vadd.f32 0.0, %v779
  %v781 = vpop.f32.mrb[0].mxu0
  %782 = vmatprep.mubr.f32.mxu0 0.0
  %783 = vmatmul.mubr.f32.gmra.mrb[0].mxu0 %v569
  %v784 = vpop.f32.mrb[0].mxu0
  %v785 = vadd.f32 0.0, %v784
  %v786 = vpop.f32.mrb[0].mxu0
  %787 = vmatprep.mubr.f32.mxu0 0.0
  %788 = vmatmul.mubr.f32.gmra.mrb[0].mxu0 %v572
  %v789 = vpop.f32.mrb[0].mxu0
  %v790 = vadd.f32 0.0, %v789
  %v791 = vpop.f32.mrb[0].mxu0
  %792 = vmatprep.mubr.f32.mxu0 0.0
  %793 = vmatmul.mubr.f32.gmra.mrb[0].mxu0 %v575
  %v794 = vpop.f32.mrb[0].mxu0
  %v795 = vadd.f32 0.0, %v794
  %v796 = vpop.f32.mrb[0].mxu0
  %797 = vmatprep.mubr.f32.mxu0 0.0
  %798 = vmatmul.mubr.f32.gmra.mrb[0].mxu0 %v578
  %v799 = vpop.f32.mrb[0].mxu0
  %v800 = vadd.f32 0.0, %v799
  %v801 = vpop.f32.mrb[0].mxu0
  %802 = vmatprep.mubr.f32.mxu0 0.0
  %803 = vmatmul.mubr.f32.gmra.mrb[0].mxu0 %v581
  %v804 = vpop.f32.mrb[0].mxu0
  %v805 = vadd.f32 0.0, %v804
  %v806 = vpop.f32.mrb[0].mxu0
  %807 = vmatprep.mubr.f32.mxu0 0.0
  %808 = vmatmul.mubr.f32.gmra.mrb[0].mxu0 %v584
  %v809 = vpop.f32.mrb[0].mxu0
  %v810 = vadd.f32 0.0, %v809
  %v811 = vpop.f32.mrb[0].mxu0
  %812 = vmatprep.mubr.f32.mxu0 0.0
  %813 = vmatmul.mubr.f32.gmra.mrb[0].mxu0 %v587
  %v814 = vpop.f32.mrb[0].mxu0
  %v815 = vadd.f32 0.0, %v814
  %v816 = vpop.f32.mrb[0].mxu0
  %817 = vmatprep.mubr.f32.mxu0 0.0
  %818 = vmatmul.mubr.f32.gmra.mrb[0].mxu0 %v590
  %v819 = vpop.f32.mrb[0].mxu0
  %v820 = vadd.f32 0.0, %v819
  %v821 = vpop.f32.mrb[0].mxu0
  %822 = vmatprep.mubr.f32.mxu0 0.0
  %823 = vmatmul.mubr.f32.gmra.mrb[0].mxu0 %v593
  %v824 = vpop.f32.mrb[0].mxu0
  %v825 = vadd.f32 0.0, %v824
  %v826 = vpop.f32.mrb[0].mxu0
  %827 = vmatprep.mubr.f32.mxu0 0.0
  %828 = vmatmul.mubr.f32.gmra.mrb[0].mxu0 %v596
  %v829 = vpop.f32.mrb[0].mxu0
  %v830 = vadd.f32 0.0, %v829
  %v831 = vpop.f32.mrb[0].mxu0
  %832 = vmatprep.mubr.f32.mxu0 0.0
  %833 = vmatmul.mubr.f32.gmra.mrb[0].mxu0 %v599
  %v834 = vpop.f32.mrb[0].mxu0
  %v835 = vadd.f32 0.0, %v834
  %v836 = vpop.f32.mrb[0].mxu0
  %837 = vmatprep.mubr.f32.mxu0 0.0
  %838 = vmatmul.mubr.f32.gmra.mrb[0].mxu0 %v602
  %v839 = vpop.f32.mrb[0].mxu0
  %v840 = vadd.f32 0.0, %v839
  %v841 = vpop.f32.mrb[0].mxu0
  %842 = vmatprep.mubr.f32.mxu0 0.0
  %843 = vmatmul.mubr.f32.gmra.mrb[0].mxu0 %v605
  %v844 = vpop.f32.mrb[0].mxu0
  %v845 = vadd.f32 0.0, %v844
  %v846 = vpop.f32.mrb[0].mxu0
  %847 = vmatprep.mubr.f32.mxu0 0.0
  %848 = vmatmul.mubr.f32.gmra.mrb[0].mxu0 %v608
  %v849 = vpop.f32.mrb[0].mxu0
  %v850 = vadd.f32 0.0, %v849
  %v851 = vpop.f32.mrb[0].mxu0
  %852 = vmatprep.mubr.f32.mxu0 0.0
  %853 = vmatmul.mubr.f32.gmra.mrb[0].mxu0 %v611
  %v854 = vpop.f32.mrb[0].mxu0
  %v855 = vadd.f32 0.0, %v854
  %v856 = vpop.f32.mrb[0].mxu0
  %857 = vmatprep.mubr.f32.mxu0 0.0
  %858 = vmatmul.mubr.f32.gmra.mrb[0].mxu0 %v614
  %v859 = vpop.f32.mrb[0].mxu0
  %v860 = vadd.f32 0.0, %v859
  %v861 = vpop.f32.mrb[0].mxu0
  %862 = vmatprep.mubr.f32.mxu0 0.0
  %863 = vmatmul.mubr.f32.gmra.mrb[0].mxu0 %v617
  %v864 = vpop.f32.mrb[0].mxu0
  %v865 = vadd.f32 0.0, %v864
  %v866 = vpop.f32.mrb[0].mxu0
  %867 = vmatprep.mubr.f32.mxu0 0.0
  %868 = vmatmul.mubr.f32.gmra.mrb[0].mxu0 %v620
  %v869 = vpop.f32.mrb[0].mxu0
  %v870 = vadd.f32 0.0, %v869
  %v871 = vpop.f32.mrb[0].mxu0
  %872 = vmatprep.mubr.f32.mxu0 0.0
  %873 = vmatmul.mubr.f32.gmra.mrb[0].mxu0 %v623
  %v874 = vpop.f32.mrb[0].mxu0
  %v875 = vadd.f32 0.0, %v874
  %v876 = vpop.f32.mrb[0].mxu0
  %877 = vmatprep.mubr.f32.mxu0 0.0
  %878 = vmatmul.mubr.f32.gmra.mrb[0].mxu0 %v626
  %v879 = vpop.f32.mrb[0].mxu0
  %v880 = vadd.f32 0.0, %v879
  %v881 = vpop.f32.mrb[0].mxu0
  %882 = vmatprep.mubr.f32.mxu0 0.0
  %883 = vmatmul.mubr.f32.gmra.mrb[0].mxu0 %v629
  %v884 = vpop.f32.mrb[0].mxu0
  %v885 = vadd.f32 0.0, %v884
  %v886 = vpop.f32.mrb[0].mxu0
  %887 = vmatprep.mubr.f32.mxu0 0.0
  %888 = vmatmul.mubr.f32.gmra.mrb[0].mxu0 %v632
  %v889 = vpop.f32.mrb[0].mxu0
  %v890 = vadd.f32 0.0, %v889
  %v891 = vpop.f32.mrb[0].mxu0
  %892 = vmatprep.mubr.f32.mxu0 0.0
  %893 = vmatmul.mubr.f32.gmra.mrb[0].mxu0 %v635
  %v894 = vpop.f32.mrb[0].mxu0
  %v895 = vadd.f32 0.0, %v894
  %v896 = vpop.f32.mrb[0].mxu0
  %897 = vmatprep.mubr.f32.mxu0 0.0
  %898 = vmatmul.mubr.f32.gmra.mrb[0].mxu0 %v638
  %v899 = vpop.f32.mrb[0].mxu0
  %v900 = vadd.f32 0.0, %v899
  %v901 = vpop.f32.mrb[0].mxu0
  %902 = vmatprep.mubr.f32.mxu0 0.0
  %903 = vmatmul.mubr.f32.gmra.mrb[0].mxu0 %v641
  %v904 = vpop.f32.mrb[0].mxu0
  %v905 = vadd.f32 0.0, %v904
  %v906 = vpop.f32.mrb[0].mxu0
  %907 = vmatprep.mubr.f32.mxu0 0.0
  %908 = vmatmul.mubr.f32.gmra.mrb[0].mxu0 %v644
  %v909 = vpop.f32.mrb[0].mxu0
  %v910 = vadd.f32 0.0, %v909
  %v911 = vpop.f32.mrb[0].mxu0
  %912 = vmatprep.mubr.f32.mxu0 0.0
  %913 = vmatmul.mubr.f32.gmra.mrb[0].mxu0 %v647
  %v914 = vpop.f32.mrb[0].mxu0
  %v915 = vadd.f32 0.0, %v914
  %v916 = vpop.f32.mrb[0].mxu0
  %917 = vmatprep.mubr.f32.mxu0 0.0
  %918 = vmatmul.mubr.f32.gmra.mrb[0].mxu0 %v650
  %v919 = vpop.f32.mrb[0].mxu0
  %v920 = vadd.f32 0.0, %v919
  %v921 = vpop.f32.mrb[0].mxu0
  %922 = vmatprep.mubr.f32.mxu0 0.0
  %923 = vmatmul.mubr.f32.gmra.mrb[0].mxu0 %v653
  %v924 = vpop.f32.mrb[0].mxu0
  %v925 = vadd.f32 0.0, %v924
  %v926 = vpop.f32.mrb[0].mxu0
  %927 = vmatprep.mubr.f32.mxu0 0.0
  %928 = vmatmul.mubr.f32.gmra.mrb[0].mxu0 %v656
  %v929 = vpop.f32.mrb[0].mxu0
  %v930 = vadd.f32 0.0, %v929
  %v931 = vpop.f32.mrb[0].mxu0
  %932 = vmatprep.mubr.f32.mxu0 0.0
  %933 = vmatmul.mubr.f32.gmra.mrb[0].mxu0 %v659
  %v934 = vpop.f32.mrb[0].mxu0
  %v935 = vadd.f32 0.0, %v934
  %v936 = vpop.f32.mrb[0].mxu0
  %937 = vmatprep.mubr.f32.mxu0 0.0
  %938 = vmatmul.mubr.f32.gmra.mrb[0].mxu0 %v662
  %v939 = vpop.f32.mrb[0].mxu0
  %v940 = vadd.f32 0.0, %v939
  %v941 = vpop.f32.mrb[0].mxu0
  %942 = vmatprep.mubr.f32.mxu0 0.0
  %943 = vmatmul.mubr.f32.gmra.mrb[0].mxu0 %v665
  %v944 = vpop.f32.mrb[0].mxu0
  %v945 = vadd.f32 0.0, %v944
  %v946 = vpop.f32.mrb[0].mxu0
  %947 = vmatprep.mubr.f32.mxu0 0.0
  %948 = vmatmul.mubr.f32.gmra.mrb[0].mxu0 %v668
  %v949 = vpop.f32.mrb[0].mxu0
  %v950 = vadd.f32 0.0, %v949
  %v951 = vpop.f32.mrb[0].mxu0
  %952 = vmatprep.mubr.f32.mxu0 0.0
  %953 = vmatmul.mubr.f32.gmra.mrb[0].mxu0 %v671
  %v954 = vpop.f32.mrb[0].mxu0
  %v955 = vadd.f32 0.0, %v954
  %v956 = vpop.f32.mrb[0].mxu0
  %957 = vmatprep.mubr.f32.mxu0 0.0
  %958 = vmatmul.mubr.f32.gmra.mrb[0].mxu0 %v674
  %v959 = vpop.f32.mrb[0].mxu0
  %v960 = vadd.f32 0.0, %v959
  %v961 = vpop.f32.mrb[0].mxu0
  %962 = vmatprep.mubr.f32.mxu0 0.0
  %963 = vmatmul.mubr.f32.gmra.mrb[0].mxu0 %v677
  %v964 = vpop.f32.mrb[0].mxu0
  %v965 = vadd.f32 0.0, %v964
  %v966 = vpop.f32.mrb[0].mxu0
  %967 = vmatprep.mubr.f32.mxu0 0.0
  %968 = vmatmul.mubr.f32.gmra.mrb[0].mxu0 %v680
  %v969 = vpop.f32.mrb[0].mxu0
  %v970 = vadd.f32 0.0, %v969
  %v971 = vpop.f32.mrb[0].mxu0
  %972 = vmatprep.mubr.f32.mxu0 0.0
  %973 = vmatmul.mubr.f32.gmra.mrb[0].mxu0 %v683
  %v974 = vpop.f32.mrb[0].mxu0
  %v975 = vadd.f32 0.0, %v974
  %v976 = vpop.f32.mrb[0].mxu0
  %977 = vmatprep.mubr.f32.mxu0 0.0
  %978 = vmatmul.mubr.f32.gmra.mrb[0].mxu0 %v686
  %v979 = vpop.f32.mrb[0].mxu0
  %v980 = vadd.f32 0.0, %v979
  %v981 = vpop.f32.mrb[0].mxu0
  %982 = vmatprep.mubr.f32.mxu0 0.0
  %983 = vmatmul.mubr.f32.gmra.mrb[0].mxu0 %v689
  %v984 = vpop.f32.mrb[0].mxu0
  %v985 = vadd.f32 0.0, %v984
  %v986 = vpop.f32.mrb[0].mxu0
  %987 = vmatprep.mubr.f32.mxu0 0.0
  %988 = vmatmul.mubr.f32.gmra.mrb[0].mxu0 %v692
  %v989 = vpop.f32.mrb[0].mxu0
  %v990 = vadd.f32 0.0, %v989
  %v991 = vpop.f32.mrb[0].mxu0
  %992 = vmatprep.mubr.f32.mxu0 0.0
  %993 = vmatmul.mubr.f32.gmra.mrb[0].mxu0 %v695
  %v994 = vpop.f32.mrb[0].mxu0
  %v995 = vadd.f32 0.0, %v994
  %v996 = vpop.f32.mrb[0].mxu0
  %997 = vmatprep.mubr.f32.mxu0 0.0
  %998 = vmatmul.mubr.f32.gmra.mrb[0].mxu0 %v698
  %v999 = vpop.f32.mrb[0].mxu0
  %v1000 = vadd.f32 0.0, %v999
  %v1001 = vpop.f32.mrb[0].mxu0
  %1002 = vmatprep.mubr.f32.mxu0 0.0
  %1003 = vmatmul.mubr.f32.gmra.mrb[0].mxu0 %v701
  %v1004 = vpop.f32.mrb[0].mxu0
  %v1005 = vadd.f32 0.0, %v1004
  %v1006 = vpop.f32.mrb[0].mxu0
  %1007 = vdwg.mxu0
  %1008 = vst.msk [vmem:[#allocation6] sm:$0xff] %vm137, %v770
  %1009 = vst.msk [vmem:[#allocation6 + $0x8] sm:$0xff] %vm137, %v775
  %1010 = vst.msk [vmem:[#allocation6 + $0x10] sm:$0xff] %vm137, %v780
  %1011 = vst.msk [vmem:[#allocation6 + $0x18] sm:$0xff] %vm137, %v785
  %1012 = vst.msk [vmem:[#allocation6 + $0x20] sm:$0xff] %vm137, %v790
  %1013 = vst.msk [vmem:[#allocation6 + $0x28] sm:$0xff] %vm137, %v795
  %1014 = vst.msk [vmem:[#allocation6 + $0x30] sm:$0xff] %vm137, %v800
  %1015 = vst.msk [vmem:[#allocation6 + $0x38] sm:$0xff] %vm137, %v805
  %1016 = vst.msk [vmem:[#allocation6 + $0x40] sm:$0xff] %vm137, %v810
  %1017 = vst.msk [vmem:[#allocation6 + $0x48] sm:$0xff] %vm137, %v815
  %1018 = vst.msk [vmem:[#allocation6 + $0x50] sm:$0xff] %vm137, %v820
  %1019 = vst.msk [vmem:[#allocation6 + $0x58] sm:$0xff] %vm137, %v825
  %1020 = vst.msk [vmem:[#allocation6 + $0x60] sm:$0xff] %vm137, %v830
  %1021 = vst.msk [vmem:[#allocation6 + $0x68] sm:$0xff] %vm137, %v835
  %1022 = vst.msk [vmem:[#allocation6 + $0x70] sm:$0xff] %vm137, %v840
  %1023 = vst.msk [vmem:[#allocation6 + $0x78] sm:$0xff] %vm137, %v845
  %1024 = vst.msk [vmem:[#allocation6 + $0x80] sm:$0xff] %vm137, %v850
  %1025 = vst.msk [vmem:[#allocation6 + $0x88] sm:$0xff] %vm137, %v855
  %1026 = vst.msk [vmem:[#allocation6 + $0x90] sm:$0xff] %vm137, %v860
  %1027 = vst.msk [vmem:[#allocation6 + $0x98] sm:$0xff] %vm137, %v865
  %1028 = vst.msk [vmem:[#allocation6 + $0xa0] sm:$0xff] %vm137, %v870
  %1029 = vst.msk [vmem:[#allocation6 + $0xa8] sm:$0xff] %vm137, %v875
  %1030 = vst.msk [vmem:[#allocation6 + $0xb0] sm:$0xff] %vm137, %v880
  %1031 = vst.msk [vmem:[#allocation6 + $0xb8] sm:$0xff] %vm137, %v885
  %1032 = vst.msk [vmem:[#allocation6 + $0xc0] sm:$0xff] %vm137, %v890
  %1033 = vst.msk [vmem:[#allocation6 + $0xc8] sm:$0xff] %vm137, %v895
  %1034 = vst.msk [vmem:[#allocation6 + $0xd0] sm:$0xff] %vm137, %v900
  %1035 = vst.msk [vmem:[#allocation6 + $0xd8] sm:$0xff] %vm137, %v905
  %1036 = vst.msk [vmem:[#allocation6 + $0xe0] sm:$0xff] %vm137, %v910
  %1037 = vst.msk [vmem:[#allocation6 + $0xe8] sm:$0xff] %vm137, %v915
  %1038 = vst.msk [vmem:[#allocation6 + $0xf0] sm:$0xff] %vm137, %v920
  %1039 = vst.msk [vmem:[#allocation6 + $0xf8] sm:$0xff] %vm137, %v925
  %1040 = vst.msk [vmem:[#allocation6 + $0x100] sm:$0xff] %vm137, %v930
  %1041 = vst.msk [vmem:[#allocation6 + $0x108] sm:$0xff] %vm137, %v935
  %1042 = vst.msk [vmem:[#allocation6 + $0x110] sm:$0xff] %vm137, %v940
  %1043 = vst.msk [vmem:[#allocation6 + $0x118] sm:$0xff] %vm137, %v945
  %1044 = vst.msk [vmem:[#allocation6 + $0x120] sm:$0xff] %vm137, %v950
  %1045 = vst.msk [vmem:[#allocation6 + $0x128] sm:$0xff] %vm137, %v955
  %1046 = vst.msk [vmem:[#allocation6 + $0x130] sm:$0xff] %vm137, %v960
  %1047 = vst.msk [vmem:[#allocation6 + $0x138] sm:$0xff] %vm137, %v965
  %1048 = vst.msk [vmem:[#allocation6 + $0x140] sm:$0xff] %vm137, %v970
  %1049 = vst.msk [vmem:[#allocation6 + $0x148] sm:$0xff] %vm137, %v975
  %1050 = vst.msk [vmem:[#allocation6 + $0x150] sm:$0xff] %vm137, %v980
  %1051 = vst.msk [vmem:[#allocation6 + $0x158] sm:$0xff] %vm137, %v985
  %1052 = vst.msk [vmem:[#allocation6 + $0x160] sm:$0xff] %vm137, %v990
  %1053 = vst.msk [vmem:[#allocation6 + $0x168] sm:$0xff] %vm137, %v995
  %1054 = vst.msk [vmem:[#allocation6 + $0x170] sm:$0xff] %vm137, %v1000
  %1055 = vst.msk [vmem:[#allocation6 + $0x178] sm:$0xff] %vm137, %v1005
  %v1056 = vld [vmem:[#allocation6] sm:$0xff]
  %v1057 = vld [vmem:[#allocation6 + $0x8] sm:$0x3]
  %v1058 = vld [vmem:[#allocation6 + $0x1] sm:$0xff]
  %v1059 = vld [vmem:[#allocation6 + $0x9] sm:$0x3]
  %1062 = vrot.lane.b32.xlu0 %v1058, 112
  %v1063 = vpop.permute.xlu0 %1062
  %1064 = vrot.lane.b32.xlu0 %v1059, 112
  %v1065 = vpop.permute.xlu0 %1064
  %v1068 = vadd.f32 %v1056, %v1063
  %v1069 = vadd.f32 %v1057, %v1065
  %v1070 = vld [vmem:[#allocation6 + $0x2] sm:$0xff]
  %v1071 = vld [vmem:[#allocation6 + $0xa] sm:$0x3]
  %1074 = vrot.lane.b32.xlu0 %v1070, 96
  %v1075 = vpop.permute.xlu0 %1074
  %1076 = vrot.lane.b32.xlu0 %v1071, 96
  %v1077 = vpop.permute.xlu0 %1076
  %v1080 = vadd.f32 %v1068, %v1075
  %v1081 = vadd.f32 %v1069, %v1077
  %v1082 = vsel %vm169, %v1080, -inf
  %vm1083 = vcmask 123904
  %v1084 = vsel %vm1083, %v1081, -inf
  %v1085 = vmax.f32 %v1082, %v1084
  %v1086 = vrot.slane %v1085, 4
  %v1087 = vmax.f32 %v1085, %v1086
  %v1088 = vrot.slane %v1087, 2
  %v1089 = vmax.f32 %v1087, %v1088
  %v1090 = vrot.slane %v1089, 1
  %v1091 = vmax.f32 %v1089, %v1090
  %1092 = vst.msk [vmem:[#allocation7] sm:$0x1] %vm180, %v1091
  %v1093 = vld [vmem:[#allocation6 + $0xc] sm:$0xff]
  %v1094 = vld [vmem:[#allocation6 + $0x14] sm:$0x3]
  %v1095 = vld [vmem:[#allocation6 + $0xd] sm:$0xff]
  %v1096 = vld [vmem:[#allocation6 + $0x15] sm:$0x3]
  %1099 = vrot.lane.b32.xlu0 %v1095, 112
  %v1100 = vpop.permute.xlu0 %1099
  %1101 = vrot.lane.b32.xlu0 %v1096, 112
  %v1102 = vpop.permute.xlu0 %1101
  %v1105 = vadd.f32 %v1093, %v1100
  %v1106 = vadd.f32 %v1094, %v1102
  %v1107 = vld [vmem:[#allocation6 + $0xe] sm:$0xff]
  %v1108 = vld [vmem:[#allocation6 + $0x16] sm:$0x3]
  %1111 = vrot.lane.b32.xlu0 %v1107, 96
  %v1112 = vpop.permute.xlu0 %1111
  %1113 = vrot.lane.b32.xlu0 %v1108, 96
  %v1114 = vpop.permute.xlu0 %1113
  %v1117 = vadd.f32 %v1105, %v1112
  %v1118 = vadd.f32 %v1106, %v1114
  %v1119 = vsel %vm169, %v1117, -inf
  %v1120 = vsel %vm1083, %v1118, -inf
  %v1121 = vmax.f32 %v1119, %v1120
  %v1122 = vrot.slane %v1121, 4
  %v1123 = vmax.f32 %v1121, %v1122
  %v1124 = vrot.slane %v1123, 2
  %v1125 = vmax.f32 %v1123, %v1124
  %v1126 = vrot.slane %v1125, 1
  %v1127 = vmax.f32 %v1125, %v1126
  %1128 = vst.msk [vmem:[#allocation7 + $0x1] sm:$0x1] %vm180, %v1127
  %v1129 = vld [vmem:[#allocation6 + $0x18] sm:$0xff]
  %v1130 = vld [vmem:[#allocation6 + $0x20] sm:$0x3]
  %v1131 = vld [vmem:[#allocation6 + $0x19] sm:$0xff]
  %v1132 = vld [vmem:[#allocation6 + $0x21] sm:$0x3]
  %1135 = vrot.lane.b32.xlu0 %v1131, 112
  %v1136 = vpop.permute.xlu0 %1135
  %1137 = vrot.lane.b32.xlu0 %v1132, 112
  %v1138 = vpop.permute.xlu0 %1137
  %v1141 = vadd.f32 %v1129, %v1136
  %v1142 = vadd.f32 %v1130, %v1138
  %v1143 = vld [vmem:[#allocation6 + $0x1a] sm:$0xff]
  %v1144 = vld [vmem:[#allocation6 + $0x22] sm:$0x3]
  %1147 = vrot.lane.b32.xlu0 %v1143, 96
  %v1148 = vpop.permute.xlu0 %1147
  %1149 = vrot.lane.b32.xlu0 %v1144, 96
  %v1150 = vpop.permute.xlu0 %1149
  %v1153 = vadd.f32 %v1141, %v1148
  %v1154 = vadd.f32 %v1142, %v1150
  %v1155 = vsel %vm169, %v1153, -inf
  %v1156 = vsel %vm1083, %v1154, -inf
  %v1157 = vmax.f32 %v1155, %v1156
  %v1158 = vrot.slane %v1157, 4
  %v1159 = vmax.f32 %v1157, %v1158
  %v1160 = vrot.slane %v1159, 2
  %v1161 = vmax.f32 %v1159, %v1160
  %v1162 = vrot.slane %v1161, 1
  %v1163 = vmax.f32 %v1161, %v1162
  %1164 = vst.msk [vmem:[#allocation7 + $0x2] sm:$0x1] %vm180, %v1163
  %v1165 = vld [vmem:[#allocation6 + $0x24] sm:$0xff]
  %v1166 = vld [vmem:[#allocation6 + $0x2c] sm:$0x3]
  %v1167 = vld [vmem:[#allocation6 + $0x25] sm:$0xff]
  %v1168 = vld [vmem:[#allocation6 + $0x2d] sm:$0x3]
  %1171 = vrot.lane.b32.xlu0 %v1167, 112
  %v1172 = vpop.permute.xlu0 %1171
  %1173 = vrot.lane.b32.xlu0 %v1168, 112
  %v1174 = vpop.permute.xlu0 %1173
  %v1177 = vadd.f32 %v1165, %v1172
  %v1178 = vadd.f32 %v1166, %v1174
  %v1179 = vld [vmem:[#allocation6 + $0x26] sm:$0xff]
  %v1180 = vld [vmem:[#allocation6 + $0x2e] sm:$0x3]
  %1183 = vrot.lane.b32.xlu0 %v1179, 96
  %v1184 = vpop.permute.xlu0 %1183
  %1185 = vrot.lane.b32.xlu0 %v1180, 96
  %v1186 = vpop.permute.xlu0 %1185
  %v1189 = vadd.f32 %v1177, %v1184
  %v1190 = vadd.f32 %v1178, %v1186
  %v1191 = vsel %vm169, %v1189, -inf
  %v1192 = vsel %vm1083, %v1190, -inf
  %v1193 = vmax.f32 %v1191, %v1192
  %v1194 = vrot.slane %v1193, 4
  %v1195 = vmax.f32 %v1193, %v1194
  %v1196 = vrot.slane %v1195, 2
  %v1197 = vmax.f32 %v1195, %v1196
  %v1198 = vrot.slane %v1197, 1
  %v1199 = vmax.f32 %v1197, %v1198
  %1200 = vst.msk [vmem:[#allocation7 + $0x3] sm:$0x1] %vm180, %v1199
  %v1201 = vld [vmem:[#allocation6 + $0x30] sm:$0xff]
  %v1202 = vld [vmem:[#allocation6 + $0x38] sm:$0x3]
  %v1203 = vld [vmem:[#allocation6 + $0x31] sm:$0xff]
  %v1204 = vld [vmem:[#allocation6 + $0x39] sm:$0x3]
  %1207 = vrot.lane.b32.xlu0 %v1203, 112
  %v1208 = vpop.permute.xlu0 %1207
  %1209 = vrot.lane.b32.xlu0 %v1204, 112
  %v1210 = vpop.permute.xlu0 %1209
  %v1213 = vadd.f32 %v1201, %v1208
  %v1214 = vadd.f32 %v1202, %v1210
  %v1215 = vld [vmem:[#allocation6 + $0x32] sm:$0xff]
  %v1216 = vld [vmem:[#allocation6 + $0x3a] sm:$0x3]
  %1219 = vrot.lane.b32.xlu0 %v1215, 96
  %v1220 = vpop.permute.xlu0 %1219
  %1221 = vrot.lane.b32.xlu0 %v1216, 96
  %v1222 = vpop.permute.xlu0 %1221
  %v1225 = vadd.f32 %v1213, %v1220
  %v1226 = vadd.f32 %v1214, %v1222
  %v1227 = vsel %vm169, %v1225, -inf
  %v1228 = vsel %vm1083, %v1226, -inf
  %v1229 = vmax.f32 %v1227, %v1228
  %v1230 = vrot.slane %v1229, 4
  %v1231 = vmax.f32 %v1229, %v1230
  %v1232 = vrot.slane %v1231, 2
  %v1233 = vmax.f32 %v1231, %v1232
  %v1234 = vrot.slane %v1233, 1
  %v1235 = vmax.f32 %v1233, %v1234
  %1236 = vst.msk [vmem:[#allocation7 + $0x4] sm:$0x1] %vm180, %v1235
  %v1237 = vld [vmem:[#allocation6 + $0x3c] sm:$0xff]
  %v1238 = vld [vmem:[#allocation6 + $0x44] sm:$0x3]
  %v1239 = vld [vmem:[#allocation6 + $0x3d] sm:$0xff]
  %v1240 = vld [vmem:[#allocation6 + $0x45] sm:$0x3]
  %1243 = vrot.lane.b32.xlu0 %v1239, 112
  %v1244 = vpop.permute.xlu0 %1243
  %1245 = vrot.lane.b32.xlu0 %v1240, 112
  %v1246 = vpop.permute.xlu0 %1245
  %v1249 = vadd.f32 %v1237, %v1244
  %v1250 = vadd.f32 %v1238, %v1246
  %v1251 = vld [vmem:[#allocation6 + $0x3e] sm:$0xff]
  %v1252 = vld [vmem:[#allocation6 + $0x46] sm:$0x3]
  %1255 = vrot.lane.b32.xlu0 %v1251, 96
  %v1256 = vpop.permute.xlu0 %1255
  %1257 = vrot.lane.b32.xlu0 %v1252, 96
  %v1258 = vpop.permute.xlu0 %1257
  %v1261 = vadd.f32 %v1249, %v1256
  %v1262 = vadd.f32 %v1250, %v1258
  %v1263 = vsel %vm169, %v1261, -inf
  %v1264 = vsel %vm1083, %v1262, -inf
  %v1265 = vmax.f32 %v1263, %v1264
  %v1266 = vrot.slane %v1265, 4
  %v1267 = vmax.f32 %v1265, %v1266
  %v1268 = vrot.slane %v1267, 2
  %v1269 = vmax.f32 %v1267, %v1268
  %v1270 = vrot.slane %v1269, 1
  %v1271 = vmax.f32 %v1269, %v1270
  %1272 = vst.msk [vmem:[#allocation7 + $0x5] sm:$0x1] %vm180, %v1271
  %v1273 = vld [vmem:[#allocation6 + $0x48] sm:$0xff]
  %v1274 = vld [vmem:[#allocation6 + $0x50] sm:$0x3]
  %v1275 = vld [vmem:[#allocation6 + $0x49] sm:$0xff]
  %v1276 = vld [vmem:[#allocation6 + $0x51] sm:$0x3]
  %1279 = vrot.lane.b32.xlu0 %v1275, 112
  %v1280 = vpop.permute.xlu0 %1279
  %1281 = vrot.lane.b32.xlu0 %v1276, 112
  %v1282 = vpop.permute.xlu0 %1281
  %v1285 = vadd.f32 %v1273, %v1280
  %v1286 = vadd.f32 %v1274, %v1282
  %v1287 = vld [vmem:[#allocation6 + $0x4a] sm:$0xff]
  %v1288 = vld [vmem:[#allocation6 + $0x52] sm:$0x3]
  %1291 = vrot.lane.b32.xlu0 %v1287, 96
  %v1292 = vpop.permute.xlu0 %1291
  %1293 = vrot.lane.b32.xlu0 %v1288, 96
  %v1294 = vpop.permute.xlu0 %1293
  %v1297 = vadd.f32 %v1285, %v1292
  %v1298 = vadd.f32 %v1286, %v1294
  %v1299 = vsel %vm169, %v1297, -inf
  %v1300 = vsel %vm1083, %v1298, -inf
  %v1301 = vmax.f32 %v1299, %v1300
  %v1302 = vrot.slane %v1301, 4
  %v1303 = vmax.f32 %v1301, %v1302
  %v1304 = vrot.slane %v1303, 2
  %v1305 = vmax.f32 %v1303, %v1304
  %v1306 = vrot.slane %v1305, 1
  %v1307 = vmax.f32 %v1305, %v1306
  %1308 = vst.msk [vmem:[#allocation7 + $0x6] sm:$0x1] %vm180, %v1307
  %v1309 = vld [vmem:[#allocation6 + $0x54] sm:$0xff]
  %v1310 = vld [vmem:[#allocation6 + $0x5c] sm:$0x3]
  %v1311 = vld [vmem:[#allocation6 + $0x55] sm:$0xff]
  %v1312 = vld [vmem:[#allocation6 + $0x5d] sm:$0x3]
  %1315 = vrot.lane.b32.xlu0 %v1311, 112
  %v1316 = vpop.permute.xlu0 %1315
  %1317 = vrot.lane.b32.xlu0 %v1312, 112
  %v1318 = vpop.permute.xlu0 %1317
  %v1321 = vadd.f32 %v1309, %v1316
  %v1322 = vadd.f32 %v1310, %v1318
  %v1323 = vld [vmem:[#allocation6 + $0x56] sm:$0xff]
  %v1324 = vld [vmem:[#allocation6 + $0x5e] sm:$0x3]
  %1327 = vrot.lane.b32.xlu0 %v1323, 96
  %v1328 = vpop.permute.xlu0 %1327
  %1329 = vrot.lane.b32.xlu0 %v1324, 96
  %v1330 = vpop.permute.xlu0 %1329
  %v1333 = vadd.f32 %v1321, %v1328
  %v1334 = vadd.f32 %v1322, %v1330
  %v1335 = vsel %vm169, %v1333, -inf
  %v1336 = vsel %vm1083, %v1334, -inf
  %v1337 = vmax.f32 %v1335, %v1336
  %v1338 = vrot.slane %v1337, 4
  %v1339 = vmax.f32 %v1337, %v1338
  %v1340 = vrot.slane %v1339, 2
  %v1341 = vmax.f32 %v1339, %v1340
  %v1342 = vrot.slane %v1341, 1
  %v1343 = vmax.f32 %v1341, %v1342
  %1344 = vst.msk [vmem:[#allocation7 + $0x7] sm:$0x1] %vm180, %v1343
  %v1345 = vld [vmem:[#allocation6 + $0x60] sm:$0xff]
  %v1346 = vld [vmem:[#allocation6 + $0x68] sm:$0x3]
  %v1347 = vld [vmem:[#allocation6 + $0x61] sm:$0xff]
  %v1348 = vld [vmem:[#allocation6 + $0x69] sm:$0x3]
  %1351 = vrot.lane.b32.xlu0 %v1347, 112
  %v1352 = vpop.permute.xlu0 %1351
  %1353 = vrot.lane.b32.xlu0 %v1348, 112
  %v1354 = vpop.permute.xlu0 %1353
  %v1357 = vadd.f32 %v1345, %v1352
  %v1358 = vadd.f32 %v1346, %v1354
  %v1359 = vld [vmem:[#allocation6 + $0x62] sm:$0xff]
  %v1360 = vld [vmem:[#allocation6 + $0x6a] sm:$0x3]
  %1363 = vrot.lane.b32.xlu0 %v1359, 96
  %v1364 = vpop.permute.xlu0 %1363
  %1365 = vrot.lane.b32.xlu0 %v1360, 96
  %v1366 = vpop.permute.xlu0 %1365
  %v1369 = vadd.f32 %v1357, %v1364
  %v1370 = vadd.f32 %v1358, %v1366
  %v1371 = vsel %vm169, %v1369, -inf
  %v1372 = vsel %vm1083, %v1370, -inf
  %v1373 = vmax.f32 %v1371, %v1372
  %v1374 = vrot.slane %v1373, 4
  %v1375 = vmax.f32 %v1373, %v1374
  %v1376 = vrot.slane %v1375, 2
  %v1377 = vmax.f32 %v1375, %v1376
  %v1378 = vrot.slane %v1377, 1
  %v1379 = vmax.f32 %v1377, %v1378
  %1380 = vst.msk [vmem:[#allocation7 + $0x8] sm:$0x1] %vm180, %v1379
  %v1381 = vld [vmem:[#allocation6 + $0x6c] sm:$0xff]
  %v1382 = vld [vmem:[#allocation6 + $0x74] sm:$0x3]
  %v1383 = vld [vmem:[#allocation6 + $0x6d] sm:$0xff]
  %v1384 = vld [vmem:[#allocation6 + $0x75] sm:$0x3]
  %1387 = vrot.lane.b32.xlu0 %v1383, 112
  %v1388 = vpop.permute.xlu0 %1387
  %1389 = vrot.lane.b32.xlu0 %v1384, 112
  %v1390 = vpop.permute.xlu0 %1389
  %v1393 = vadd.f32 %v1381, %v1388
  %v1394 = vadd.f32 %v1382, %v1390
  %v1395 = vld [vmem:[#allocation6 + $0x6e] sm:$0xff]
  %v1396 = vld [vmem:[#allocation6 + $0x76] sm:$0x3]
  %1399 = vrot.lane.b32.xlu0 %v1395, 96
  %v1400 = vpop.permute.xlu0 %1399
  %1401 = vrot.lane.b32.xlu0 %v1396, 96
  %v1402 = vpop.permute.xlu0 %1401
  %v1405 = vadd.f32 %v1393, %v1400
  %v1406 = vadd.f32 %v1394, %v1402
  %v1407 = vsel %vm169, %v1405, -inf
  %v1408 = vsel %vm1083, %v1406, -inf
  %v1409 = vmax.f32 %v1407, %v1408
  %v1410 = vrot.slane %v1409, 4
  %v1411 = vmax.f32 %v1409, %v1410
  %v1412 = vrot.slane %v1411, 2
  %v1413 = vmax.f32 %v1411, %v1412
  %v1414 = vrot.slane %v1413, 1
  %v1415 = vmax.f32 %v1413, %v1414
  %1416 = vst.msk [vmem:[#allocation7 + $0x9] sm:$0x1] %vm180, %v1415
  %v1417 = vld [vmem:[#allocation6 + $0x78] sm:$0xff]
  %v1418 = vld [vmem:[#allocation6 + $0x80] sm:$0x3]
  %v1419 = vld [vmem:[#allocation6 + $0x79] sm:$0xff]
  %v1420 = vld [vmem:[#allocation6 + $0x81] sm:$0x3]
  %1423 = vrot.lane.b32.xlu0 %v1419, 112
  %v1424 = vpop.permute.xlu0 %1423
  %1425 = vrot.lane.b32.xlu0 %v1420, 112
  %v1426 = vpop.permute.xlu0 %1425
  %v1429 = vadd.f32 %v1417, %v1424
  %v1430 = vadd.f32 %v1418, %v1426
  %v1431 = vld [vmem:[#allocation6 + $0x7a] sm:$0xff]
  %v1432 = vld [vmem:[#allocation6 + $0x82] sm:$0x3]
  %1435 = vrot.lane.b32.xlu0 %v1431, 96
  %v1436 = vpop.permute.xlu0 %1435
  %1437 = vrot.lane.b32.xlu0 %v1432, 96
  %v1438 = vpop.permute.xlu0 %1437
  %v1441 = vadd.f32 %v1429, %v1436
  %v1442 = vadd.f32 %v1430, %v1438
  %v1443 = vsel %vm169, %v1441, -inf
  %v1444 = vsel %vm1083, %v1442, -inf
  %v1445 = vmax.f32 %v1443, %v1444
  %v1446 = vrot.slane %v1445, 4
  %v1447 = vmax.f32 %v1445, %v1446
  %v1448 = vrot.slane %v1447, 2
  %v1449 = vmax.f32 %v1447, %v1448
  %v1450 = vrot.slane %v1449, 1
  %v1451 = vmax.f32 %v1449, %v1450
  %1452 = vst.msk [vmem:[#allocation7 + $0xa] sm:$0x1] %vm180, %v1451
  %v1453 = vld [vmem:[#allocation6 + $0x84] sm:$0xff]
  %v1454 = vld [vmem:[#allocation6 + $0x8c] sm:$0x3]
  %v1455 = vld [vmem:[#allocation6 + $0x85] sm:$0xff]
  %v1456 = vld [vmem:[#allocation6 + $0x8d] sm:$0x3]
  %1459 = vrot.lane.b32.xlu0 %v1455, 112
  %v1460 = vpop.permute.xlu0 %1459
  %1461 = vrot.lane.b32.xlu0 %v1456, 112
  %v1462 = vpop.permute.xlu0 %1461
  %v1465 = vadd.f32 %v1453, %v1460
  %v1466 = vadd.f32 %v1454, %v1462
  %v1467 = vld [vmem:[#allocation6 + $0x86] sm:$0xff]
  %v1468 = vld [vmem:[#allocation6 + $0x8e] sm:$0x3]
  %1471 = vrot.lane.b32.xlu0 %v1467, 96
  %v1472 = vpop.permute.xlu0 %1471
  %1473 = vrot.lane.b32.xlu0 %v1468, 96
  %v1474 = vpop.permute.xlu0 %1473
  %v1477 = vadd.f32 %v1465, %v1472
  %v1478 = vadd.f32 %v1466, %v1474
  %v1479 = vsel %vm169, %v1477, -inf
  %v1480 = vsel %vm1083, %v1478, -inf
  %v1481 = vmax.f32 %v1479, %v1480
  %v1482 = vrot.slane %v1481, 4
  %v1483 = vmax.f32 %v1481, %v1482
  %v1484 = vrot.slane %v1483, 2
  %v1485 = vmax.f32 %v1483, %v1484
  %v1486 = vrot.slane %v1485, 1
  %v1487 = vmax.f32 %v1485, %v1486
  %1488 = vst.msk [vmem:[#allocation7 + $0xb] sm:$0x1] %vm180, %v1487
  %v1489 = vld [vmem:[#allocation6 + $0x90] sm:$0xff]
  %v1490 = vld [vmem:[#allocation6 + $0x98] sm:$0x3]
  %v1491 = vld [vmem:[#allocation6 + $0x91] sm:$0xff]
  %v1492 = vld [vmem:[#allocation6 + $0x99] sm:$0x3]
  %1495 = vrot.lane.b32.xlu0 %v1491, 112
  %v1496 = vpop.permute.xlu0 %1495
  %1497 = vrot.lane.b32.xlu0 %v1492, 112
  %v1498 = vpop.permute.xlu0 %1497
  %v1501 = vadd.f32 %v1489, %v1496
  %v1502 = vadd.f32 %v1490, %v1498
  %v1503 = vld [vmem:[#allocation6 + $0x92] sm:$0xff]
  %v1504 = vld [vmem:[#allocation6 + $0x9a] sm:$0x3]
  %1507 = vrot.lane.b32.xlu0 %v1503, 96
  %v1508 = vpop.permute.xlu0 %1507
  %1509 = vrot.lane.b32.xlu0 %v1504, 96
  %v1510 = vpop.permute.xlu0 %1509
  %v1513 = vadd.f32 %v1501, %v1508
  %v1514 = vadd.f32 %v1502, %v1510
  %v1515 = vsel %vm169, %v1513, -inf
  %v1516 = vsel %vm1083, %v1514, -inf
  %v1517 = vmax.f32 %v1515, %v1516
  %v1518 = vrot.slane %v1517, 4
  %v1519 = vmax.f32 %v1517, %v1518
  %v1520 = vrot.slane %v1519, 2
  %v1521 = vmax.f32 %v1519, %v1520
  %v1522 = vrot.slane %v1521, 1
  %v1523 = vmax.f32 %v1521, %v1522
  %1524 = vst.msk [vmem:[#allocation7 + $0xc] sm:$0x1] %vm180, %v1523
  %v1525 = vld [vmem:[#allocation6 + $0x9c] sm:$0xff]
  %v1526 = vld [vmem:[#allocation6 + $0xa4] sm:$0x3]
  %v1527 = vld [vmem:[#allocation6 + $0x9d] sm:$0xff]
  %v1528 = vld [vmem:[#allocation6 + $0xa5] sm:$0x3]
  %1531 = vrot.lane.b32.xlu0 %v1527, 112
  %v1532 = vpop.permute.xlu0 %1531
  %1533 = vrot.lane.b32.xlu0 %v1528, 112
  %v1534 = vpop.permute.xlu0 %1533
  %v1537 = vadd.f32 %v1525, %v1532
  %v1538 = vadd.f32 %v1526, %v1534
  %v1539 = vld [vmem:[#allocation6 + $0x9e] sm:$0xff]
  %v1540 = vld [vmem:[#allocation6 + $0xa6] sm:$0x3]
  %1543 = vrot.lane.b32.xlu0 %v1539, 96
  %v1544 = vpop.permute.xlu0 %1543
  %1545 = vrot.lane.b32.xlu0 %v1540, 96
  %v1546 = vpop.permute.xlu0 %1545
  %v1549 = vadd.f32 %v1537, %v1544
  %v1550 = vadd.f32 %v1538, %v1546
  %v1551 = vsel %vm169, %v1549, -inf
  %v1552 = vsel %vm1083, %v1550, -inf
  %v1553 = vmax.f32 %v1551, %v1552
  %v1554 = vrot.slane %v1553, 4
  %v1555 = vmax.f32 %v1553, %v1554
  %v1556 = vrot.slane %v1555, 2
  %v1557 = vmax.f32 %v1555, %v1556
  %v1558 = vrot.slane %v1557, 1
  %v1559 = vmax.f32 %v1557, %v1558
  %1560 = vst.msk [vmem:[#allocation7 + $0xd] sm:$0x1] %vm180, %v1559
  %v1561 = vld [vmem:[#allocation6 + $0xa8] sm:$0xff]
  %v1562 = vld [vmem:[#allocation6 + $0xb0] sm:$0x3]
  %v1563 = vld [vmem:[#allocation6 + $0xa9] sm:$0xff]
  %v1564 = vld [vmem:[#allocation6 + $0xb1] sm:$0x3]
  %1567 = vrot.lane.b32.xlu0 %v1563, 112
  %v1568 = vpop.permute.xlu0 %1567
  %1569 = vrot.lane.b32.xlu0 %v1564, 112
  %v1570 = vpop.permute.xlu0 %1569
  %v1573 = vadd.f32 %v1561, %v1568
  %v1574 = vadd.f32 %v1562, %v1570
  %v1575 = vld [vmem:[#allocation6 + $0xaa] sm:$0xff]
  %v1576 = vld [vmem:[#allocation6 + $0xb2] sm:$0x3]
  %1579 = vrot.lane.b32.xlu0 %v1575, 96
  %v1580 = vpop.permute.xlu0 %1579
  %1581 = vrot.lane.b32.xlu0 %v1576, 96
  %v1582 = vpop.permute.xlu0 %1581
  %v1585 = vadd.f32 %v1573, %v1580
  %v1586 = vadd.f32 %v1574, %v1582
  %v1587 = vsel %vm169, %v1585, -inf
  %v1588 = vsel %vm1083, %v1586, -inf
  %v1589 = vmax.f32 %v1587, %v1588
  %v1590 = vrot.slane %v1589, 4
  %v1591 = vmax.f32 %v1589, %v1590
  %v1592 = vrot.slane %v1591, 2
  %v1593 = vmax.f32 %v1591, %v1592
  %v1594 = vrot.slane %v1593, 1
  %v1595 = vmax.f32 %v1593, %v1594
  %1596 = vst.msk [vmem:[#allocation7 + $0xe] sm:$0x1] %vm180, %v1595
  %v1597 = vld [vmem:[#allocation6 + $0xb4] sm:$0xff]
  %v1598 = vld [vmem:[#allocation6 + $0xbc] sm:$0x3]
  %v1599 = vld [vmem:[#allocation6 + $0xb5] sm:$0xff]
  %v1600 = vld [vmem:[#allocation6 + $0xbd] sm:$0x3]
  %1603 = vrot.lane.b32.xlu0 %v1599, 112
  %v1604 = vpop.permute.xlu0 %1603
  %1605 = vrot.lane.b32.xlu0 %v1600, 112
  %v1606 = vpop.permute.xlu0 %1605
  %v1609 = vadd.f32 %v1597, %v1604
  %v1610 = vadd.f32 %v1598, %v1606
  %v1611 = vld [vmem:[#allocation6 + $0xb6] sm:$0xff]
  %v1612 = vld [vmem:[#allocation6 + $0xbe] sm:$0x3]
  %1615 = vrot.lane.b32.xlu0 %v1611, 96
  %v1616 = vpop.permute.xlu0 %1615
  %1617 = vrot.lane.b32.xlu0 %v1612, 96
  %v1618 = vpop.permute.xlu0 %1617
  %v1621 = vadd.f32 %v1609, %v1616
  %v1622 = vadd.f32 %v1610, %v1618
  %v1623 = vsel %vm169, %v1621, -inf
  %v1624 = vsel %vm1083, %v1622, -inf
  %v1625 = vmax.f32 %v1623, %v1624
  %v1626 = vrot.slane %v1625, 4
  %v1627 = vmax.f32 %v1625, %v1626
  %v1628 = vrot.slane %v1627, 2
  %v1629 = vmax.f32 %v1627, %v1628
  %v1630 = vrot.slane %v1629, 1
  %v1631 = vmax.f32 %v1629, %v1630
  %1632 = vst.msk [vmem:[#allocation7 + $0xf] sm:$0x1] %vm180, %v1631
  %v1633 = vld [vmem:[#allocation6 + $0xc0] sm:$0xff]
  %v1634 = vld [vmem:[#allocation6 + $0xc8] sm:$0x3]
  %v1635 = vld [vmem:[#allocation6 + $0xc1] sm:$0xff]
  %v1636 = vld [vmem:[#allocation6 + $0xc9] sm:$0x3]
  %1639 = vrot.lane.b32.xlu0 %v1635, 112
  %v1640 = vpop.permute.xlu0 %1639
  %1641 = vrot.lane.b32.xlu0 %v1636, 112
  %v1642 = vpop.permute.xlu0 %1641
  %v1645 = vadd.f32 %v1633, %v1640
  %v1646 = vadd.f32 %v1634, %v1642
  %v1647 = vld [vmem:[#allocation6 + $0xc2] sm:$0xff]
  %v1648 = vld [vmem:[#allocation6 + $0xca] sm:$0x3]
  %1651 = vrot.lane.b32.xlu0 %v1647, 96
  %v1652 = vpop.permute.xlu0 %1651
  %1653 = vrot.lane.b32.xlu0 %v1648, 96
  %v1654 = vpop.permute.xlu0 %1653
  %v1657 = vadd.f32 %v1645, %v1652
  %v1658 = vadd.f32 %v1646, %v1654
  %v1659 = vsel %vm169, %v1657, -inf
  %v1660 = vsel %vm1083, %v1658, -inf
  %v1661 = vmax.f32 %v1659, %v1660
  %v1662 = vrot.slane %v1661, 4
  %v1663 = vmax.f32 %v1661, %v1662
  %v1664 = vrot.slane %v1663, 2
  %v1665 = vmax.f32 %v1663, %v1664
  %v1666 = vrot.slane %v1665, 1
  %v1667 = vmax.f32 %v1665, %v1666
  %1668 = vst.msk [vmem:[#allocation7 + $0x10] sm:$0x1] %vm180, %v1667
  %v1669 = vld [vmem:[#allocation6 + $0xcc] sm:$0xff]
  %v1670 = vld [vmem:[#allocation6 + $0xd4] sm:$0x3]
  %v1671 = vld [vmem:[#allocation6 + $0xcd] sm:$0xff]
  %v1672 = vld [vmem:[#allocation6 + $0xd5] sm:$0x3]
  %1675 = vrot.lane.b32.xlu0 %v1671, 112
  %v1676 = vpop.permute.xlu0 %1675
  %1677 = vrot.lane.b32.xlu0 %v1672, 112
  %v1678 = vpop.permute.xlu0 %1677
  %v1681 = vadd.f32 %v1669, %v1676
  %v1682 = vadd.f32 %v1670, %v1678
  %v1683 = vld [vmem:[#allocation6 + $0xce] sm:$0xff]
  %v1684 = vld [vmem:[#allocation6 + $0xd6] sm:$0x3]
  %1687 = vrot.lane.b32.xlu0 %v1683, 96
  %v1688 = vpop.permute.xlu0 %1687
  %1689 = vrot.lane.b32.xlu0 %v1684, 96
  %v1690 = vpop.permute.xlu0 %1689
  %v1693 = vadd.f32 %v1681, %v1688
  %v1694 = vadd.f32 %v1682, %v1690
  %v1695 = vsel %vm169, %v1693, -inf
  %v1696 = vsel %vm1083, %v1694, -inf
  %v1697 = vmax.f32 %v1695, %v1696
  %v1698 = vrot.slane %v1697, 4
  %v1699 = vmax.f32 %v1697, %v1698
  %v1700 = vrot.slane %v1699, 2
  %v1701 = vmax.f32 %v1699, %v1700
  %v1702 = vrot.slane %v1701, 1
  %v1703 = vmax.f32 %v1701, %v1702
  %1704 = vst.msk [vmem:[#allocation7 + $0x11] sm:$0x1] %vm180, %v1703
  %v1705 = vld [vmem:[#allocation6 + $0xd8] sm:$0xff]
  %v1706 = vld [vmem:[#allocation6 + $0xe0] sm:$0x3]
  %v1707 = vld [vmem:[#allocation6 + $0xd9] sm:$0xff]
  %v1708 = vld [vmem:[#allocation6 + $0xe1] sm:$0x3]
  %1711 = vrot.lane.b32.xlu0 %v1707, 112
  %v1712 = vpop.permute.xlu0 %1711
  %1713 = vrot.lane.b32.xlu0 %v1708, 112
  %v1714 = vpop.permute.xlu0 %1713
  %v1717 = vadd.f32 %v1705, %v1712
  %v1718 = vadd.f32 %v1706, %v1714
  %v1719 = vld [vmem:[#allocation6 + $0xda] sm:$0xff]
  %v1720 = vld [vmem:[#allocation6 + $0xe2] sm:$0x3]
  %1723 = vrot.lane.b32.xlu0 %v1719, 96
  %v1724 = vpop.permute.xlu0 %1723
  %1725 = vrot.lane.b32.xlu0 %v1720, 96
  %v1726 = vpop.permute.xlu0 %1725
  %v1729 = vadd.f32 %v1717, %v1724
  %v1730 = vadd.f32 %v1718, %v1726
  %v1731 = vsel %vm169, %v1729, -inf
  %v1732 = vsel %vm1083, %v1730, -inf
  %v1733 = vmax.f32 %v1731, %v1732
  %v1734 = vrot.slane %v1733, 4
  %v1735 = vmax.f32 %v1733, %v1734
  %v1736 = vrot.slane %v1735, 2
  %v1737 = vmax.f32 %v1735, %v1736
  %v1738 = vrot.slane %v1737, 1
  %v1739 = vmax.f32 %v1737, %v1738
  %1740 = vst.msk [vmem:[#allocation7 + $0x12] sm:$0x1] %vm180, %v1739
  %v1741 = vld [vmem:[#allocation6 + $0xe4] sm:$0xff]
  %v1742 = vld [vmem:[#allocation6 + $0xec] sm:$0x3]
  %v1743 = vld [vmem:[#allocation6 + $0xe5] sm:$0xff]
  %v1744 = vld [vmem:[#allocation6 + $0xed] sm:$0x3]
  %1747 = vrot.lane.b32.xlu0 %v1743, 112
  %v1748 = vpop.permute.xlu0 %1747
  %1749 = vrot.lane.b32.xlu0 %v1744, 112
  %v1750 = vpop.permute.xlu0 %1749
  %v1753 = vadd.f32 %v1741, %v1748
  %v1754 = vadd.f32 %v1742, %v1750
  %v1755 = vld [vmem:[#allocation6 + $0xe6] sm:$0xff]
  %v1756 = vld [vmem:[#allocation6 + $0xee] sm:$0x3]
  %1759 = vrot.lane.b32.xlu0 %v1755, 96
  %v1760 = vpop.permute.xlu0 %1759
  %1761 = vrot.lane.b32.xlu0 %v1756, 96
  %v1762 = vpop.permute.xlu0 %1761
  %v1765 = vadd.f32 %v1753, %v1760
  %v1766 = vadd.f32 %v1754, %v1762
  %v1767 = vsel %vm169, %v1765, -inf
  %v1768 = vsel %vm1083, %v1766, -inf
  %v1769 = vmax.f32 %v1767, %v1768
  %v1770 = vrot.slane %v1769, 4
  %v1771 = vmax.f32 %v1769, %v1770
  %v1772 = vrot.slane %v1771, 2
  %v1773 = vmax.f32 %v1771, %v1772
  %v1774 = vrot.slane %v1773, 1
  %v1775 = vmax.f32 %v1773, %v1774
  %1776 = vst.msk [vmem:[#allocation7 + $0x13] sm:$0x1] %vm180, %v1775
  %v1777 = vld [vmem:[#allocation6 + $0xf0] sm:$0xff]
  %v1778 = vld [vmem:[#allocation6 + $0xf8] sm:$0x3]
  %v1779 = vld [vmem:[#allocation6 + $0xf1] sm:$0xff]
  %v1780 = vld [vmem:[#allocation6 + $0xf9] sm:$0x3]
  %1783 = vrot.lane.b32.xlu0 %v1779, 112
  %v1784 = vpop.permute.xlu0 %1783
  %1785 = vrot.lane.b32.xlu0 %v1780, 112
  %v1786 = vpop.permute.xlu0 %1785
  %v1789 = vadd.f32 %v1777, %v1784
  %v1790 = vadd.f32 %v1778, %v1786
  %v1791 = vld [vmem:[#allocation6 + $0xf2] sm:$0xff]
  %v1792 = vld [vmem:[#allocation6 + $0xfa] sm:$0x3]
  %1795 = vrot.lane.b32.xlu0 %v1791, 96
  %v1796 = vpop.permute.xlu0 %1795
  %1797 = vrot.lane.b32.xlu0 %v1792, 96
  %v1798 = vpop.permute.xlu0 %1797
  %v1801 = vadd.f32 %v1789, %v1796
  %v1802 = vadd.f32 %v1790, %v1798
  %v1803 = vsel %vm169, %v1801, -inf
  %v1804 = vsel %vm1083, %v1802, -inf
  %v1805 = vmax.f32 %v1803, %v1804
  %v1806 = vrot.slane %v1805, 4
  %v1807 = vmax.f32 %v1805, %v1806
  %v1808 = vrot.slane %v1807, 2
  %v1809 = vmax.f32 %v1807, %v1808
  %v1810 = vrot.slane %v1809, 1
  %v1811 = vmax.f32 %v1809, %v1810
  %1812 = vst.msk [vmem:[#allocation7 + $0x14] sm:$0x1] %vm180, %v1811
  %v1813 = vld [vmem:[#allocation6 + $0xfc] sm:$0xff]
  %v1814 = vld [vmem:[#allocation6 + $0x104] sm:$0x3]
  %v1815 = vld [vmem:[#allocation6 + $0xfd] sm:$0xff]
  %v1816 = vld [vmem:[#allocation6 + $0x105] sm:$0x3]
  %1819 = vrot.lane.b32.xlu0 %v1815, 112
  %v1820 = vpop.permute.xlu0 %1819
  %1821 = vrot.lane.b32.xlu0 %v1816, 112
  %v1822 = vpop.permute.xlu0 %1821
  %v1825 = vadd.f32 %v1813, %v1820
  %v1826 = vadd.f32 %v1814, %v1822
  %v1827 = vld [vmem:[#allocation6 + $0xfe] sm:$0xff]
  %v1828 = vld [vmem:[#allocation6 + $0x106] sm:$0x3]
  %1831 = vrot.lane.b32.xlu0 %v1827, 96
  %v1832 = vpop.permute.xlu0 %1831
  %1833 = vrot.lane.b32.xlu0 %v1828, 96
  %v1834 = vpop.permute.xlu0 %1833
  %v1837 = vadd.f32 %v1825, %v1832
  %v1838 = vadd.f32 %v1826, %v1834
  %v1839 = vsel %vm169, %v1837, -inf
  %v1840 = vsel %vm1083, %v1838, -inf
  %v1841 = vmax.f32 %v1839, %v1840
  %v1842 = vrot.slane %v1841, 4
  %v1843 = vmax.f32 %v1841, %v1842
  %v1844 = vrot.slane %v1843, 2
  %v1845 = vmax.f32 %v1843, %v1844
  %v1846 = vrot.slane %v1845, 1
  %v1847 = vmax.f32 %v1845, %v1846
  %1848 = vst.msk [vmem:[#allocation7 + $0x15] sm:$0x1] %vm180, %v1847
  %v1849 = vld [vmem:[#allocation6 + $0x108] sm:$0xff]
  %v1850 = vld [vmem:[#allocation6 + $0x110] sm:$0x3]
  %v1851 = vld [vmem:[#allocation6 + $0x109] sm:$0xff]
  %v1852 = vld [vmem:[#allocation6 + $0x111] sm:$0x3]
  %1855 = vrot.lane.b32.xlu0 %v1851, 112
  %v1856 = vpop.permute.xlu0 %1855
  %1857 = vrot.lane.b32.xlu0 %v1852, 112
  %v1858 = vpop.permute.xlu0 %1857
  %v1861 = vadd.f32 %v1849, %v1856
  %v1862 = vadd.f32 %v1850, %v1858
  %v1863 = vld [vmem:[#allocation6 + $0x10a] sm:$0xff]
  %v1864 = vld [vmem:[#allocation6 + $0x112] sm:$0x3]
  %1867 = vrot.lane.b32.xlu0 %v1863, 96
  %v1868 = vpop.permute.xlu0 %1867
  %1869 = vrot.lane.b32.xlu0 %v1864, 96
  %v1870 = vpop.permute.xlu0 %1869
  %v1873 = vadd.f32 %v1861, %v1868
  %v1874 = vadd.f32 %v1862, %v1870
  %v1875 = vsel %vm169, %v1873, -inf
  %v1876 = vsel %vm1083, %v1874, -inf
  %v1877 = vmax.f32 %v1875, %v1876
  %v1878 = vrot.slane %v1877, 4
  %v1879 = vmax.f32 %v1877, %v1878
  %v1880 = vrot.slane %v1879, 2
  %v1881 = vmax.f32 %v1879, %v1880
  %v1882 = vrot.slane %v1881, 1
  %v1883 = vmax.f32 %v1881, %v1882
  %1884 = vst.msk [vmem:[#allocation7 + $0x16] sm:$0x1] %vm180, %v1883
  %v1885 = vld [vmem:[#allocation6 + $0x114] sm:$0xff]
  %v1886 = vld [vmem:[#allocation6 + $0x11c] sm:$0x3]
  %v1887 = vld [vmem:[#allocation6 + $0x115] sm:$0xff]
  %v1888 = vld [vmem:[#allocation6 + $0x11d] sm:$0x3]
  %1891 = vrot.lane.b32.xlu0 %v1887, 112
  %v1892 = vpop.permute.xlu0 %1891
  %1893 = vrot.lane.b32.xlu0 %v1888, 112
  %v1894 = vpop.permute.xlu0 %1893
  %v1897 = vadd.f32 %v1885, %v1892
  %v1898 = vadd.f32 %v1886, %v1894
  %v1899 = vld [vmem:[#allocation6 + $0x116] sm:$0xff]
  %v1900 = vld [vmem:[#allocation6 + $0x11e] sm:$0x3]
  %1903 = vrot.lane.b32.xlu0 %v1899, 96
  %v1904 = vpop.permute.xlu0 %1903
  %1905 = vrot.lane.b32.xlu0 %v1900, 96
  %v1906 = vpop.permute.xlu0 %1905
  %v1909 = vadd.f32 %v1897, %v1904
  %v1910 = vadd.f32 %v1898, %v1906
  %v1911 = vsel %vm169, %v1909, -inf
  %v1912 = vsel %vm1083, %v1910, -inf
  %v1913 = vmax.f32 %v1911, %v1912
  %v1914 = vrot.slane %v1913, 4
  %v1915 = vmax.f32 %v1913, %v1914
  %v1916 = vrot.slane %v1915, 2
  %v1917 = vmax.f32 %v1915, %v1916
  %v1918 = vrot.slane %v1917, 1
  %v1919 = vmax.f32 %v1917, %v1918
  %1920 = vst.msk [vmem:[#allocation7 + $0x17] sm:$0x1] %vm180, %v1919
  %v1921 = vld [vmem:[#allocation6 + $0x120] sm:$0xff]
  %v1922 = vld [vmem:[#allocation6 + $0x128] sm:$0x3]
  %v1923 = vld [vmem:[#allocation6 + $0x121] sm:$0xff]
  %v1924 = vld [vmem:[#allocation6 + $0x129] sm:$0x3]
  %1927 = vrot.lane.b32.xlu0 %v1923, 112
  %v1928 = vpop.permute.xlu0 %1927
  %1929 = vrot.lane.b32.xlu0 %v1924, 112
  %v1930 = vpop.permute.xlu0 %1929
  %v1933 = vadd.f32 %v1921, %v1928
  %v1934 = vadd.f32 %v1922, %v1930
  %v1935 = vld [vmem:[#allocation6 + $0x122] sm:$0xff]
  %v1936 = vld [vmem:[#allocation6 + $0x12a] sm:$0x3]
  %1939 = vrot.lane.b32.xlu0 %v1935, 96
  %v1940 = vpop.permute.xlu0 %1939
  %1941 = vrot.lane.b32.xlu0 %v1936, 96
  %v1942 = vpop.permute.xlu0 %1941
  %v1945 = vadd.f32 %v1933, %v1940
  %v1946 = vadd.f32 %v1934, %v1942
  %v1947 = vsel %vm169, %v1945, -inf
  %v1948 = vsel %vm1083, %v1946, -inf
  %v1949 = vmax.f32 %v1947, %v1948
  %v1950 = vrot.slane %v1949, 4
  %v1951 = vmax.f32 %v1949, %v1950
  %v1952 = vrot.slane %v1951, 2
  %v1953 = vmax.f32 %v1951, %v1952
  %v1954 = vrot.slane %v1953, 1
  %v1955 = vmax.f32 %v1953, %v1954
  %1956 = vst.msk [vmem:[#allocation7 + $0x18] sm:$0x1] %vm180, %v1955
  %v1957 = vld [vmem:[#allocation6 + $0x12c] sm:$0xff]
  %v1958 = vld [vmem:[#allocation6 + $0x134] sm:$0x3]
  %v1959 = vld [vmem:[#allocation6 + $0x12d] sm:$0xff]
  %v1960 = vld [vmem:[#allocation6 + $0x135] sm:$0x3]
  %1963 = vrot.lane.b32.xlu0 %v1959, 112
  %v1964 = vpop.permute.xlu0 %1963
  %1965 = vrot.lane.b32.xlu0 %v1960, 112
  %v1966 = vpop.permute.xlu0 %1965
  %v1969 = vadd.f32 %v1957, %v1964
  %v1970 = vadd.f32 %v1958, %v1966
  %v1971 = vld [vmem:[#allocation6 + $0x12e] sm:$0xff]
  %v1972 = vld [vmem:[#allocation6 + $0x136] sm:$0x3]
  %1975 = vrot.lane.b32.xlu0 %v1971, 96
  %v1976 = vpop.permute.xlu0 %1975
  %1977 = vrot.lane.b32.xlu0 %v1972, 96
  %v1978 = vpop.permute.xlu0 %1977
  %v1981 = vadd.f32 %v1969, %v1976
  %v1982 = vadd.f32 %v1970, %v1978
  %v1983 = vsel %vm169, %v1981, -inf
  %v1984 = vsel %vm1083, %v1982, -inf
  %v1985 = vmax.f32 %v1983, %v1984
  %v1986 = vrot.slane %v1985, 4
  %v1987 = vmax.f32 %v1985, %v1986
  %v1988 = vrot.slane %v1987, 2
  %v1989 = vmax.f32 %v1987, %v1988
  %v1990 = vrot.slane %v1989, 1
  %v1991 = vmax.f32 %v1989, %v1990
  %1992 = vst.msk [vmem:[#allocation7 + $0x19] sm:$0x1] %vm180, %v1991
  %v1993 = vld [vmem:[#allocation6 + $0x138] sm:$0xff]
  %v1994 = vld [vmem:[#allocation6 + $0x140] sm:$0x3]
  %v1995 = vld [vmem:[#allocation6 + $0x139] sm:$0xff]
  %v1996 = vld [vmem:[#allocation6 + $0x141] sm:$0x3]
  %1999 = vrot.lane.b32.xlu0 %v1995, 112
  %v2000 = vpop.permute.xlu0 %1999
  %2001 = vrot.lane.b32.xlu0 %v1996, 112
  %v2002 = vpop.permute.xlu0 %2001
  %v2005 = vadd.f32 %v1993, %v2000
  %v2006 = vadd.f32 %v1994, %v2002
  %v2007 = vld [vmem:[#allocation6 + $0x13a] sm:$0xff]
  %v2008 = vld [vmem:[#allocation6 + $0x142] sm:$0x3]
  %2011 = vrot.lane.b32.xlu0 %v2007, 96
  %v2012 = vpop.permute.xlu0 %2011
  %2013 = vrot.lane.b32.xlu0 %v2008, 96
  %v2014 = vpop.permute.xlu0 %2013
  %v2017 = vadd.f32 %v2005, %v2012
  %v2018 = vadd.f32 %v2006, %v2014
  %v2019 = vsel %vm169, %v2017, -inf
  %v2020 = vsel %vm1083, %v2018, -inf
  %v2021 = vmax.f32 %v2019, %v2020
  %v2022 = vrot.slane %v2021, 4
  %v2023 = vmax.f32 %v2021, %v2022
  %v2024 = vrot.slane %v2023, 2
  %v2025 = vmax.f32 %v2023, %v2024
  %v2026 = vrot.slane %v2025, 1
  %v2027 = vmax.f32 %v2025, %v2026
  %2028 = vst.msk [vmem:[#allocation7 + $0x1a] sm:$0x1] %vm180, %v2027
  %v2029 = vld [vmem:[#allocation6 + $0x144] sm:$0xff]
  %v2030 = vld [vmem:[#allocation6 + $0x14c] sm:$0x3]
  %v2031 = vld [vmem:[#allocation6 + $0x145] sm:$0xff]
  %v2032 = vld [vmem:[#allocation6 + $0x14d] sm:$0x3]
  %2035 = vrot.lane.b32.xlu0 %v2031, 112
  %v2036 = vpop.permute.xlu0 %2035
  %2037 = vrot.lane.b32.xlu0 %v2032, 112
  %v2038 = vpop.permute.xlu0 %2037
  %v2041 = vadd.f32 %v2029, %v2036
  %v2042 = vadd.f32 %v2030, %v2038
  %v2043 = vld [vmem:[#allocation6 + $0x146] sm:$0xff]
  %v2044 = vld [vmem:[#allocation6 + $0x14e] sm:$0x3]
  %2047 = vrot.lane.b32.xlu0 %v2043, 96
  %v2048 = vpop.permute.xlu0 %2047
  %2049 = vrot.lane.b32.xlu0 %v2044, 96
  %v2050 = vpop.permute.xlu0 %2049
  %v2053 = vadd.f32 %v2041, %v2048
  %v2054 = vadd.f32 %v2042, %v2050
  %v2055 = vsel %vm169, %v2053, -inf
  %v2056 = vsel %vm1083, %v2054, -inf
  %v2057 = vmax.f32 %v2055, %v2056
  %v2058 = vrot.slane %v2057, 4
  %v2059 = vmax.f32 %v2057, %v2058
  %v2060 = vrot.slane %v2059, 2
  %v2061 = vmax.f32 %v2059, %v2060
  %v2062 = vrot.slane %v2061, 1
  %v2063 = vmax.f32 %v2061, %v2062
  %2064 = vst.msk [vmem:[#allocation7 + $0x1b] sm:$0x1] %vm180, %v2063
  %v2065 = vld [vmem:[#allocation6 + $0x150] sm:$0xff]
  %v2066 = vld [vmem:[#allocation6 + $0x158] sm:$0x3]
  %v2067 = vld [vmem:[#allocation6 + $0x151] sm:$0xff]
  %v2068 = vld [vmem:[#allocation6 + $0x159] sm:$0x3]
  %2071 = vrot.lane.b32.xlu0 %v2067, 112
  %v2072 = vpop.permute.xlu0 %2071
  %2073 = vrot.lane.b32.xlu0 %v2068, 112
  %v2074 = vpop.permute.xlu0 %2073
  %v2077 = vadd.f32 %v2065, %v2072
  %v2078 = vadd.f32 %v2066, %v2074
  %v2079 = vld [vmem:[#allocation6 + $0x152] sm:$0xff]
  %v2080 = vld [vmem:[#allocation6 + $0x15a] sm:$0x3]
  %2083 = vrot.lane.b32.xlu0 %v2079, 96
  %v2084 = vpop.permute.xlu0 %2083
  %2085 = vrot.lane.b32.xlu0 %v2080, 96
  %v2086 = vpop.permute.xlu0 %2085
  %v2089 = vadd.f32 %v2077, %v2084
  %v2090 = vadd.f32 %v2078, %v2086
  %v2091 = vsel %vm169, %v2089, -inf
  %v2092 = vsel %vm1083, %v2090, -inf
  %v2093 = vmax.f32 %v2091, %v2092
  %v2094 = vrot.slane %v2093, 4
  %v2095 = vmax.f32 %v2093, %v2094
  %v2096 = vrot.slane %v2095, 2
  %v2097 = vmax.f32 %v2095, %v2096
  %v2098 = vrot.slane %v2097, 1
  %v2099 = vmax.f32 %v2097, %v2098
  %2100 = vst.msk [vmem:[#allocation7 + $0x1c] sm:$0x1] %vm180, %v2099
  %v2101 = vld [vmem:[#allocation6 + $0x15c] sm:$0xff]
  %v2102 = vld [vmem:[#allocation6 + $0x164] sm:$0x3]
  %v2103 = vld [vmem:[#allocation6 + $0x15d] sm:$0xff]
  %v2104 = vld [vmem:[#allocation6 + $0x165] sm:$0x3]
  %2107 = vrot.lane.b32.xlu0 %v2103, 112
  %v2108 = vpop.permute.xlu0 %2107
  %2109 = vrot.lane.b32.xlu0 %v2104, 112
  %v2110 = vpop.permute.xlu0 %2109
  %v2113 = vadd.f32 %v2101, %v2108
  %v2114 = vadd.f32 %v2102, %v2110
  %v2115 = vld [vmem:[#allocation6 + $0x15e] sm:$0xff]
  %v2116 = vld [vmem:[#allocation6 + $0x166] sm:$0x3]
  %2119 = vrot.lane.b32.xlu0 %v2115, 96
  %v2120 = vpop.permute.xlu0 %2119
  %2121 = vrot.lane.b32.xlu0 %v2116, 96
  %v2122 = vpop.permute.xlu0 %2121
  %v2125 = vadd.f32 %v2113, %v2120
  %v2126 = vadd.f32 %v2114, %v2122
  %v2127 = vsel %vm169, %v2125, -inf
  %v2128 = vsel %vm1083, %v2126, -inf
  %v2129 = vmax.f32 %v2127, %v2128
  %v2130 = vrot.slane %v2129, 4
  %v2131 = vmax.f32 %v2129, %v2130
  %v2132 = vrot.slane %v2131, 2
  %v2133 = vmax.f32 %v2131, %v2132
  %v2134 = vrot.slane %v2133, 1
  %v2135 = vmax.f32 %v2133, %v2134
  %2136 = vst.msk [vmem:[#allocation7 + $0x1d] sm:$0x1] %vm180, %v2135
  %v2137 = vld [vmem:[#allocation6 + $0x168] sm:$0xff]
  %v2138 = vld [vmem:[#allocation6 + $0x170] sm:$0x3]
  %v2139 = vld [vmem:[#allocation6 + $0x169] sm:$0xff]
  %v2140 = vld [vmem:[#allocation6 + $0x171] sm:$0x3]
  %2143 = vrot.lane.b32.xlu0 %v2139, 112
  %v2144 = vpop.permute.xlu0 %2143
  %2145 = vrot.lane.b32.xlu0 %v2140, 112
  %v2146 = vpop.permute.xlu0 %2145
  %v2149 = vadd.f32 %v2137, %v2144
  %v2150 = vadd.f32 %v2138, %v2146
  %v2151 = vld [vmem:[#allocation6 + $0x16a] sm:$0xff]
  %v2152 = vld [vmem:[#allocation6 + $0x172] sm:$0x3]
  %2155 = vrot.lane.b32.xlu0 %v2151, 96
  %v2156 = vpop.permute.xlu0 %2155
  %2157 = vrot.lane.b32.xlu0 %v2152, 96
  %v2158 = vpop.permute.xlu0 %2157
  %v2161 = vadd.f32 %v2149, %v2156
  %v2162 = vadd.f32 %v2150, %v2158
  %v2163 = vsel %vm169, %v2161, -inf
  %v2164 = vsel %vm1083, %v2162, -inf
  %v2165 = vmax.f32 %v2163, %v2164
  %v2166 = vrot.slane %v2165, 4
  %v2167 = vmax.f32 %v2165, %v2166
  %v2168 = vrot.slane %v2167, 2
  %v2169 = vmax.f32 %v2167, %v2168
  %v2170 = vrot.slane %v2169, 1
  %v2171 = vmax.f32 %v2169, %v2170
  %2172 = vst.msk [vmem:[#allocation7 + $0x1e] sm:$0x1] %vm180, %v2171
  %v2173 = vld [vmem:[#allocation6 + $0x174] sm:$0xff]
  %v2174 = vld [vmem:[#allocation6 + $0x17c] sm:$0x3]
  %v2175 = vld [vmem:[#allocation6 + $0x175] sm:$0xff]
  %v2176 = vld [vmem:[#allocation6 + $0x17d] sm:$0x3]
  %2179 = vrot.lane.b32.xlu0 %v2175, 112
  %v2180 = vpop.permute.xlu0 %2179
  %2181 = vrot.lane.b32.xlu0 %v2176, 112
  %v2182 = vpop.permute.xlu0 %2181
  %v2185 = vadd.f32 %v2173, %v2180
  %v2186 = vadd.f32 %v2174, %v2182
  %v2187 = vld [vmem:[#allocation6 + $0x176] sm:$0xff]
  %v2188 = vld [vmem:[#allocation6 + $0x17e] sm:$0x3]
  %2191 = vrot.lane.b32.xlu0 %v2187, 96
  %v2192 = vpop.permute.xlu0 %2191
  %2193 = vrot.lane.b32.xlu0 %v2188, 96
  %v2194 = vpop.permute.xlu0 %2193
  %v2197 = vadd.f32 %v2185, %v2192
  %v2198 = vadd.f32 %v2186, %v2194
  %v2199 = vsel %vm169, %v2197, -inf
  %v2200 = vsel %vm1083, %v2198, -inf
  %v2201 = vmax.f32 %v2199, %v2200
  %v2202 = vrot.slane %v2201, 4
  %v2203 = vmax.f32 %v2201, %v2202
  %v2204 = vrot.slane %v2203, 2
  %v2205 = vmax.f32 %v2203, %v2204
  %v2206 = vrot.slane %v2205, 1
  %v2207 = vmax.f32 %v2205, %v2206
  %2208 = vst.msk [vmem:[#allocation7 + $0x1f] sm:$0x1] %vm180, %v2207
  %v2209 = vld [vmem:[#allocation7] sm:$0xff]
  %v2210 = vld [vmem:[#allocation7 + $0x8] sm:$0xff]
  %v2211 = vld [vmem:[#allocation7 + $0x10] sm:$0xff]
  %v2212 = vld [vmem:[#allocation7 + $0x18] sm:$0xff]
  %v2213 = vld [vmem:[%s3] sm:$0xff]
  %v2214 = vld [vmem:[%s3 + $0x8] sm:$0xff]
  %v2215 = vld [vmem:[%s4] sm:$0x1]
  %v2217 = vlaneseq
  %v2218 = vshrl.u32 %v2217, 7
  %v2219 = vsub.s32 0, %v2218
  %v2220 = vrot.slane %v2215, %v2219
  %v2223 = vsel %vm169, %v2209, 0
  %v2226 = vsel %vm169, %v2210, 0
  %v2229 = vsel %vm169, %v2211, 0
  %v2232 = vsel %vm169, %v2212, 0
  %2234 = vmatprep.subr.mxu0 0.0
  %2235 = vmatpush1.msra.mxu0 %v2213
  %2236 = vmatprep.subr.mxu0 0.0
  %2237 = vmatpush1.msra.mxu0 %v2214
  %2238 = vmatprep.subr.mxu0 0.0
  %2239 = vmatpush1.msra.mxu0 0.0
  %2240 = vmatprep.subr.mxu0 0.0
  %2241 = vmatpush1.msra.mxu0 0.0
  %2242 = vmatprep.subr.mxu0 0.0
  %2243 = vmatpush1.msra.mxu0 0.0
  %2244 = vmatprep.subr.mxu0 0.0
  %2245 = vmatpush1.msra.mxu0 0.0
  %2246 = vmatprep.subr.mxu0 0.0
  %2247 = vmatpush1.msra.mxu0 0.0
  %2248 = vmatprep.subr.mxu0 0.0
  %2249 = vmatpush1.msra.mxu0 0.0
  %2250 = vmatprep.subr.mxu0 0.0
  %2251 = vmatpush1.msra.mxu0 0.0
  %2252 = vmatprep.subr.mxu0 0.0
  %2253 = vmatpush1.msra.mxu0 0.0
  %2254 = vmatprep.subr.mxu0 0.0
  %2255 = vmatpush1.msra.mxu0 0.0
  %2256 = vmatprep.subr.mxu0 0.0
  %2257 = vmatpush1.msra.mxu0 0.0
  %2258 = vmatprep.subr.mxu0 0.0
  %2259 = vmatpush1.msra.mxu0 0.0
  %2260 = vmatprep.subr.mxu0 0.0
  %2261 = vmatpush1.msra.mxu0 0.0
  %2262 = vmatprep.subr.mxu0 0.0
  %2263 = vmatpush1.msra.mxu0 0.0
  %2264 = vmatprep.subr.mxu0 0.0
  %2265 = vmatpush1.msra.mxu0 0.0
  %2266 = vmatprep.subr.mxu0 0.0
  %2267 = vmatpush1.msra.mxu0 0.0
  %2268 = vmatprep.subr.mxu0 0.0
  %2269 = vmatpush1.msra.mxu0 0.0
  %2270 = vmatprep.subr.mxu0 0.0
  %2271 = vmatpush1.msra.mxu0 0.0
  %2272 = vmatprep.subr.mxu0 0.0
  %2273 = vmatpush1.msra.mxu0 0.0
  %2274 = vmatprep.subr.mxu0 0.0
  %2275 = vmatpush1.msra.mxu0 0.0
  %2276 = vmatprep.subr.mxu0 0.0
  %2277 = vmatpush1.msra.mxu0 0.0
  %2278 = vmatprep.subr.mxu0 0.0
  %2279 = vmatpush1.msra.mxu0 0.0
  %2280 = vmatprep.subr.mxu0 0.0
  %2281 = vmatpush1.msra.mxu0 0.0
  %2282 = vmatprep.subr.mxu0 0.0
  %2283 = vmatpush1.msra.mxu0 0.0
  %2284 = vmatprep.subr.mxu0 0.0
  %2285 = vmatpush1.msra.mxu0 0.0
  %2286 = vmatprep.subr.mxu0 0.0
  %2287 = vmatpush1.msra.mxu0 0.0
  %2288 = vmatprep.subr.mxu0 0.0
  %2289 = vmatpush1.msra.mxu0 0.0
  %2290 = vmatprep.subr.mxu0 0.0
  %2291 = vmatpush1.msra.mxu0 0.0
  %2292 = vmatprep.subr.mxu0 0.0
  %2293 = vmatpush1.msra.mxu0 0.0
  %2294 = vmatprep.subr.mxu0 0.0
  %2295 = vmatpush1.msra.mxu0 0.0
  %2296 = vmatprep.subr.mxu0 0.0
  %2297 = vmatpush1.msra.mxu0 0.0
  %2298 = vmatprep.mubr.f32.mxu0 0.0
  %2299 = vmatmul.mubr.f32.gmra.mrb[0].mxu0 %v2223
  %v2300 = vpop.f32.mrb[0].mxu0
  %v2301 = vadd.f32 %v2220, %v2300
  %v2302 = vpop.f32.mrb[0].mxu0
  %2303 = vmatprep.mubr.f32.mxu0 0.0
  %2304 = vmatmul.mubr.f32.gmra.mrb[0].mxu0 %v2226
  %v2305 = vpop.f32.mrb[0].mxu0
  %v2306 = vadd.f32 %v2220, %v2305
  %v2307 = vpop.f32.mrb[0].mxu0
  %2308 = vmatprep.mubr.f32.mxu0 0.0
  %2309 = vmatmul.mubr.f32.gmra.mrb[0].mxu0 %v2229
  %v2310 = vpop.f32.mrb[0].mxu0
  %v2311 = vadd.f32 %v2220, %v2310
  %v2312 = vpop.f32.mrb[0].mxu0
  %2313 = vmatprep.mubr.f32.mxu0 0.0
  %2314 = vmatmul.mubr.f32.gmra.mrb[0].mxu0 %v2232
  %v2315 = vpop.f32.mrb[0].mxu0
  %v2316 = vadd.f32 %v2220, %v2315
  %v2317 = vpop.f32.mrb[0].mxu0
  %2318 = vdwg.mxu0
  %v2319 = vtanh.pop %v2301
  %v2320 = vtanh.pop %v2306
  %v2321 = vtanh.pop %v2311
  %v2322 = vtanh.pop %v2316
  %vm2323 = vcmask 257024
  %v2324 = vsel %vm2323, %v2319, -inf
  %v2325 = vrot.slane %v2324, 4
  %v2326 = vmax.f32 %v2324, %v2325
  %v2327 = vrot.slane %v2326, 2
  %v2328 = vmax.f32 %v2326, %v2327
  %v2329 = vrot.slane %v2328, 1
  %v2330 = vmax.f32 %v2328, %v2329
  %vm2331 = vcmask 253952
  %2332 = vst.msk [vmem:[#allocation8] sm:$0x1] %vm2331, %v2330
  %vm2333 = vcmask 261124
  %v2334 = vsel %vm2333, %v2319, -inf
  %v2335 = vrot.slane %v2334, 4
  %v2336 = vmax.f32 %v2334, %v2335
  %v2337 = vrot.slane %v2336, 2
  %v2338 = vmax.f32 %v2336, %v2337
  %v2339 = vrot.slane %v2338, 1
  %v2340 = vmax.f32 %v2338, %v2339
  %2341 = vst.msk [vmem:[#allocation8 + $0x1] sm:$0x1] %vm2331, %v2340
  %v2342 = vsel %vm2323, %v2320, -inf
  %v2343 = vrot.slane %v2342, 4
  %v2344 = vmax.f32 %v2342, %v2343
  %v2345 = vrot.slane %v2344, 2
  %v2346 = vmax.f32 %v2344, %v2345
  %v2347 = vrot.slane %v2346, 1
  %v2348 = vmax.f32 %v2346, %v2347
  %2349 = vst.msk [vmem:[#allocation8 + $0x2] sm:$0x1] %vm2331, %v2348
  %v2350 = vsel %vm2333, %v2320, -inf
  %v2351 = vrot.slane %v2350, 4
  %v2352 = vmax.f32 %v2350, %v2351
  %v2353 = vrot.slane %v2352, 2
  %v2354 = vmax.f32 %v2352, %v2353
  %v2355 = vrot.slane %v2354, 1
  %v2356 = vmax.f32 %v2354, %v2355
  %2357 = vst.msk [vmem:[#allocation8 + $0x3] sm:$0x1] %vm2331, %v2356
  %v2358 = vsel %vm2323, %v2321, -inf
  %v2359 = vrot.slane %v2358, 4
  %v2360 = vmax.f32 %v2358, %v2359
  %v2361 = vrot.slane %v2360, 2
  %v2362 = vmax.f32 %v2360, %v2361
  %v2363 = vrot.slane %v2362, 1
  %v2364 = vmax.f32 %v2362, %v2363
  %2365 = vst.msk [vmem:[#allocation8 + $0x4] sm:$0x1] %vm2331, %v2364
  %v2366 = vsel %vm2333, %v2321, -inf
  %v2367 = vrot.slane %v2366, 4
  %v2368 = vmax.f32 %v2366, %v2367
  %v2369 = vrot.slane %v2368, 2
  %v2370 = vmax.f32 %v2368, %v2369
  %v2371 = vrot.slane %v2370, 1
  %v2372 = vmax.f32 %v2370, %v2371
  %2373 = vst.msk [vmem:[#allocation8 + $0x5] sm:$0x1] %vm2331, %v2372
  %v2374 = vsel %vm2323, %v2322, -inf
  %v2375 = vrot.slane %v2374, 4
  %v2376 = vmax.f32 %v2374, %v2375
  %v2377 = vrot.slane %v2376, 2
  %v2378 = vmax.f32 %v2376, %v2377
  %v2379 = vrot.slane %v2378, 1
  %v2380 = vmax.f32 %v2378, %v2379
  %2381 = vst.msk [vmem:[#allocation8 + $0x6] sm:$0x1] %vm2331, %v2380
  %v2382 = vsel %vm2333, %v2322, -inf
  %v2383 = vrot.slane %v2382, 4
  %v2384 = vmax.f32 %v2382, %v2383
  %v2385 = vrot.slane %v2384, 2
  %v2386 = vmax.f32 %v2384, %v2385
  %v2387 = vrot.slane %v2386, 1
  %v2388 = vmax.f32 %v2386, %v2387
  %2389 = vst.msk [vmem:[#allocation8 + $0x7] sm:$0x1] %vm2331, %v2388
  %v2390 = vld [vmem:[#allocation8] sm:$0xf]
  %v2391 = vlaneseq
  %v2392 = vshrl.u32 %v2391, 7
  %v2393 = vsub.s32 0, %v2392
  %v2394 = vrot.slane %v301, %v2393
  %v2395 = vmul.f32 %v2390, %v2394
  %v2396 = vsel %vm2323, %v2395, 0.0
  %2397 = vadd.xlane.f32.xlu0 %v2396
  %v2398 = vpop.xlane.xlu0 %2397
  %vm2399 = vcmask 1043456
  %v2400 = vsel %vm2399, %v2398, -inf
  %v2401 = vrot.slane %v2400, 4
  %v2402 = vmax.f32 %v2400, %v2401
  %v2403 = vrot.slane %v2402, 2
  %v2404 = vmax.f32 %v2402, %v2403
  %v2405 = vrot.slane %v2404, 1
  %v2406 = vmax.f32 %v2404, %v2405
  %v2407 = vsub.f32 %v2398, %v2406
  %v2408 = vmul.f32 %v2407, 1.442695
  %v2409 = vpow.pop %v2408
  %v2410 = vsel %vm2399, %v2409, 0.0
  %v2411 = vrot.slane %v2410, 4
  %v2412 = vadd.f32 %v2410, %v2411
  %v2413 = vrot.slane %v2412, 2
  %v2414 = vadd.f32 %v2412, %v2413
  %v2415 = vrot.slane %v2414, 1
  %v2416 = vadd.f32 %v2414, %v2415
  %v2417 = vlog2.pop %v2416
  %v2418 = vmul.f32 %v2417, 0.6931472
  %v2419 = vsub.f32 %v2407, %v2418
  %vm2420 = vcmask 3072
  %2421 = vst.msk [vmem:[%s5] sm:$0xf] %vm2420, %v2419
  %v2422 = vld [vmem:[#allocation8 + $0x4] sm:$0xf]
  %v2423 = vlaneseq
  %v2424 = vshrl.u32 %v2423, 7
  %v2425 = vsub.s32 1, %v2424
  %v2426 = vrot.slane %v301, %v2425
  %v2427 = vmul.f32 %v2422, %v2426
  %v2428 = vsel %vm2323, %v2427, 0.0
  %2429 = vadd.xlane.f32.xlu0 %v2428
  %v2430 = vpop.xlane.xlu0 %2429
  %v2431 = vsel %vm2399, %v2430, -inf
  %v2432 = vrot.slane %v2431, 4
  %v2433 = vmax.f32 %v2431, %v2432
  %v2434 = vrot.slane %v2433, 2
  %v2435 = vmax.f32 %v2433, %v2434
  %v2436 = vrot.slane %v2435, 1
  %v2437 = vmax.f32 %v2435, %v2436
  %v2438 = vsub.f32 %v2430, %v2437
  %v2439 = vmul.f32 %v2438, 1.442695
  %v2440 = vpow.pop %v2439
  %v2441 = vsel %vm2399, %v2440, 0.0
  %v2442 = vrot.slane %v2441, 4
  %v2443 = vadd.f32 %v2441, %v2442
  %v2444 = vrot.slane %v2443, 2
  %v2445 = vadd.f32 %v2443, %v2444
  %v2446 = vrot.slane %v2445, 1
  %v2447 = vadd.f32 %v2445, %v2446
  %v2448 = vlog2.pop %v2447
  %v2449 = vmul.f32 %v2448, 0.6931472
  %v2450 = vsub.f32 %v2438, %v2449
  %2451 = vst.msk [vmem:[%s5 + $0x4] sm:$0xf] %vm2420, %v2450
  // Predicated region
  $region22: #{brothers_forward.1} parent=0 // pred_check
    _
  $region23: #{brothers_forward.1} parent=0 // pred_check_branch
    %2453 = sbr.rel (0) target = $region25
  $region24: #{brothers_forward.1} parent=0 // pred_region
    _
  $region25: #{brothers_forward.1} parent=0 // pred_fallthru
    _
  // Predicated region
  $region26: #{brothers_forward.1} parent=0 // pred_check
    _
  $region27: #{brothers_forward.1} parent=0 // pred_check_branch
    %2455 = sbr.rel (0) target = $region29
  $region28: #{brothers_forward.1} parent=0 // pred_region
    _
  $region29: #{brothers_forward.1} parent=0 // pred_fallthru
    _

</llo_original>
